<compile_context>
chip_gen: v7x
topology: tpu7x:2x2x1
jax: 0.10.0
libtpu: 0.0.40
codegen_flags: <defaults>
</compile_context>

<pallas_src>
import jax
import jax.numpy as jnp
from jax.experimental import pallas as pl
from jax.experimental.pallas import tpu as pltpu

CONV_K = 32          # conv1 kernel size (stride 1)
CONV_OC = 8          # conv1 out channels
FC1_OUT = 40
POOL_K = 128         # AvgPool1d kernel
POOL_S = 64          # AvgPool1d stride


def _classifier_cnn_kernel(x_ref, wc_ref, bc_ref, w1_ref, b1_ref, w2_ref, b2_ref,
                           out_ref, patch_ref):
    # x_ref:     (1, T, C)    f32   one sample (grid axis 0 = batch)
    # wc_ref:    (K*C, C*OC)  bf16  block-diag grouped-conv weight, row = k*C + c
    # bc_ref:    (1, C*OC)    f32   conv bias tiled so col c*OC+oc -> bias[oc]
    # w1_ref:    (C*OC, F1)   bf16  fc1 weight (transposed PyTorch layout)
    # b1_ref:    (1, F1)      f32
    # w2_ref:    (P*F1, NC)   bf16  fc2 weight, row index = p*F1 + f
    # b2_ref:    (1, NC)      f32
    # out_ref:   (1, 1, NC)   f32
    # patch_ref: (L, K*C)     f32   VMEM scratch (im2col tile)
    C = x_ref.shape[2]
    L = patch_ref.shape[0]
    F1 = b1_ref.shape[1]
    NC = out_ref.shape[2]
    P = w2_ref.shape[0] // F1

    xs = x_ref[0]                                        # (T, C) f32, single load

    # ---- in-kernel im2col: patch[l, k*C + c] = x[l + k, c] --------------------
    # 32 static shifted slices into the VMEM scratch (sublane shift + lane
    # placement); replaces the old wrapper-side XLA gather/transpose.
    for k in range(CONV_K):                              # static unroll
        patch_ref[:, k * C:(k + 1) * C] = xs[k:k + L, :]

    # ---- Conv1d(in=1, out=8, k=32) as one K=128 MXU matmul + ELU --------------
    # bf16 operands, f32 accumulation; bias add / ELU stay f32 (v5e-safe).
    z = jnp.dot(patch_ref[...].astype(jnp.bfloat16), wc_ref[...],
                preferred_element_type=jnp.float32) + bc_ref[...]       # (L, C*OC)
    # ELU(alpha=1): clamp the exp argument so the untaken branch stays in range.
    z = jnp.where(z > 0, z, jnp.exp(jnp.minimum(z, 0.0)) - 1.0)

    # ---- dropout(p=0.5): identity at inference --------------------------------
    # TODO(synk): training-mode dropout (pltpu.prng_* mask + 1/(1-p) scale) not implemented.

    # ---- fc1: single K = C*OC contraction --------------------------------------
    h = jnp.dot(z.astype(jnp.bfloat16), w1_ref[...],
                preferred_element_type=jnp.float32) + b1_ref[...]       # (L, F1)

    # ---- AvgPool1d(128, 64): non-overlapping 64-row partial sums, combined
    #      pairwise (window p = chunk p + chunk p+1); slices are 8-aligned -------
    chunks = [jnp.sum(h[POOL_S * c:POOL_S * (c + 1), :], axis=0, keepdims=True)
              for c in range(P + 1)]                                     # (1, F1) each
    pooled = jnp.concatenate(
        [(chunks[p] + chunks[p + 1]) * (1.0 / POOL_K) for p in range(P)],
        axis=-1)                                                         # (1, P*F1)

    # ---- fc2: one fused (1, P*F1) x (P*F1, NC) matmul ---------------------------
    logits = jnp.dot(pooled.astype(jnp.bfloat16), w2_ref[...],
                     preferred_element_type=jnp.float32) + b2_ref[...]   # (1, NC)
    out_ref[...] = logits.reshape(1, 1, NC)


def pack_params(params, in_channel, num_points, n_classes):
    """One-time parameter packing (hoisted out of the per-call path)."""
    C, K, OC, F1 = in_channel, CONV_K, CONV_OC, FC1_OUT
    L = num_points - K + 1
    P = (L - POOL_K) // POOL_S + 1

    # Block-diagonal grouped-conv weight: row k*C + c, col d*OC + oc,
    # value = (c == d) * conv_w[oc, k].
    wbd = jnp.einsum("cd,ok->kcdo", jnp.eye(C, dtype=jnp.float32),
                     params["conv_w"]).reshape(K * C, C * OC)
    bc = jnp.tile(params["conv_b"], (C,)).reshape(1, C * OC)
    w1 = params["fc1_w"].T                                         # (C*OC, F1)
    b1 = params["fc1_b"].reshape(1, F1)
    # fc2: kernel's pooled column is p*F1 + f; PyTorch flat index is f*P + p.
    w2 = params["fc2_w"].reshape(n_classes, F1, P).transpose(2, 1, 0).reshape(P * F1, n_classes)
    b2 = params["fc2_b"].reshape(1, n_classes)
    return {
        "wbd": wbd.astype(jnp.bfloat16), "bc": bc,
        "w1": w1.astype(jnp.bfloat16), "b1": b1,
        "w2": w2.astype(jnp.bfloat16), "b2": b2,
    }


def classifier_cnn_forward(x, packed, in_channel, num_points, n_classes):
    """x: (B, num_points, in_channel) f32 (same axis convention as the PyTorch module)."""
    B = x.shape[0]
    C, T = in_channel, num_points
    L = T - CONV_K + 1
    P = (L - POOL_K) // POOL_S + 1
    F1, NC = FC1_OUT, n_classes

    out3 = pl.pallas_call(
        _classifier_cnn_kernel,
        out_shape=jax.ShapeDtypeStruct((B, 1, NC), jnp.float32),
        grid_spec=pltpu.PrefetchScalarGridSpec(
            num_scalar_prefetch=0,
            # Batch axis on the grid ("parallel") -> both v7x TensorCores.
            # NOTE: when scaling num_points/B beyond this toy config, also tile
            # the L (row) dimension and set vmem_limit_bytes (v7x VMEM = 64 MiB).
            grid=(B,),
            in_specs=[
                pl.BlockSpec((1, T, C), lambda b: (b, 0, 0)),                  # x (per-sample)
                pl.BlockSpec((C * CONV_K, C * CONV_OC), lambda b: (0, 0)),     # wbd (bf16)
                pl.BlockSpec((1, C * CONV_OC), lambda b: (0, 0)),              # conv bias
                pl.BlockSpec((C * CONV_OC, F1), lambda b: (0, 0)),             # fc1 w (bf16)
                pl.BlockSpec((1, F1), lambda b: (0, 0)),                       # fc1 b
                pl.BlockSpec((P * F1, NC), lambda b: (0, 0)),                  # fc2 w (bf16)
                pl.BlockSpec((1, NC), lambda b: (0, 0)),                       # fc2 b
            ],
            out_specs=pl.BlockSpec((1, 1, NC), lambda b: (b, 0, 0)),
            scratch_shapes=[pltpu.VMEM((L, C * CONV_K), jnp.float32)],         # im2col tile
        ),
        compiler_params=pltpu.CompilerParams(
            dimension_semantics=("parallel",)),
    )(x.astype(jnp.float32), packed["wbd"], packed["bc"], packed["w1"],
      packed["b1"], packed["w2"], packed["b2"])
    return out3.reshape(B, NC)


def init_params(key, in_channel, num_points, n_classes):
    """Deterministic synthetic parameters with the same shapes PyTorch would create."""
    L = num_points - CONV_K + 1
    P = (L - POOL_K) // POOL_S + 1
    fc1_in = in_channel * CONV_OC
    fc2_in = P * FC1_OUT
    ks = jax.random.split(key, 6)

    def u(k, shape, fan_in):
        bound = 1.0 / (fan_in ** 0.5)
        return jax.random.uniform(k, shape, jnp.float32, -bound, bound)

    return {
        "conv_w": u(ks[0], (CONV_OC, CONV_K), CONV_K),
        "conv_b": u(ks[1], (CONV_OC,), CONV_K),
        "fc1_w": u(ks[2], (FC1_OUT, fc1_in), fc1_in),
        "fc1_b": u(ks[3], (FC1_OUT,), fc1_in),
        "fc2_w": u(ks[4], (n_classes, fc2_in), fc2_in),
        "fc2_b": u(ks[5], (n_classes,), fc2_in),
    }


def reference_forward(x, p, in_channel, num_points, n_classes, mxu_dtype=jnp.float32):
    """Pure-JAX mirror of the PyTorch forward (inference mode: dropout = identity).

    mxu_dtype=float32   -> exact module semantics.
    mxu_dtype=bfloat16  -> mirrors the kernel's bf16-operand / f32-accumulate matmuls.
    """
    B = x.shape[0]
    C, T = in_channel, num_points
    L = T - CONV_K + 1
    P = (L - POOL_K) // POOL_S + 1
    xt = jnp.transpose(x, (0, 2, 1)).reshape(B * C, T)               # (B*C, T)
    idx = jnp.arange(L)[:, None] + jnp.arange(CONV_K)[None, :]       # (L, K)
    patches = xt[:, idx]                                             # (B*C, L, K)
    conv = jnp.einsum("nlk,ok->nol", patches.astype(mxu_dtype),
                      p["conv_w"].astype(mxu_dtype),
                      preferred_element_type=jnp.float32) + p["conv_b"][None, :, None]
    act = jnp.where(conv > 0, conv, jnp.exp(jnp.minimum(conv, 0.0)) - 1.0)
    z = act.reshape(B, C, CONV_OC, L).transpose(0, 3, 1, 2).reshape(B, L, C * CONV_OC)
    h = jnp.einsum("blf,of->blo", z.astype(mxu_dtype), p["fc1_w"].astype(mxu_dtype),
                   preferred_element_type=jnp.float32) + p["fc1_b"]  # (B, L, F1)
    hp = jnp.transpose(h, (0, 2, 1))                                 # (B, F1, L)
    pooled = jnp.stack(
        [hp[:, :, i * POOL_S: i * POOL_S + POOL_K].mean(-1) for i in range(P)], axis=-1
    )                                                                # (B, F1, P)
    flat = pooled.reshape(B, -1)                                     # col = f*P + p
    return jnp.einsum("bi,oi->bo", flat.astype(mxu_dtype), p["fc2_w"].astype(mxu_dtype),
                      preferred_element_type=jnp.float32) + p["fc2_b"]


if __name__ == "__main__":
    B, C, T, NC = 2, 4, 223, 10   # batch, in_channel, num_points, n_classes (small)
    key = jax.random.PRNGKey(0)
    kx, kp = jax.random.split(key)
    x = jax.random.normal(kx, (B, T, C), jnp.float32)   # module-style (B, num_points, channel)
    params = init_params(kp, C, T, NC)

    packed = pack_params(params, C, T, NC)              # one-time packing (hoisted)
    fwd = jax.jit(lambda xx, pp: classifier_cnn_forward(xx, pp, C, T, NC))

    out = jax.block_until_ready(fwd(x, packed))
    assert out.shape == (B, NC), f"bad shape {out.shape}"

    # Tight check vs a reference that mirrors the kernel's bf16-operand matmuls.
    ref_bf = jax.block_until_ready(reference_forward(x, params, C, T, NC, jnp.bfloat16))
    if not jnp.allclose(out, ref_bf, atol=2e-3, rtol=2e-3):
        raise AssertionError(
            f"kernel vs bf16-mirrored ref: max abs err = {jnp.max(jnp.abs(out - ref_bf))}")

    # Looser check vs exact f32 module semantics (budget = bf16 operand rounding).
    ref_f32 = jax.block_until_ready(reference_forward(x, params, C, T, NC, jnp.float32))
    if not jnp.allclose(out, ref_f32, atol=3e-2, rtol=3e-2):
        raise AssertionError(
            f"kernel vs f32 reference: max abs err = {jnp.max(jnp.abs(out - ref_f32))}")

    print("KERNEL_OK")
</pallas_src>

<mosaic_0001>
module attributes {stable_mosaic.version = 11 : i64} {
  func.func @_classifier_cnn_kernel(%arg0: i32, %arg1: memref<1x223x4xf32, #tpu.memory_space<vmem>>, %arg2: memref<128x32xbf16, #tpu.memory_space<vmem>>, %arg3: memref<1x32xf32, #tpu.memory_space<vmem>>, %arg4: memref<32x40xbf16, #tpu.memory_space<vmem>>, %arg5: memref<1x40xf32, #tpu.memory_space<vmem>>, %arg6: memref<80x10xbf16, #tpu.memory_space<vmem>>, %arg7: memref<1x10xf32, #tpu.memory_space<vmem>>, %arg8: memref<1x1x10xf32, #tpu.memory_space<vmem>>, %arg9: memref<192x128xf32, #tpu.memory_space<vmem>>) attributes {dimension_semantics = [#tpu.dimension_semantics<parallel>], iteration_bounds = array<i64: 2>, scalar_prefetch = 0 : i64, scratch_operands = 1 : i64, tpu.core_type = #tpu.core_type<tc>, window_params = [{transform_indices = @transform_0, window_bounds = array<i64: 1, 223, 4>}, {pipeline_mode = #tpu.pipeline_mode<synchronous>, transform_indices = @transform_1, window_bounds = array<i64: 128, 32>}, {pipeline_mode = #tpu.pipeline_mode<synchronous>, transform_indices = @transform_2, window_bounds = array<i64: 1, 32>}, {pipeline_mode = #tpu.pipeline_mode<synchronous>, transform_indices = @transform_3, window_bounds = array<i64: 32, 40>}, {pipeline_mode = #tpu.pipeline_mode<synchronous>, transform_indices = @transform_4, window_bounds = array<i64: 1, 40>}, {pipeline_mode = #tpu.pipeline_mode<synchronous>, transform_indices = @transform_5, window_bounds = array<i64: 80, 10>}, {pipeline_mode = #tpu.pipeline_mode<synchronous>, transform_indices = @transform_6, window_bounds = array<i64: 1, 10>}, {transform_indices = @transform_7, window_bounds = array<i64: 1, 1, 10>}]} {
    %c0 = arith.constant 0 : index
    %c0_0 = arith.constant 0 : index
    %c0_1 = arith.constant 0 : index
    %0 = vector.load %arg1[%c0, %c0_0, %c0_1] : memref<1x223x4xf32, #tpu.memory_space<vmem>>, vector<1x223x4xf32>
    %1 = vector.shape_cast %0 : vector<1x223x4xf32> to vector<223x4xf32>
    %2 = vector.extract_strided_slice %1 {offsets = [0, 0], sizes = [192, 4], strides = [1, 1]} : vector<223x4xf32> to vector<192x4xf32>
    %c0_2 = arith.constant 0 : index
    %c0_3 = arith.constant 0 : index
    %3 = vector.load %arg9[%c0_2, %c0_3] : memref<192x128xf32, #tpu.memory_space<vmem>>, vector<192x4xf32>
    tpu.vector_store %arg9[%c0_2, %c0_3], %2 {strides = array<i32>} : memref<192x128xf32, #tpu.memory_space<vmem>>, vector<192x4xf32>,
    %4 = vector.extract_strided_slice %1 {offsets = [1, 0], sizes = [192, 4], strides = [1, 1]} : vector<223x4xf32> to vector<192x4xf32>
    %c0_4 = arith.constant 0 : index
    %c4 = arith.constant 4 : index
    %5 = vector.load %arg9[%c0_4, %c4] : memref<192x128xf32, #tpu.memory_space<vmem>>, vector<192x4xf32>
    tpu.vector_store %arg9[%c0_4, %c4], %4 {strides = array<i32>} : memref<192x128xf32, #tpu.memory_space<vmem>>, vector<192x4xf32>,
    %6 = vector.extract_strided_slice %1 {offsets = [2, 0], sizes = [192, 4], strides = [1, 1]} : vector<223x4xf32> to vector<192x4xf32>
    %c0_5 = arith.constant 0 : index
    %c8 = arith.constant 8 : index
    %7 = vector.load %arg9[%c0_5, %c8] : memref<192x128xf32, #tpu.memory_space<vmem>>, vector<192x4xf32>
    tpu.vector_store %arg9[%c0_5, %c8], %6 {strides = array<i32>} : memref<192x128xf32, #tpu.memory_space<vmem>>, vector<192x4xf32>,
    %8 = vector.extract_strided_slice %1 {offsets = [3, 0], sizes = [192, 4], strides = [1, 1]} : vector<223x4xf32> to vector<192x4xf32>
    %c0_6 = arith.constant 0 : index
    %c12 = arith.constant 12 : index
    %9 = vector.load %arg9[%c0_6, %c12] : memref<192x128xf32, #tpu.memory_space<vmem>>, vector<192x4xf32>
    tpu.vector_store %arg9[%c0_6, %c12], %8 {strides = array<i32>} : memref<192x128xf32, #tpu.memory_space<vmem>>, vector<192x4xf32>,
    %10 = vector.extract_strided_slice %1 {offsets = [4, 0], sizes = [192, 4], strides = [1, 1]} : vector<223x4xf32> to vector<192x4xf32>
    %c0_7 = arith.constant 0 : index
    %c16 = arith.constant 16 : index
    %11 = vector.load %arg9[%c0_7, %c16] : memref<192x128xf32, #tpu.memory_space<vmem>>, vector<192x4xf32>
    tpu.vector_store %arg9[%c0_7, %c16], %10 {strides = array<i32>} : memref<192x128xf32, #tpu.memory_space<vmem>>, vector<192x4xf32>,
    %12 = vector.extract_strided_slice %1 {offsets = [5, 0], sizes = [192, 4], strides = [1, 1]} : vector<223x4xf32> to vector<192x4xf32>
    %c0_8 = arith.constant 0 : index
    %c20 = arith.constant 20 : index
    %13 = vector.load %arg9[%c0_8, %c20] : memref<192x128xf32, #tpu.memory_space<vmem>>, vector<192x4xf32>
    tpu.vector_store %arg9[%c0_8, %c20], %12 {strides = array<i32>} : memref<192x128xf32, #tpu.memory_space<vmem>>, vector<192x4xf32>,
    %14 = vector.extract_strided_slice %1 {offsets = [6, 0], sizes = [192, 4], strides = [1, 1]} : vector<223x4xf32> to vector<192x4xf32>
    %c0_9 = arith.constant 0 : index
    %c24 = arith.constant 24 : index
    %15 = vector.load %arg9[%c0_9, %c24] : memref<192x128xf32, #tpu.memory_space<vmem>>, vector<192x4xf32>
    tpu.vector_store %arg9[%c0_9, %c24], %14 {strides = array<i32>} : memref<192x128xf32, #tpu.memory_space<vmem>>, vector<192x4xf32>,
    %16 = vector.extract_strided_slice %1 {offsets = [7, 0], sizes = [192, 4], strides = [1, 1]} : vector<223x4xf32> to vector<192x4xf32>
    %c0_10 = arith.constant 0 : index
    %c28 = arith.constant 28 : index
    %17 = vector.load %arg9[%c0_10, %c28] : memref<192x128xf32, #tpu.memory_space<vmem>>, vector<192x4xf32>
    tpu.vector_store %arg9[%c0_10, %c28], %16 {strides = array<i32>} : memref<192x128xf32, #tpu.memory_space<vmem>>, vector<192x4xf32>,
    %18 = vector.extract_strided_slice %1 {offsets = [8, 0], sizes = [192, 4], strides = [1, 1]} : vector<223x4xf32> to vector<192x4xf32>
    %c0_11 = arith.constant 0 : index
    %c32 = arith.constant 32 : index
    %19 = vector.load %arg9[%c0_11, %c32] : memref<192x128xf32, #tpu.memory_space<vmem>>, vector<192x4xf32>
    tpu.vector_store %arg9[%c0_11, %c32], %18 {strides = array<i32>} : memref<192x128xf32, #tpu.memory_space<vmem>>, vector<192x4xf32>,
    %20 = vector.extract_strided_slice %1 {offsets = [9, 0], sizes = [192, 4], strides = [1, 1]} : vector<223x4xf32> to vector<192x4xf32>
    %c0_12 = arith.constant 0 : index
    %c36 = arith.constant 36 : index
    %21 = vector.load %arg9[%c0_12, %c36] : memref<192x128xf32, #tpu.memory_space<vmem>>, vector<192x4xf32>
    tpu.vector_store %arg9[%c0_12, %c36], %20 {strides = array<i32>} : memref<192x128xf32, #tpu.memory_space<vmem>>, vector<192x4xf32>,
    %22 = vector.extract_strided_slice %1 {offsets = [10, 0], sizes = [192, 4], strides = [1, 1]} : vector<223x4xf32> to vector<192x4xf32>
    %c0_13 = arith.constant 0 : index
    %c40 = arith.constant 40 : index
    %23 = vector.load %arg9[%c0_13, %c40] : memref<192x128xf32, #tpu.memory_space<vmem>>, vector<192x4xf32>
    tpu.vector_store %arg9[%c0_13, %c40], %22 {strides = array<i32>} : memref<192x128xf32, #tpu.memory_space<vmem>>, vector<192x4xf32>,
    %24 = vector.extract_strided_slice %1 {offsets = [11, 0], sizes = [192, 4], strides = [1, 1]} : vector<223x4xf32> to vector<192x4xf32>
    %c0_14 = arith.constant 0 : index
    %c44 = arith.constant 44 : index
    %25 = vector.load %arg9[%c0_14, %c44] : memref<192x128xf32, #tpu.memory_space<vmem>>, vector<192x4xf32>
    tpu.vector_store %arg9[%c0_14, %c44], %24 {strides = array<i32>} : memref<192x128xf32, #tpu.memory_space<vmem>>, vector<192x4xf32>,
    %26 = vector.extract_strided_slice %1 {offsets = [12, 0], sizes = [192, 4], strides = [1, 1]} : vector<223x4xf32> to vector<192x4xf32>
    %c0_15 = arith.constant 0 : index
    %c48 = arith.constant 48 : index
    %27 = vector.load %arg9[%c0_15, %c48] : memref<192x128xf32, #tpu.memory_space<vmem>>, vector<192x4xf32>
    tpu.vector_store %arg9[%c0_15, %c48], %26 {strides = array<i32>} : memref<192x128xf32, #tpu.memory_space<vmem>>, vector<192x4xf32>,
    %28 = vector.extract_strided_slice %1 {offsets = [13, 0], sizes = [192, 4], strides = [1, 1]} : vector<223x4xf32> to vector<192x4xf32>
    %c0_16 = arith.constant 0 : index
    %c52 = arith.constant 52 : index
    %29 = vector.load %arg9[%c0_16, %c52] : memref<192x128xf32, #tpu.memory_space<vmem>>, vector<192x4xf32>
    tpu.vector_store %arg9[%c0_16, %c52], %28 {strides = array<i32>} : memref<192x128xf32, #tpu.memory_space<vmem>>, vector<192x4xf32>,
    %30 = vector.extract_strided_slice %1 {offsets = [14, 0], sizes = [192, 4], strides = [1, 1]} : vector<223x4xf32> to vector<192x4xf32>
    %c0_17 = arith.constant 0 : index
    %c56 = arith.constant 56 : index
    %31 = vector.load %arg9[%c0_17, %c56] : memref<192x128xf32, #tpu.memory_space<vmem>>, vector<192x4xf32>
    tpu.vector_store %arg9[%c0_17, %c56], %30 {strides = array<i32>} : memref<192x128xf32, #tpu.memory_space<vmem>>, vector<192x4xf32>,
    %32 = vector.extract_strided_slice %1 {offsets = [15, 0], sizes = [192, 4], strides = [1, 1]} : vector<223x4xf32> to vector<192x4xf32>
    %c0_18 = arith.constant 0 : index
    %c60 = arith.constant 60 : index
    %33 = vector.load %arg9[%c0_18, %c60] : memref<192x128xf32, #tpu.memory_space<vmem>>, vector<192x4xf32>
    tpu.vector_store %arg9[%c0_18, %c60], %32 {strides = array<i32>} : memref<192x128xf32, #tpu.memory_space<vmem>>, vector<192x4xf32>,
    %34 = vector.extract_strided_slice %1 {offsets = [16, 0], sizes = [192, 4], strides = [1, 1]} : vector<223x4xf32> to vector<192x4xf32>
    %c0_19 = arith.constant 0 : index
    %c64 = arith.constant 64 : index
    %35 = vector.load %arg9[%c0_19, %c64] : memref<192x128xf32, #tpu.memory_space<vmem>>, vector<192x4xf32>
    tpu.vector_store %arg9[%c0_19, %c64], %34 {strides = array<i32>} : memref<192x128xf32, #tpu.memory_space<vmem>>, vector<192x4xf32>,
    %36 = vector.extract_strided_slice %1 {offsets = [17, 0], sizes = [192, 4], strides = [1, 1]} : vector<223x4xf32> to vector<192x4xf32>
    %c0_20 = arith.constant 0 : index
    %c68 = arith.constant 68 : index
    %37 = vector.load %arg9[%c0_20, %c68] : memref<192x128xf32, #tpu.memory_space<vmem>>, vector<192x4xf32>
    tpu.vector_store %arg9[%c0_20, %c68], %36 {strides = array<i32>} : memref<192x128xf32, #tpu.memory_space<vmem>>, vector<192x4xf32>,
    %38 = vector.extract_strided_slice %1 {offsets = [18, 0], sizes = [192, 4], strides = [1, 1]} : vector<223x4xf32> to vector<192x4xf32>
    %c0_21 = arith.constant 0 : index
    %c72 = arith.constant 72 : index
    %39 = vector.load %arg9[%c0_21, %c72] : memref<192x128xf32, #tpu.memory_space<vmem>>, vector<192x4xf32>
    tpu.vector_store %arg9[%c0_21, %c72], %38 {strides = array<i32>} : memref<192x128xf32, #tpu.memory_space<vmem>>, vector<192x4xf32>,
    %40 = vector.extract_strided_slice %1 {offsets = [19, 0], sizes = [192, 4], strides = [1, 1]} : vector<223x4xf32> to vector<192x4xf32>
    %c0_22 = arith.constant 0 : index
    %c76 = arith.constant 76 : index
    %41 = vector.load %arg9[%c0_22, %c76] : memref<192x128xf32, #tpu.memory_space<vmem>>, vector<192x4xf32>
    tpu.vector_store %arg9[%c0_22, %c76], %40 {strides = array<i32>} : memref<192x128xf32, #tpu.memory_space<vmem>>, vector<192x4xf32>,
    %42 = vector.extract_strided_slice %1 {offsets = [20, 0], sizes = [192, 4], strides = [1, 1]} : vector<223x4xf32> to vector<192x4xf32>
    %c0_23 = arith.constant 0 : index
    %c80 = arith.constant 80 : index
    %43 = vector.load %arg9[%c0_23, %c80] : memref<192x128xf32, #tpu.memory_space<vmem>>, vector<192x4xf32>
    tpu.vector_store %arg9[%c0_23, %c80], %42 {strides = array<i32>} : memref<192x128xf32, #tpu.memory_space<vmem>>, vector<192x4xf32>,
    %44 = vector.extract_strided_slice %1 {offsets = [21, 0], sizes = [192, 4], strides = [1, 1]} : vector<223x4xf32> to vector<192x4xf32>
    %c0_24 = arith.constant 0 : index
    %c84 = arith.constant 84 : index
    %45 = vector.load %arg9[%c0_24, %c84] : memref<192x128xf32, #tpu.memory_space<vmem>>, vector<192x4xf32>
    tpu.vector_store %arg9[%c0_24, %c84], %44 {strides = array<i32>} : memref<192x128xf32, #tpu.memory_space<vmem>>, vector<192x4xf32>,
    %46 = vector.extract_strided_slice %1 {offsets = [22, 0], sizes = [192, 4], strides = [1, 1]} : vector<223x4xf32> to vector<192x4xf32>
    %c0_25 = arith.constant 0 : index
    %c88 = arith.constant 88 : index
    %47 = vector.load %arg9[%c0_25, %c88] : memref<192x128xf32, #tpu.memory_space<vmem>>, vector<192x4xf32>
    tpu.vector_store %arg9[%c0_25, %c88], %46 {strides = array<i32>} : memref<192x128xf32, #tpu.memory_space<vmem>>, vector<192x4xf32>,
    %48 = vector.extract_strided_slice %1 {offsets = [23, 0], sizes = [192, 4], strides = [1, 1]} : vector<223x4xf32> to vector<192x4xf32>
    %c0_26 = arith.constant 0 : index
    %c92 = arith.constant 92 : index
    %49 = vector.load %arg9[%c0_26, %c92] : memref<192x128xf32, #tpu.memory_space<vmem>>, vector<192x4xf32>
    tpu.vector_store %arg9[%c0_26, %c92], %48 {strides = array<i32>} : memref<192x128xf32, #tpu.memory_space<vmem>>, vector<192x4xf32>,
    %50 = vector.extract_strided_slice %1 {offsets = [24, 0], sizes = [192, 4], strides = [1, 1]} : vector<223x4xf32> to vector<192x4xf32>
    %c0_27 = arith.constant 0 : index
    %c96 = arith.constant 96 : index
    %51 = vector.load %arg9[%c0_27, %c96] : memref<192x128xf32, #tpu.memory_space<vmem>>, vector<192x4xf32>
    tpu.vector_store %arg9[%c0_27, %c96], %50 {strides = array<i32>} : memref<192x128xf32, #tpu.memory_space<vmem>>, vector<192x4xf32>,
    %52 = vector.extract_strided_slice %1 {offsets = [25, 0], sizes = [192, 4], strides = [1, 1]} : vector<223x4xf32> to vector<192x4xf32>
    %c0_28 = arith.constant 0 : index
    %c100 = arith.constant 100 : index
    %53 = vector.load %arg9[%c0_28, %c100] : memref<192x128xf32, #tpu.memory_space<vmem>>, vector<192x4xf32>
    tpu.vector_store %arg9[%c0_28, %c100], %52 {strides = array<i32>} : memref<192x128xf32, #tpu.memory_space<vmem>>, vector<192x4xf32>,
    %54 = vector.extract_strided_slice %1 {offsets = [26, 0], sizes = [192, 4], strides = [1, 1]} : vector<223x4xf32> to vector<192x4xf32>
    %c0_29 = arith.constant 0 : index
    %c104 = arith.constant 104 : index
    %55 = vector.load %arg9[%c0_29, %c104] : memref<192x128xf32, #tpu.memory_space<vmem>>, vector<192x4xf32>
    tpu.vector_store %arg9[%c0_29, %c104], %54 {strides = array<i32>} : memref<192x128xf32, #tpu.memory_space<vmem>>, vector<192x4xf32>,
    %56 = vector.extract_strided_slice %1 {offsets = [27, 0], sizes = [192, 4], strides = [1, 1]} : vector<223x4xf32> to vector<192x4xf32>
    %c0_30 = arith.constant 0 : index
    %c108 = arith.constant 108 : index
    %57 = vector.load %arg9[%c0_30, %c108] : memref<192x128xf32, #tpu.memory_space<vmem>>, vector<192x4xf32>
    tpu.vector_store %arg9[%c0_30, %c108], %56 {strides = array<i32>} : memref<192x128xf32, #tpu.memory_space<vmem>>, vector<192x4xf32>,
    %58 = vector.extract_strided_slice %1 {offsets = [28, 0], sizes = [192, 4], strides = [1, 1]} : vector<223x4xf32> to vector<192x4xf32>
    %c0_31 = arith.constant 0 : index
    %c112 = arith.constant 112 : index
    %59 = vector.load %arg9[%c0_31, %c112] : memref<192x128xf32, #tpu.memory_space<vmem>>, vector<192x4xf32>
    tpu.vector_store %arg9[%c0_31, %c112], %58 {strides = array<i32>} : memref<192x128xf32, #tpu.memory_space<vmem>>, vector<192x4xf32>,
    %60 = vector.extract_strided_slice %1 {offsets = [29, 0], sizes = [192, 4], strides = [1, 1]} : vector<223x4xf32> to vector<192x4xf32>
    %c0_32 = arith.constant 0 : index
    %c116 = arith.constant 116 : index
    %61 = vector.load %arg9[%c0_32, %c116] : memref<192x128xf32, #tpu.memory_space<vmem>>, vector<192x4xf32>
    tpu.vector_store %arg9[%c0_32, %c116], %60 {strides = array<i32>} : memref<192x128xf32, #tpu.memory_space<vmem>>, vector<192x4xf32>,
    %62 = vector.extract_strided_slice %1 {offsets = [30, 0], sizes = [192, 4], strides = [1, 1]} : vector<223x4xf32> to vector<192x4xf32>
    %c0_33 = arith.constant 0 : index
    %c120 = arith.constant 120 : index
    %63 = vector.load %arg9[%c0_33, %c120] : memref<192x128xf32, #tpu.memory_space<vmem>>, vector<192x4xf32>
    tpu.vector_store %arg9[%c0_33, %c120], %62 {strides = array<i32>} : memref<192x128xf32, #tpu.memory_space<vmem>>, vector<192x4xf32>,
    %64 = vector.extract_strided_slice %1 {offsets = [31, 0], sizes = [192, 4], strides = [1, 1]} : vector<223x4xf32> to vector<192x4xf32>
    %c0_34 = arith.constant 0 : index
    %c124 = arith.constant 124 : index
    %65 = vector.load %arg9[%c0_34, %c124] : memref<192x128xf32, #tpu.memory_space<vmem>>, vector<192x4xf32>
    tpu.vector_store %arg9[%c0_34, %c124], %64 {strides = array<i32>} : memref<192x128xf32, #tpu.memory_space<vmem>>, vector<192x4xf32>,
    %c0_35 = arith.constant 0 : index
    %c0_36 = arith.constant 0 : index
    %66 = vector.load %arg9[%c0_35, %c0_36] : memref<192x128xf32, #tpu.memory_space<vmem>>, vector<192x128xf32>
    %67 = arith.truncf %66 : vector<192x128xf32> to vector<192x128xbf16>
    %c0_37 = arith.constant 0 : index
    %c0_38 = arith.constant 0 : index
    %68 = vector.load %arg2[%c0_37, %c0_38] : memref<128x32xbf16, #tpu.memory_space<vmem>>, vector<128x32xbf16>
    %cst = arith.constant dense<0.000000e+00> : vector<192x32xf32>
    %69 = tpu.matmul %67, %68, %cst {dimension_numbers = #tpu.dot_dimension_numbers<[1], [0], [0], [1], [0, 0, 1, 1], [], []>} : vector<192x128xbf16>, vector<128x32xbf16>, vector<192x32xf32> -> vector<192x32xf32>
    %c0_39 = arith.constant 0 : index
    %c0_40 = arith.constant 0 : index
    %70 = vector.load %arg3[%c0_39, %c0_40] : memref<1x32xf32, #tpu.memory_space<vmem>>, vector<1x32xf32>
    %71 = vector.broadcast %70 : vector<1x32xf32> to vector<192x32xf32>
    %72 = arith.addf %69, %71 : vector<192x32xf32>
    %cst_41 = arith.constant 0.000000e+00 : f32
    %73 = vector.broadcast %cst_41 : f32 to vector<192x32xf32>
    %74 = arith.cmpf ogt, %72, %73 : vector<192x32xf32>
    %cst_42 = arith.constant 0.000000e+00 : f32
    %75 = vector.broadcast %cst_42 : f32 to vector<192x32xf32>
    %76 = arith.minimumf %72, %75 : vector<192x32xf32>
    %77 = math.exp %76 : vector<192x32xf32>
    %cst_43 = arith.constant 1.000000e+00 : f32
    %78 = vector.broadcast %cst_43 : f32 to vector<192x32xf32>
    %79 = arith.subf %77, %78 : vector<192x32xf32>
    %80 = arith.select %74, %72, %79 : vector<192x32xi1>, vector<192x32xf32>
    %81 = arith.truncf %80 : vector<192x32xf32> to vector<192x32xbf16>
    %c0_44 = arith.constant 0 : index
    %c0_45 = arith.constant 0 : index
    %82 = vector.load %arg4[%c0_44, %c0_45] : memref<32x40xbf16, #tpu.memory_space<vmem>>, vector<32x40xbf16>
    %cst_46 = arith.constant dense<0.000000e+00> : vector<192x40xf32>
    %83 = tpu.matmul %81, %82, %cst_46 {dimension_numbers = #tpu.dot_dimension_numbers<[1], [0], [0], [1], [0, 0, 1, 1], [], []>} : vector<192x32xbf16>, vector<32x40xbf16>, vector<192x40xf32> -> vector<192x40xf32>
    %c0_47 = arith.constant 0 : index
    %c0_48 = arith.constant 0 : index
    %84 = vector.load %arg5[%c0_47, %c0_48] : memref<1x40xf32, #tpu.memory_space<vmem>>, vector<1x40xf32>
    %85 = vector.broadcast %84 : vector<1x40xf32> to vector<192x40xf32>
    %86 = arith.addf %83, %85 : vector<192x40xf32>
    %87 = vector.extract_strided_slice %86 {offsets = [0, 0], sizes = [64, 40], strides = [1, 1]} : vector<192x40xf32> to vector<64x40xf32>
    %cst_49 = arith.constant dense<0.000000e+00> : vector<40xf32>
    %88 = vector.multi_reduction <add>, %87, %cst_49 [0] : vector<64x40xf32> to vector<40xf32>
    %89 = vector.shape_cast %88 : vector<40xf32> to vector<1x40xf32>
    %90 = vector.extract_strided_slice %86 {offsets = [64, 0], sizes = [64, 40], strides = [1, 1]} : vector<192x40xf32> to vector<64x40xf32>
    %cst_50 = arith.constant dense<0.000000e+00> : vector<40xf32>
    %91 = vector.multi_reduction <add>, %90, %cst_50 [0] : vector<64x40xf32> to vector<40xf32>
    %92 = vector.shape_cast %91 : vector<40xf32> to vector<1x40xf32>
    %93 = vector.extract_strided_slice %86 {offsets = [128, 0], sizes = [64, 40], strides = [1, 1]} : vector<192x40xf32> to vector<64x40xf32>
    %cst_51 = arith.constant dense<0.000000e+00> : vector<40xf32>
    %94 = vector.multi_reduction <add>, %93, %cst_51 [0] : vector<64x40xf32> to vector<40xf32>
    %95 = vector.shape_cast %94 : vector<40xf32> to vector<1x40xf32>
    %96 = arith.addf %89, %92 : vector<1x40xf32>
    %cst_52 = arith.constant 7.812500e-03 : f32
    %97 = vector.broadcast %cst_52 : f32 to vector<1x40xf32>
    %98 = arith.mulf %96, %97 : vector<1x40xf32>
    %99 = arith.addf %92, %95 : vector<1x40xf32>
    %cst_53 = arith.constant 7.812500e-03 : f32
    %100 = vector.broadcast %cst_53 : f32 to vector<1x40xf32>
    %101 = arith.mulf %99, %100 : vector<1x40xf32>
    %102 = tpu.concatenate %98, %101 in 1 : vector<1x40xf32>, vector<1x40xf32> -> vector<1x80xf32>
    %103 = arith.truncf %102 : vector<1x80xf32> to vector<1x80xbf16>
    %c0_54 = arith.constant 0 : index
    %c0_55 = arith.constant 0 : index
    %104 = vector.load %arg6[%c0_54, %c0_55] : memref<80x10xbf16, #tpu.memory_space<vmem>>, vector<80x10xbf16>
    %cst_56 = arith.constant dense<0.000000e+00> : vector<1x10xf32>
    %105 = tpu.matmul %103, %104, %cst_56 {dimension_numbers = #tpu.dot_dimension_numbers<[1], [0], [0], [1], [0, 0, 1, 1], [], []>} : vector<1x80xbf16>, vector<80x10xbf16>, vector<1x10xf32> -> vector<1x10xf32>
    %c0_57 = arith.constant 0 : index
    %c0_58 = arith.constant 0 : index
    %106 = vector.load %arg7[%c0_57, %c0_58] : memref<1x10xf32, #tpu.memory_space<vmem>>, vector<1x10xf32>
    %107 = arith.addf %105, %106 : vector<1x10xf32>
    %108 = vector.shape_cast %107 : vector<1x10xf32> to vector<1x1x10xf32>
    %c0_59 = arith.constant 0 : index
    %c0_60 = arith.constant 0 : index
    %c0_61 = arith.constant 0 : index
    %109 = vector.load %arg8[%c0_59, %c0_60, %c0_61] : memref<1x1x10xf32, #tpu.memory_space<vmem>>, vector<1x1x10xf32>
    tpu.vector_store %arg8[%c0_59, %c0_60, %c0_61], %108 {strides = array<i32>} : memref<1x1x10xf32, #tpu.memory_space<vmem>>, vector<1x1x10xf32>,
    return
  }
  func.func @transform_0(%arg0: i32) -> (i32, i32, i32) {
    %c0_i32 = arith.constant 0 : i32
    %c0_i32_0 = arith.constant 0 : i32
    %c0_i32_1 = arith.constant 0 : i32
    return %arg0, %c0_i32, %c0_i32_0 : i32, i32, i32
  }
  func.func @transform_1(%arg0: i32) -> (i32, i32) {
    %c0_i32 = arith.constant 0 : i32
    %c0_i32_0 = arith.constant 0 : i32
    %c0_i32_1 = arith.constant 0 : i32
    return %c0_i32, %c0_i32_0 : i32, i32
  }
  func.func @transform_2(%arg0: i32) -> (i32, i32) {
    %c0_i32 = arith.constant 0 : i32
    %c0_i32_0 = arith.constant 0 : i32
    %c0_i32_1 = arith.constant 0 : i32
    return %c0_i32, %c0_i32_0 : i32, i32
  }
  func.func @transform_3(%arg0: i32) -> (i32, i32) {
    %c0_i32 = arith.constant 0 : i32
    %c0_i32_0 = arith.constant 0 : i32
    %c0_i32_1 = arith.constant 0 : i32
    return %c0_i32, %c0_i32_0 : i32, i32
  }
  func.func @transform_4(%arg0: i32) -> (i32, i32) {
    %c0_i32 = arith.constant 0 : i32
    %c0_i32_0 = arith.constant 0 : i32
    %c0_i32_1 = arith.constant 0 : i32
    return %c0_i32, %c0_i32_0 : i32, i32
  }
  func.func @transform_5(%arg0: i32) -> (i32, i32) {
    %c0_i32 = arith.constant 0 : i32
    %c0_i32_0 = arith.constant 0 : i32
    %c0_i32_1 = arith.constant 0 : i32
    return %c0_i32, %c0_i32_0 : i32, i32
  }
  func.func @transform_6(%arg0: i32) -> (i32, i32) {
    %c0_i32 = arith.constant 0 : i32
    %c0_i32_0 = arith.constant 0 : i32
    %c0_i32_1 = arith.constant 0 : i32
    return %c0_i32, %c0_i32_0 : i32, i32
  }
  func.func @transform_7(%arg0: i32) -> (i32, i32, i32) {
    %c0_i32 = arith.constant 0 : i32
    %c0_i32_0 = arith.constant 0 : i32
    %c0_i32_1 = arith.constant 0 : i32
    return %arg0, %c0_i32, %c0_i32_0 : i32, i32, i32
  }
}

</mosaic_0001>

<llo_original>
// kernel: _lambda_.1
$region0: #{_lambda_.1}
  #allocation0 [shape = 'u32[]', space=smem, size = 0x4, offset = 0x4, fixed_abs, tag = 'smem constant byte address 0x4 - core index']
  #allocation1 [shape = 'u32[144,128]{1,0:T(1,128)}', space=vmem, size = 0x12000, scoped, tag = 'internal scratch']
  #allocation2 [shape = 'f32[192,128]{1,0:T(8,128)}', space=vmem, size = 0x18000, scoped, tag = 'scratch operand']
  %s0 = inlined_call_operand.vmem [shape: f32[2,223,4], index: 0, kind: input, shape index: {}]
  %s1 = inlined_call_operand.vmem [shape: bf16[128,32], index: 1, kind: input, shape index: {}]
  %s2 = inlined_call_operand.vmem [shape: f32[1,32], index: 2, kind: input, shape index: {}]
  %s3 = inlined_call_operand.vmem [shape: bf16[32,40], index: 3, kind: input, shape index: {}]
  %s4 = inlined_call_operand.vmem [shape: f32[1,40], index: 4, kind: input, shape index: {}]
  %s5 = inlined_call_operand.vmem [shape: bf16[80,10], index: 5, kind: input, shape index: {}]
  %s6 = inlined_call_operand.vmem [shape: f32[1,10], index: 6, kind: input, shape index: {}]
  %s7 = inlined_call_operand.hbm [shape: f32[2,1,10], index: 7, kind: output, shape index: {}]
  %s8 = sld [smem:[#allocation0]]
  $region61: #{_lambda_.1} parent=0
    _
  %s10 = ssub.s32 1, %s8
  %s11 = scalar_select 0, %s10, %s8
  $region1: #{_lambda_.1} parent=0
    #allocation3 [shape = 'u8[1024]{0}', space=vmem, size = 0x400, scoped, tag = 'output window, operand 0']
    #allocation4 [shape = 's32[2]{0}', space=sflag, size = 0x8, scoped, tag = 'scoped memory for _lambda_.1']
    %12 = vsyncpa [#allocation4], 0
    %s13 = scalar_lea.sflag [#allocation4], 1
    %14 = vsyncpa %s13, 0
    loop: start=0, step=1, limit=4
    $region2: #{_lambda_.1} parent=1 // loop_pre_header
      _
    $region3: #{_lambda_.1} parent=1 // loop_header
      %s16 = sphi 0, %s20
      %p17 = scmp.ge.s32.totalorder %s16, 4
      %s26 = sphi 0, %s28
      %s29 = sphi 0, %s26
      %s30 = sphi 0, %s29
      %s46 = sphi 0, %s30
      %s50 = sphi 0, %s50
      %s52 = sphi 0, %s50
      %s53 = sphi 0, %s52
      %s67 = sphi 0, %s53
      %s71 = sphi 0, %s71
      %s73 = sphi 0, %s71
      %s74 = sphi 0, %s73
      %s88 = sphi 0, %s74
      %s92 = sphi 0, %s92
      %s94 = sphi 0, %s92
      %s95 = sphi 0, %s94
      %s109 = sphi 0, %s95
      %s113 = sphi 0, %s113
      %s115 = sphi 0, %s113
      %s116 = sphi 0, %s115
      %s130 = sphi 0, %s116
      %s134 = sphi 0, %s134
      %s136 = sphi 0, %s134
      %s137 = sphi 0, %s136
      %s151 = sphi 0, %s137
      %s155 = sphi 0, %s155
      %s157 = sphi 0, %s155
      %s158 = sphi 0, %s157
      %s172 = sphi 0, %s158
      %s178 = sphi 0, %s180
      %s181 = sphi 0, %s178
      %s182 = sphi 0, %s181
      %s198 = sphi 0, %s182
    $region4: #{_lambda_.1} parent=1 // loop_header_branch
      %19 = sbr.rel (%p17) target = $region8
    $region5: #{_lambda_.1} parent=1 // loop_body
      %s21 = ssub.s32 %s16, 1
      %s22 = ssub.s32 %s16, 2
      %s23 = sadd.s32 %s16, 1
      %s24 = ssub.s32 %s16, %s23
      %p25 = scmp.eq.s32.totalorder %s24, 0
      %s27 = sadd.s32 %s26, 1
      %s28 = scalar_select %p25, %s26, %s27
      %p31 = pneg %p25
      %p32 = scmp.eq.s32.totalorder %s16, 1
      %p33 = por %p31, %p32
      %p34 = scmp.ne.s32.totalorder %s26, %s29
      %p35 = scmp.eq.s32.totalorder %s16, 0
      %p36 = por %p34, %p35
      %p37 = scmp.ne.s32.totalorder %s26, %s29
      %p38 = scmp.eq.s32.totalorder %s21, 1
      %p39 = por %p37, %p38
      %p40 = scmp.ne.s32.totalorder %s29, %s30
      %p41 = scmp.eq.s32.totalorder %s21, 0
      %p42 = por %p40, %p41
      %p43 = scmp.ne.s32.totalorder %s29, %s30
      %p44 = scmp.eq.s32.totalorder %s22, 1
      %p45 = por %p43, %p44
      %p47 = scmp.ne.s32.totalorder %s30, %s46
      %p48 = scmp.eq.s32.totalorder %s22, 0
      %p49 = por %p47, %p48
      %s51 = sadd.s32 %s50, 1
      %p54 = scmp.eq.s32.totalorder %s16, 1
      %p55 = scmp.ne.s32.totalorder %s50, %s52
      %p56 = scmp.eq.s32.totalorder %s16, 0
      %p57 = por %p55, %p56
      %p58 = scmp.ne.s32.totalorder %s50, %s52
      %p59 = scmp.eq.s32.totalorder %s21, 1
      %p60 = por %p58, %p59
      %p61 = scmp.ne.s32.totalorder %s52, %s53
      %p62 = scmp.eq.s32.totalorder %s21, 0
      %p63 = por %p61, %p62
      %p64 = scmp.ne.s32.totalorder %s52, %s53
      %p65 = scmp.eq.s32.totalorder %s22, 1
      %p66 = por %p64, %p65
      %p68 = scmp.ne.s32.totalorder %s53, %s67
      %p69 = scmp.eq.s32.totalorder %s22, 0
      %p70 = por %p68, %p69
      %s72 = sadd.s32 %s71, 1
      %p75 = scmp.eq.s32.totalorder %s16, 1
      %p76 = scmp.ne.s32.totalorder %s71, %s73
      %p77 = scmp.eq.s32.totalorder %s16, 0
      %p78 = por %p76, %p77
      %p79 = scmp.ne.s32.totalorder %s71, %s73
      %p80 = scmp.eq.s32.totalorder %s21, 1
      %p81 = por %p79, %p80
      %p82 = scmp.ne.s32.totalorder %s73, %s74
      %p83 = scmp.eq.s32.totalorder %s21, 0
      %p84 = por %p82, %p83
      %p85 = scmp.ne.s32.totalorder %s73, %s74
      %p86 = scmp.eq.s32.totalorder %s22, 1
      %p87 = por %p85, %p86
      %p89 = scmp.ne.s32.totalorder %s74, %s88
      %p90 = scmp.eq.s32.totalorder %s22, 0
      %p91 = por %p89, %p90
      %s93 = sadd.s32 %s92, 1
      %p96 = scmp.eq.s32.totalorder %s16, 1
      %p97 = scmp.ne.s32.totalorder %s92, %s94
      %p98 = scmp.eq.s32.totalorder %s16, 0
      %p99 = por %p97, %p98
      %p100 = scmp.ne.s32.totalorder %s92, %s94
      %p101 = scmp.eq.s32.totalorder %s21, 1
      %p102 = por %p100, %p101
      %p103 = scmp.ne.s32.totalorder %s94, %s95
      %p104 = scmp.eq.s32.totalorder %s21, 0
      %p105 = por %p103, %p104
      %p106 = scmp.ne.s32.totalorder %s94, %s95
      %p107 = scmp.eq.s32.totalorder %s22, 1
      %p108 = por %p106, %p107
      %p110 = scmp.ne.s32.totalorder %s95, %s109
      %p111 = scmp.eq.s32.totalorder %s22, 0
      %p112 = por %p110, %p111
      %s114 = sadd.s32 %s113, 1
      %p117 = scmp.eq.s32.totalorder %s16, 1
      %p118 = scmp.ne.s32.totalorder %s113, %s115
      %p119 = scmp.eq.s32.totalorder %s16, 0
      %p120 = por %p118, %p119
      %p121 = scmp.ne.s32.totalorder %s113, %s115
      %p122 = scmp.eq.s32.totalorder %s21, 1
      %p123 = por %p121, %p122
      %p124 = scmp.ne.s32.totalorder %s115, %s116
      %p125 = scmp.eq.s32.totalorder %s21, 0
      %p126 = por %p124, %p125
      %p127 = scmp.ne.s32.totalorder %s115, %s116
      %p128 = scmp.eq.s32.totalorder %s22, 1
      %p129 = por %p127, %p128
      %p131 = scmp.ne.s32.totalorder %s116, %s130
      %p132 = scmp.eq.s32.totalorder %s22, 0
      %p133 = por %p131, %p132
      %s135 = sadd.s32 %s134, 1
      %p138 = scmp.eq.s32.totalorder %s16, 1
      %p139 = scmp.ne.s32.totalorder %s134, %s136
      %p140 = scmp.eq.s32.totalorder %s16, 0
      %p141 = por %p139, %p140
      %p142 = scmp.ne.s32.totalorder %s134, %s136
      %p143 = scmp.eq.s32.totalorder %s21, 1
      %p144 = por %p142, %p143
      %p145 = scmp.ne.s32.totalorder %s136, %s137
      %p146 = scmp.eq.s32.totalorder %s21, 0
      %p147 = por %p145, %p146
      %p148 = scmp.ne.s32.totalorder %s136, %s137
      %p149 = scmp.eq.s32.totalorder %s22, 1
      %p150 = por %p148, %p149
      %p152 = scmp.ne.s32.totalorder %s137, %s151
      %p153 = scmp.eq.s32.totalorder %s22, 0
      %p154 = por %p152, %p153
      %s156 = sadd.s32 %s155, 1
      %p159 = scmp.eq.s32.totalorder %s16, 1
      %p160 = scmp.ne.s32.totalorder %s155, %s157
      %p161 = scmp.eq.s32.totalorder %s16, 0
      %p162 = por %p160, %p161
      %p163 = scmp.ne.s32.totalorder %s155, %s157
      %p164 = scmp.eq.s32.totalorder %s21, 1
      %p165 = por %p163, %p164
      %p166 = scmp.ne.s32.totalorder %s157, %s158
      %p167 = scmp.eq.s32.totalorder %s21, 0
      %p168 = por %p166, %p167
      %p169 = scmp.ne.s32.totalorder %s157, %s158
      %p170 = scmp.eq.s32.totalorder %s22, 1
      %p171 = por %p169, %p170
      %p173 = scmp.ne.s32.totalorder %s158, %s172
      %p174 = scmp.eq.s32.totalorder %s22, 0
      %p175 = por %p173, %p174
      %s176 = ssub.s32 %s16, %s23
      %p177 = scmp.eq.s32.totalorder %s176, 0
      %s179 = sadd.s32 %s178, 1
      %s180 = scalar_select %p177, %s178, %s179
      %p183 = pneg %p177
      %p184 = scmp.eq.s32.totalorder %s16, 1
      %p185 = por %p183, %p184
      %p186 = scmp.ne.s32.totalorder %s178, %s181
      %p187 = scmp.eq.s32.totalorder %s16, 0
      %p188 = por %p186, %p187
      %p189 = scmp.ne.s32.totalorder %s178, %s181
      %p190 = scmp.eq.s32.totalorder %s21, 1
      %p191 = por %p189, %p190
      %p192 = scmp.ne.s32.totalorder %s181, %s182
      %p193 = scmp.eq.s32.totalorder %s21, 0
      %p194 = por %p192, %p193
      %p195 = scmp.ne.s32.totalorder %s181, %s182
      %p196 = scmp.eq.s32.totalorder %s22, 1
      %p197 = por %p195, %p196
      %p199 = scmp.ne.s32.totalorder %s182, %s198
      %p200 = scmp.eq.s32.totalorder %s22, 0
      %p201 = por %p199, %p200
      %p202 = scmp.le.s32.totalorder 1, %s16
      %p203 = scmp.lt.s32.totalorder %s16, 3
      %p204 = pnand %p202, %p203
      %p205 = pneg %p204
      // Predicated region
      $region9: #{_lambda_.1} parent=5 // pred_check
        _
      $region10: #{_lambda_.1} parent=5 // pred_check_branch
        %207 = sbr.rel (%p204) target = $region12
      $region11: #{_lambda_.1} parent=5 // pred_region
        %s208 = ssub.s32 %s16, 1
        // Predicated region
        $region13: #{_lambda_.1} parent=11 // pred_check
          %p209 = pneg %p63
        $region14: #{_lambda_.1} parent=11 // pred_check_branch
          %211 = sbr.rel (%p209) target = $region16
        $region15: #{_lambda_.1} parent=11 // pred_region
          _
        $region16: #{_lambda_.1} parent=11 // pred_fallthru
          _
        // Predicated region
        $region17: #{_lambda_.1} parent=11 // pred_check
          %p212 = pneg %p84
        $region18: #{_lambda_.1} parent=11 // pred_check_branch
          %214 = sbr.rel (%p212) target = $region20
        $region19: #{_lambda_.1} parent=11 // pred_region
          _
        $region20: #{_lambda_.1} parent=11 // pred_fallthru
          _
        // Predicated region
        $region21: #{_lambda_.1} parent=11 // pred_check
          %p215 = pneg %p105
        $region22: #{_lambda_.1} parent=11 // pred_check_branch
          %217 = sbr.rel (%p215) target = $region24
        $region23: #{_lambda_.1} parent=11 // pred_region
          _
        $region24: #{_lambda_.1} parent=11 // pred_fallthru
          _
        // Predicated region
        $region25: #{_lambda_.1} parent=11 // pred_check
          %p218 = pneg %p126
        $region26: #{_lambda_.1} parent=11 // pred_check_branch
          %220 = sbr.rel (%p218) target = $region28
        $region27: #{_lambda_.1} parent=11 // pred_region
          _
        $region28: #{_lambda_.1} parent=11 // pred_fallthru
          _
        // Predicated region
        $region29: #{_lambda_.1} parent=11 // pred_check
          %p221 = pneg %p147
        $region30: #{_lambda_.1} parent=11 // pred_check_branch
          %223 = sbr.rel (%p221) target = $region32
        $region31: #{_lambda_.1} parent=11 // pred_region
          _
        $region32: #{_lambda_.1} parent=11 // pred_fallthru
          _
        // Predicated region
        $region33: #{_lambda_.1} parent=11 // pred_check
          %p224 = pneg %p168
        $region34: #{_lambda_.1} parent=11 // pred_check_branch
          %226 = sbr.rel (%p224) target = $region36
        $region35: #{_lambda_.1} parent=11 // pred_region
          _
        $region36: #{_lambda_.1} parent=11 // pred_fallthru
          _
      $region12: #{_lambda_.1} parent=5 // pred_fallthru
        _
      %p227 = scmp.lt.s32.totalorder %s16, 2
      // Predicated region
      $region37: #{_lambda_.1} parent=5 // pred_check
        %p228 = pneg %p227
      $region38: #{_lambda_.1} parent=5 // pred_check_branch
        %230 = sbr.rel (%p228) target = $region40
      $region39: #{_lambda_.1} parent=5 // pred_region
        // Predicated region
        $region41: #{_lambda_.1} parent=39 // pred_check
          %p231 = pneg %p36
        $region42: #{_lambda_.1} parent=39 // pred_check_branch
          %233 = sbr.rel (%p231) target = $region44
        $region43: #{_lambda_.1} parent=39 // pred_region
          %p234 = scmp.lt.s32.totalorder %s16, 1
          %s235 = scalar_select %p234, %s16, 1
          %s236 = smul.addr %s235, 28
          %s237 = smul.addr %s236, 8
          %s238 = scalar_lea.vmem %s0, %s237
        $region44: #{_lambda_.1} parent=39 // pred_fallthru
          _
      $region40: #{_lambda_.1} parent=5 // pred_fallthru
        _
      %p239 = scmp.le.s32.totalorder 1, %s16
      %p240 = scmp.lt.s32.totalorder %s16, 3
      %p241 = pnand %p239, %p240
      %p242 = pneg %p241
      // Predicated region
      $region45: #{_lambda_.1} parent=5 // pred_check
        _
      $region46: #{_lambda_.1} parent=5 // pred_check_branch
        %244 = sbr.rel (%p241) target = $region48
      $region47: #{_lambda_.1} parent=5 // pred_region
        %s245 = ssub.s32 %s16, 1
        %p246 = scmp.lt.s32.totalorder %s21, 1
        %s247 = scalar_select %p246, %s21, 1
        %s248 = smul.addr %s247, 28
        %s249 = smul.addr %s248, 8
        %s250 = scalar_lea.vmem %s0, %s249
        %p251 = pneg %p42
        %p252 = pneg %p39
        %p253 = pneg %p63
        %p254 = pneg %p60
        %p255 = pneg %p84
        %p256 = pneg %p81
        %p257 = pneg %p105
        %p258 = pneg %p102
        %p259 = pneg %p126
        %p260 = pneg %p123
        %p261 = pneg %p147
        %p262 = pneg %p144
        %p263 = pneg %p168
        %p264 = pneg %p165
        %p265 = pneg %p194
        %p266 = pneg %p191
        %s267 = sand.u32 %s181, 1
        %s268 = scalar_lea.sflag [#allocation4], %s267
        %s269 = sand.u32 %s181, 1
        %s270 = scalar_lea.vmem [#allocation3], %s269
        %p271 = scmp.lt.s32.totalorder %s21, 1
        %s272 = scalar_select %p271, %s21, 1
        %s273 = smul.addr %s272, 28
        %s274 = smul.addr %s273, 8
        %s275 = scalar_lea.vmem %s0, %s274
        %v277 = vld [vmem:[%s275] sm:$0xff]
        %v278 = vld [vmem:[%s275 + $0x8] sm:$0xff]
        %v279 = vld [vmem:[%s275 + $0x10] sm:$0xff]
        %v280 = vld [vmem:[%s275 + $0x18] sm:$0xff]
        %v281 = vld [vmem:[%s275 + $0x20] sm:$0xff]
        %v282 = vld [vmem:[%s275 + $0x28] sm:$0xff]
        %v283 = vld [vmem:[%s275 + $0x30] sm:$0xff]
        %v284 = vld [vmem:[%s275 + $0x38] sm:$0xff]
        %v285 = vld [vmem:[%s275 + $0x40] sm:$0xff]
        %v286 = vld [vmem:[%s275 + $0x48] sm:$0xff]
        %v287 = vld [vmem:[%s275 + $0x50] sm:$0xff]
        %v288 = vld [vmem:[%s275 + $0x58] sm:$0xff]
        %v289 = vld [vmem:[%s275 + $0x60] sm:$0xff]
        %v290 = vld [vmem:[%s275 + $0x68] sm:$0xff]
        %v291 = vld [vmem:[%s275 + $0x70] sm:$0xff]
        %v292 = vld [vmem:[%s275 + $0x78] sm:$0xff]
        %v293 = vld [vmem:[%s275 + $0x80] sm:$0xff]
        %v294 = vld [vmem:[%s275 + $0x88] sm:$0xff]
        %v295 = vld [vmem:[%s275 + $0x90] sm:$0xff]
        %v296 = vld [vmem:[%s275 + $0x98] sm:$0xff]
        %v297 = vld [vmem:[%s275 + $0xa0] sm:$0xff]
        %v298 = vld [vmem:[%s275 + $0xa8] sm:$0xff]
        %v299 = vld [vmem:[%s275 + $0xb0] sm:$0xff]
        %v300 = vld [vmem:[%s275 + $0xb8] sm:$0xff]
        %v301 = vld [vmem:[%s275 + $0xc0] sm:$0xff]
        %v302 = vld [vmem:[%s275 + $0xc8] sm:$0xff]
        %v303 = vld [vmem:[%s275 + $0xd0] sm:$0xff]
        %v304 = vld [vmem:[%s275 + $0xd8] sm:$0x7f]
        %vm305 = vcmask 31744
        %306 = vst.msk [vmem:[#allocation2] sm:$0xff] %vm305, %v277
        %307 = vst.msk [vmem:[#allocation2 + $0x8] sm:$0xff] %vm305, %v278
        %308 = vst.msk [vmem:[#allocation2 + $0x10] sm:$0xff] %vm305, %v279
        %309 = vst.msk [vmem:[#allocation2 + $0x18] sm:$0xff] %vm305, %v280
        %310 = vst.msk [vmem:[#allocation2 + $0x20] sm:$0xff] %vm305, %v281
        %311 = vst.msk [vmem:[#allocation2 + $0x28] sm:$0xff] %vm305, %v282
        %312 = vst.msk [vmem:[#allocation2 + $0x30] sm:$0xff] %vm305, %v283
        %313 = vst.msk [vmem:[#allocation2 + $0x38] sm:$0xff] %vm305, %v284
        %314 = vst.msk [vmem:[#allocation2 + $0x40] sm:$0xff] %vm305, %v285
        %315 = vst.msk [vmem:[#allocation2 + $0x48] sm:$0xff] %vm305, %v286
        %316 = vst.msk [vmem:[#allocation2 + $0x50] sm:$0xff] %vm305, %v287
        %317 = vst.msk [vmem:[#allocation2 + $0x58] sm:$0xff] %vm305, %v288
        %318 = vst.msk [vmem:[#allocation2 + $0x60] sm:$0xff] %vm305, %v289
        %319 = vst.msk [vmem:[#allocation2 + $0x68] sm:$0xff] %vm305, %v290
        %320 = vst.msk [vmem:[#allocation2 + $0x70] sm:$0xff] %vm305, %v291
        %321 = vst.msk [vmem:[#allocation2 + $0x78] sm:$0xff] %vm305, %v292
        %322 = vst.msk [vmem:[#allocation2 + $0x80] sm:$0xff] %vm305, %v293
        %323 = vst.msk [vmem:[#allocation2 + $0x88] sm:$0xff] %vm305, %v294
        %324 = vst.msk [vmem:[#allocation2 + $0x90] sm:$0xff] %vm305, %v295
        %325 = vst.msk [vmem:[#allocation2 + $0x98] sm:$0xff] %vm305, %v296
        %326 = vst.msk [vmem:[#allocation2 + $0xa0] sm:$0xff] %vm305, %v297
        %327 = vst.msk [vmem:[#allocation2 + $0xa8] sm:$0xff] %vm305, %v298
        %328 = vst.msk [vmem:[#allocation2 + $0xb0] sm:$0xff] %vm305, %v299
        %329 = vst.msk [vmem:[#allocation2 + $0xb8] sm:$0xff] %vm305, %v300
        %355 = vrot.lane.b32.xlu0 %v277, 4
        %v356 = vpop.permute.xlu0 %355
        %357 = vrot.lane.b32.xlu0 %v278, 4
        %v358 = vpop.permute.xlu0 %357
        %359 = vrot.lane.b32.xlu0 %v279, 4
        %v360 = vpop.permute.xlu0 %359
        %361 = vrot.lane.b32.xlu0 %v280, 4
        %v362 = vpop.permute.xlu0 %361
        %363 = vrot.lane.b32.xlu0 %v281, 4
        %v364 = vpop.permute.xlu0 %363
        %365 = vrot.lane.b32.xlu0 %v282, 4
        %v366 = vpop.permute.xlu0 %365
        %367 = vrot.lane.b32.xlu0 %v283, 4
        %v368 = vpop.permute.xlu0 %367
        %369 = vrot.lane.b32.xlu0 %v284, 4
        %v370 = vpop.permute.xlu0 %369
        %371 = vrot.lane.b32.xlu0 %v285, 4
        %v372 = vpop.permute.xlu0 %371
        %373 = vrot.lane.b32.xlu0 %v286, 4
        %v374 = vpop.permute.xlu0 %373
        %375 = vrot.lane.b32.xlu0 %v287, 4
        %v376 = vpop.permute.xlu0 %375
        %377 = vrot.lane.b32.xlu0 %v288, 4
        %v378 = vpop.permute.xlu0 %377
        %379 = vrot.lane.b32.xlu0 %v289, 4
        %v380 = vpop.permute.xlu0 %379
        %381 = vrot.lane.b32.xlu0 %v290, 4
        %v382 = vpop.permute.xlu0 %381
        %383 = vrot.lane.b32.xlu0 %v291, 4
        %v384 = vpop.permute.xlu0 %383
        %385 = vrot.lane.b32.xlu0 %v292, 4
        %v386 = vpop.permute.xlu0 %385
        %387 = vrot.lane.b32.xlu0 %v293, 4
        %v388 = vpop.permute.xlu0 %387
        %389 = vrot.lane.b32.xlu0 %v294, 4
        %v390 = vpop.permute.xlu0 %389
        %391 = vrot.lane.b32.xlu0 %v295, 4
        %v392 = vpop.permute.xlu0 %391
        %393 = vrot.lane.b32.xlu0 %v296, 4
        %v394 = vpop.permute.xlu0 %393
        %395 = vrot.lane.b32.xlu0 %v297, 4
        %v396 = vpop.permute.xlu0 %395
        %397 = vrot.lane.b32.xlu0 %v298, 4
        %v398 = vpop.permute.xlu0 %397
        %399 = vrot.lane.b32.xlu0 %v299, 4
        %v400 = vpop.permute.xlu0 %399
        %401 = vrot.lane.b32.xlu0 %v300, 4
        %v402 = vpop.permute.xlu0 %401
        %403 = vrot.lane.b32.xlu0 %v301, 4
        %v404 = vpop.permute.xlu0 %403
        %vm430 = vcmask 64545
        %431 = vst.msk [vmem:[#allocation2 - $0x1] sm:$0xfe] %vm430, %v356
        %vm432 = vcmask 64544
        %433 = vst.msk [vmem:[#allocation2 + $0x7] sm:$0xff] %vm432, %v358
        %434 = vst.msk [vmem:[#allocation2 + $0xf] sm:$0xff] %vm432, %v360
        %435 = vst.msk [vmem:[#allocation2 + $0x17] sm:$0xff] %vm432, %v362
        %436 = vst.msk [vmem:[#allocation2 + $0x1f] sm:$0xff] %vm432, %v364
        %437 = vst.msk [vmem:[#allocation2 + $0x27] sm:$0xff] %vm432, %v366
        %438 = vst.msk [vmem:[#allocation2 + $0x2f] sm:$0xff] %vm432, %v368
        %439 = vst.msk [vmem:[#allocation2 + $0x37] sm:$0xff] %vm432, %v370
        %440 = vst.msk [vmem:[#allocation2 + $0x3f] sm:$0xff] %vm432, %v372
        %441 = vst.msk [vmem:[#allocation2 + $0x47] sm:$0xff] %vm432, %v374
        %442 = vst.msk [vmem:[#allocation2 + $0x4f] sm:$0xff] %vm432, %v376
        %443 = vst.msk [vmem:[#allocation2 + $0x57] sm:$0xff] %vm432, %v378
        %444 = vst.msk [vmem:[#allocation2 + $0x5f] sm:$0xff] %vm432, %v380
        %445 = vst.msk [vmem:[#allocation2 + $0x67] sm:$0xff] %vm432, %v382
        %446 = vst.msk [vmem:[#allocation2 + $0x6f] sm:$0xff] %vm432, %v384
        %447 = vst.msk [vmem:[#allocation2 + $0x77] sm:$0xff] %vm432, %v386
        %448 = vst.msk [vmem:[#allocation2 + $0x7f] sm:$0xff] %vm432, %v388
        %449 = vst.msk [vmem:[#allocation2 + $0x87] sm:$0xff] %vm432, %v390
        %450 = vst.msk [vmem:[#allocation2 + $0x8f] sm:$0xff] %vm432, %v392
        %451 = vst.msk [vmem:[#allocation2 + $0x97] sm:$0xff] %vm432, %v394
        %452 = vst.msk [vmem:[#allocation2 + $0x9f] sm:$0xff] %vm432, %v396
        %453 = vst.msk [vmem:[#allocation2 + $0xa7] sm:$0xff] %vm432, %v398
        %454 = vst.msk [vmem:[#allocation2 + $0xaf] sm:$0xff] %vm432, %v400
        %455 = vst.msk [vmem:[#allocation2 + $0xb7] sm:$0xff] %vm432, %v402
        %vm456 = vcmask 57376
        %457 = vst.msk [vmem:[#allocation2 + $0xbf] sm:$0x1] %vm456, %v404
        %458 = vrot.lane.b32.xlu0 %v277, 8
        %v459 = vpop.permute.xlu0 %458
        %460 = vrot.lane.b32.xlu0 %v278, 8
        %v461 = vpop.permute.xlu0 %460
        %462 = vrot.lane.b32.xlu0 %v279, 8
        %v463 = vpop.permute.xlu0 %462
        %464 = vrot.lane.b32.xlu0 %v280, 8
        %v465 = vpop.permute.xlu0 %464
        %466 = vrot.lane.b32.xlu0 %v281, 8
        %v467 = vpop.permute.xlu0 %466
        %468 = vrot.lane.b32.xlu0 %v282, 8
        %v469 = vpop.permute.xlu0 %468
        %470 = vrot.lane.b32.xlu0 %v283, 8
        %v471 = vpop.permute.xlu0 %470
        %472 = vrot.lane.b32.xlu0 %v284, 8
        %v473 = vpop.permute.xlu0 %472
        %474 = vrot.lane.b32.xlu0 %v285, 8
        %v475 = vpop.permute.xlu0 %474
        %476 = vrot.lane.b32.xlu0 %v286, 8
        %v477 = vpop.permute.xlu0 %476
        %478 = vrot.lane.b32.xlu0 %v287, 8
        %v479 = vpop.permute.xlu0 %478
        %480 = vrot.lane.b32.xlu0 %v288, 8
        %v481 = vpop.permute.xlu0 %480
        %482 = vrot.lane.b32.xlu0 %v289, 8
        %v483 = vpop.permute.xlu0 %482
        %484 = vrot.lane.b32.xlu0 %v290, 8
        %v485 = vpop.permute.xlu0 %484
        %486 = vrot.lane.b32.xlu0 %v291, 8
        %v487 = vpop.permute.xlu0 %486
        %488 = vrot.lane.b32.xlu0 %v292, 8
        %v489 = vpop.permute.xlu0 %488
        %490 = vrot.lane.b32.xlu0 %v293, 8
        %v491 = vpop.permute.xlu0 %490
        %492 = vrot.lane.b32.xlu0 %v294, 8
        %v493 = vpop.permute.xlu0 %492
        %494 = vrot.lane.b32.xlu0 %v295, 8
        %v495 = vpop.permute.xlu0 %494
        %496 = vrot.lane.b32.xlu0 %v296, 8
        %v497 = vpop.permute.xlu0 %496
        %498 = vrot.lane.b32.xlu0 %v297, 8
        %v499 = vpop.permute.xlu0 %498
        %500 = vrot.lane.b32.xlu0 %v298, 8
        %v501 = vpop.permute.xlu0 %500
        %502 = vrot.lane.b32.xlu0 %v299, 8
        %v503 = vpop.permute.xlu0 %502
        %504 = vrot.lane.b32.xlu0 %v300, 8
        %v505 = vpop.permute.xlu0 %504
        %506 = vrot.lane.b32.xlu0 %v301, 8
        %v507 = vpop.permute.xlu0 %506
        %vm533 = vcmask 97346
        %534 = vst.msk [vmem:[#allocation2 - $0x2] sm:$0xfc] %vm533, %v459
        %vm535 = vcmask 97344
        %536 = vst.msk [vmem:[#allocation2 + $0x6] sm:$0xff] %vm535, %v461
        %537 = vst.msk [vmem:[#allocation2 + $0xe] sm:$0xff] %vm535, %v463
        %538 = vst.msk [vmem:[#allocation2 + $0x16] sm:$0xff] %vm535, %v465
        %539 = vst.msk [vmem:[#allocation2 + $0x1e] sm:$0xff] %vm535, %v467
        %540 = vst.msk [vmem:[#allocation2 + $0x26] sm:$0xff] %vm535, %v469
        %541 = vst.msk [vmem:[#allocation2 + $0x2e] sm:$0xff] %vm535, %v471
        %542 = vst.msk [vmem:[#allocation2 + $0x36] sm:$0xff] %vm535, %v473
        %543 = vst.msk [vmem:[#allocation2 + $0x3e] sm:$0xff] %vm535, %v475
        %544 = vst.msk [vmem:[#allocation2 + $0x46] sm:$0xff] %vm535, %v477
        %545 = vst.msk [vmem:[#allocation2 + $0x4e] sm:$0xff] %vm535, %v479
        %546 = vst.msk [vmem:[#allocation2 + $0x56] sm:$0xff] %vm535, %v481
        %547 = vst.msk [vmem:[#allocation2 + $0x5e] sm:$0xff] %vm535, %v483
        %548 = vst.msk [vmem:[#allocation2 + $0x66] sm:$0xff] %vm535, %v485
        %549 = vst.msk [vmem:[#allocation2 + $0x6e] sm:$0xff] %vm535, %v487
        %550 = vst.msk [vmem:[#allocation2 + $0x76] sm:$0xff] %vm535, %v489
        %551 = vst.msk [vmem:[#allocation2 + $0x7e] sm:$0xff] %vm535, %v491
        %552 = vst.msk [vmem:[#allocation2 + $0x86] sm:$0xff] %vm535, %v493
        %553 = vst.msk [vmem:[#allocation2 + $0x8e] sm:$0xff] %vm535, %v495
        %554 = vst.msk [vmem:[#allocation2 + $0x96] sm:$0xff] %vm535, %v497
        %555 = vst.msk [vmem:[#allocation2 + $0x9e] sm:$0xff] %vm535, %v499
        %556 = vst.msk [vmem:[#allocation2 + $0xa6] sm:$0xff] %vm535, %v501
        %557 = vst.msk [vmem:[#allocation2 + $0xae] sm:$0xff] %vm535, %v503
        %558 = vst.msk [vmem:[#allocation2 + $0xb6] sm:$0xff] %vm535, %v505
        %vm559 = vcmask 91200
        %560 = vst.msk [vmem:[#allocation2 + $0xbe] sm:$0x3] %vm559, %v507
        %561 = vrot.lane.b32.xlu0 %v277, 12
        %v562 = vpop.permute.xlu0 %561
        %563 = vrot.lane.b32.xlu0 %v278, 12
        %v564 = vpop.permute.xlu0 %563
        %565 = vrot.lane.b32.xlu0 %v279, 12
        %v566 = vpop.permute.xlu0 %565
        %567 = vrot.lane.b32.xlu0 %v280, 12
        %v568 = vpop.permute.xlu0 %567
        %569 = vrot.lane.b32.xlu0 %v281, 12
        %v570 = vpop.permute.xlu0 %569
        %571 = vrot.lane.b32.xlu0 %v282, 12
        %v572 = vpop.permute.xlu0 %571
        %573 = vrot.lane.b32.xlu0 %v283, 12
        %v574 = vpop.permute.xlu0 %573
        %575 = vrot.lane.b32.xlu0 %v284, 12
        %v576 = vpop.permute.xlu0 %575
        %577 = vrot.lane.b32.xlu0 %v285, 12
        %v578 = vpop.permute.xlu0 %577
        %579 = vrot.lane.b32.xlu0 %v286, 12
        %v580 = vpop.permute.xlu0 %579
        %581 = vrot.lane.b32.xlu0 %v287, 12
        %v582 = vpop.permute.xlu0 %581
        %583 = vrot.lane.b32.xlu0 %v288, 12
        %v584 = vpop.permute.xlu0 %583
        %585 = vrot.lane.b32.xlu0 %v289, 12
        %v586 = vpop.permute.xlu0 %585
        %587 = vrot.lane.b32.xlu0 %v290, 12
        %v588 = vpop.permute.xlu0 %587
        %589 = vrot.lane.b32.xlu0 %v291, 12
        %v590 = vpop.permute.xlu0 %589
        %591 = vrot.lane.b32.xlu0 %v292, 12
        %v592 = vpop.permute.xlu0 %591
        %593 = vrot.lane.b32.xlu0 %v293, 12
        %v594 = vpop.permute.xlu0 %593
        %595 = vrot.lane.b32.xlu0 %v294, 12
        %v596 = vpop.permute.xlu0 %595
        %597 = vrot.lane.b32.xlu0 %v295, 12
        %v598 = vpop.permute.xlu0 %597
        %599 = vrot.lane.b32.xlu0 %v296, 12
        %v600 = vpop.permute.xlu0 %599
        %601 = vrot.lane.b32.xlu0 %v297, 12
        %v602 = vpop.permute.xlu0 %601
        %603 = vrot.lane.b32.xlu0 %v298, 12
        %v604 = vpop.permute.xlu0 %603
        %605 = vrot.lane.b32.xlu0 %v299, 12
        %v606 = vpop.permute.xlu0 %605
        %607 = vrot.lane.b32.xlu0 %v300, 12
        %v608 = vpop.permute.xlu0 %607
        %609 = vrot.lane.b32.xlu0 %v301, 12
        %v610 = vpop.permute.xlu0 %609
        %vm636 = vcmask 130147
        %637 = vst.msk [vmem:[#allocation2 - $0x3] sm:$0xf8] %vm636, %v562
        %vm638 = vcmask 130144
        %639 = vst.msk [vmem:[#allocation2 + $0x5] sm:$0xff] %vm638, %v564
        %640 = vst.msk [vmem:[#allocation2 + $0xd] sm:$0xff] %vm638, %v566
        %641 = vst.msk [vmem:[#allocation2 + $0x15] sm:$0xff] %vm638, %v568
        %642 = vst.msk [vmem:[#allocation2 + $0x1d] sm:$0xff] %vm638, %v570
        %643 = vst.msk [vmem:[#allocation2 + $0x25] sm:$0xff] %vm638, %v572
        %644 = vst.msk [vmem:[#allocation2 + $0x2d] sm:$0xff] %vm638, %v574
        %645 = vst.msk [vmem:[#allocation2 + $0x35] sm:$0xff] %vm638, %v576
        %646 = vst.msk [vmem:[#allocation2 + $0x3d] sm:$0xff] %vm638, %v578
        %647 = vst.msk [vmem:[#allocation2 + $0x45] sm:$0xff] %vm638, %v580
        %648 = vst.msk [vmem:[#allocation2 + $0x4d] sm:$0xff] %vm638, %v582
        %649 = vst.msk [vmem:[#allocation2 + $0x55] sm:$0xff] %vm638, %v584
        %650 = vst.msk [vmem:[#allocation2 + $0x5d] sm:$0xff] %vm638, %v586
        %651 = vst.msk [vmem:[#allocation2 + $0x65] sm:$0xff] %vm638, %v588
        %652 = vst.msk [vmem:[#allocation2 + $0x6d] sm:$0xff] %vm638, %v590
        %653 = vst.msk [vmem:[#allocation2 + $0x75] sm:$0xff] %vm638, %v592
        %654 = vst.msk [vmem:[#allocation2 + $0x7d] sm:$0xff] %vm638, %v594
        %655 = vst.msk [vmem:[#allocation2 + $0x85] sm:$0xff] %vm638, %v596
        %656 = vst.msk [vmem:[#allocation2 + $0x8d] sm:$0xff] %vm638, %v598
        %657 = vst.msk [vmem:[#allocation2 + $0x95] sm:$0xff] %vm638, %v600
        %658 = vst.msk [vmem:[#allocation2 + $0x9d] sm:$0xff] %vm638, %v602
        %659 = vst.msk [vmem:[#allocation2 + $0xa5] sm:$0xff] %vm638, %v604
        %660 = vst.msk [vmem:[#allocation2 + $0xad] sm:$0xff] %vm638, %v606
        %661 = vst.msk [vmem:[#allocation2 + $0xb5] sm:$0xff] %vm638, %v608
        %vm662 = vcmask 125024
        %663 = vst.msk [vmem:[#allocation2 + $0xbd] sm:$0x7] %vm662, %v610
        %664 = vrot.lane.b32.xlu0 %v277, 16
        %v665 = vpop.permute.xlu0 %664
        %666 = vrot.lane.b32.xlu0 %v278, 16
        %v667 = vpop.permute.xlu0 %666
        %668 = vrot.lane.b32.xlu0 %v279, 16
        %v669 = vpop.permute.xlu0 %668
        %670 = vrot.lane.b32.xlu0 %v280, 16
        %v671 = vpop.permute.xlu0 %670
        %672 = vrot.lane.b32.xlu0 %v281, 16
        %v673 = vpop.permute.xlu0 %672
        %674 = vrot.lane.b32.xlu0 %v282, 16
        %v675 = vpop.permute.xlu0 %674
        %676 = vrot.lane.b32.xlu0 %v283, 16
        %v677 = vpop.permute.xlu0 %676
        %678 = vrot.lane.b32.xlu0 %v284, 16
        %v679 = vpop.permute.xlu0 %678
        %680 = vrot.lane.b32.xlu0 %v285, 16
        %v681 = vpop.permute.xlu0 %680
        %682 = vrot.lane.b32.xlu0 %v286, 16
        %v683 = vpop.permute.xlu0 %682
        %684 = vrot.lane.b32.xlu0 %v287, 16
        %v685 = vpop.permute.xlu0 %684
        %686 = vrot.lane.b32.xlu0 %v288, 16
        %v687 = vpop.permute.xlu0 %686
        %688 = vrot.lane.b32.xlu0 %v289, 16
        %v689 = vpop.permute.xlu0 %688
        %690 = vrot.lane.b32.xlu0 %v290, 16
        %v691 = vpop.permute.xlu0 %690
        %692 = vrot.lane.b32.xlu0 %v291, 16
        %v693 = vpop.permute.xlu0 %692
        %694 = vrot.lane.b32.xlu0 %v292, 16
        %v695 = vpop.permute.xlu0 %694
        %696 = vrot.lane.b32.xlu0 %v293, 16
        %v697 = vpop.permute.xlu0 %696
        %698 = vrot.lane.b32.xlu0 %v294, 16
        %v699 = vpop.permute.xlu0 %698
        %700 = vrot.lane.b32.xlu0 %v295, 16
        %v701 = vpop.permute.xlu0 %700
        %702 = vrot.lane.b32.xlu0 %v296, 16
        %v703 = vpop.permute.xlu0 %702
        %704 = vrot.lane.b32.xlu0 %v297, 16
        %v705 = vpop.permute.xlu0 %704
        %706 = vrot.lane.b32.xlu0 %v298, 16
        %v707 = vpop.permute.xlu0 %706
        %708 = vrot.lane.b32.xlu0 %v299, 16
        %v709 = vpop.permute.xlu0 %708
        %710 = vrot.lane.b32.xlu0 %v300, 16
        %v711 = vpop.permute.xlu0 %710
        %712 = vrot.lane.b32.xlu0 %v301, 16
        %v713 = vpop.permute.xlu0 %712
        %vm739 = vcmask 162948
        %740 = vst.msk [vmem:[#allocation2 - $0x4] sm:$0xf0] %vm739, %v665
        %vm741 = vcmask 162944
        %742 = vst.msk [vmem:[#allocation2 + $0x4] sm:$0xff] %vm741, %v667
        %743 = vst.msk [vmem:[#allocation2 + $0xc] sm:$0xff] %vm741, %v669
        %744 = vst.msk [vmem:[#allocation2 + $0x14] sm:$0xff] %vm741, %v671
        %745 = vst.msk [vmem:[#allocation2 + $0x1c] sm:$0xff] %vm741, %v673
        %746 = vst.msk [vmem:[#allocation2 + $0x24] sm:$0xff] %vm741, %v675
        %747 = vst.msk [vmem:[#allocation2 + $0x2c] sm:$0xff] %vm741, %v677
        %748 = vst.msk [vmem:[#allocation2 + $0x34] sm:$0xff] %vm741, %v679
        %749 = vst.msk [vmem:[#allocation2 + $0x3c] sm:$0xff] %vm741, %v681
        %750 = vst.msk [vmem:[#allocation2 + $0x44] sm:$0xff] %vm741, %v683
        %751 = vst.msk [vmem:[#allocation2 + $0x4c] sm:$0xff] %vm741, %v685
        %752 = vst.msk [vmem:[#allocation2 + $0x54] sm:$0xff] %vm741, %v687
        %753 = vst.msk [vmem:[#allocation2 + $0x5c] sm:$0xff] %vm741, %v689
        %754 = vst.msk [vmem:[#allocation2 + $0x64] sm:$0xff] %vm741, %v691
        %755 = vst.msk [vmem:[#allocation2 + $0x6c] sm:$0xff] %vm741, %v693
        %756 = vst.msk [vmem:[#allocation2 + $0x74] sm:$0xff] %vm741, %v695
        %757 = vst.msk [vmem:[#allocation2 + $0x7c] sm:$0xff] %vm741, %v697
        %758 = vst.msk [vmem:[#allocation2 + $0x84] sm:$0xff] %vm741, %v699
        %759 = vst.msk [vmem:[#allocation2 + $0x8c] sm:$0xff] %vm741, %v701
        %760 = vst.msk [vmem:[#allocation2 + $0x94] sm:$0xff] %vm741, %v703
        %761 = vst.msk [vmem:[#allocation2 + $0x9c] sm:$0xff] %vm741, %v705
        %762 = vst.msk [vmem:[#allocation2 + $0xa4] sm:$0xff] %vm741, %v707
        %763 = vst.msk [vmem:[#allocation2 + $0xac] sm:$0xff] %vm741, %v709
        %764 = vst.msk [vmem:[#allocation2 + $0xb4] sm:$0xff] %vm741, %v711
        %vm765 = vcmask 158848
        %766 = vst.msk [vmem:[#allocation2 + $0xbc] sm:$0xf] %vm765, %v713
        %767 = vrot.lane.b32.xlu0 %v277, 20
        %v768 = vpop.permute.xlu0 %767
        %769 = vrot.lane.b32.xlu0 %v278, 20
        %v770 = vpop.permute.xlu0 %769
        %771 = vrot.lane.b32.xlu0 %v279, 20
        %v772 = vpop.permute.xlu0 %771
        %773 = vrot.lane.b32.xlu0 %v280, 20
        %v774 = vpop.permute.xlu0 %773
        %775 = vrot.lane.b32.xlu0 %v281, 20
        %v776 = vpop.permute.xlu0 %775
        %777 = vrot.lane.b32.xlu0 %v282, 20
        %v778 = vpop.permute.xlu0 %777
        %779 = vrot.lane.b32.xlu0 %v283, 20
        %v780 = vpop.permute.xlu0 %779
        %781 = vrot.lane.b32.xlu0 %v284, 20
        %v782 = vpop.permute.xlu0 %781
        %783 = vrot.lane.b32.xlu0 %v285, 20
        %v784 = vpop.permute.xlu0 %783
        %785 = vrot.lane.b32.xlu0 %v286, 20
        %v786 = vpop.permute.xlu0 %785
        %787 = vrot.lane.b32.xlu0 %v287, 20
        %v788 = vpop.permute.xlu0 %787
        %789 = vrot.lane.b32.xlu0 %v288, 20
        %v790 = vpop.permute.xlu0 %789
        %791 = vrot.lane.b32.xlu0 %v289, 20
        %v792 = vpop.permute.xlu0 %791
        %793 = vrot.lane.b32.xlu0 %v290, 20
        %v794 = vpop.permute.xlu0 %793
        %795 = vrot.lane.b32.xlu0 %v291, 20
        %v796 = vpop.permute.xlu0 %795
        %797 = vrot.lane.b32.xlu0 %v292, 20
        %v798 = vpop.permute.xlu0 %797
        %799 = vrot.lane.b32.xlu0 %v293, 20
        %v800 = vpop.permute.xlu0 %799
        %801 = vrot.lane.b32.xlu0 %v294, 20
        %v802 = vpop.permute.xlu0 %801
        %803 = vrot.lane.b32.xlu0 %v295, 20
        %v804 = vpop.permute.xlu0 %803
        %805 = vrot.lane.b32.xlu0 %v296, 20
        %v806 = vpop.permute.xlu0 %805
        %807 = vrot.lane.b32.xlu0 %v297, 20
        %v808 = vpop.permute.xlu0 %807
        %809 = vrot.lane.b32.xlu0 %v298, 20
        %v810 = vpop.permute.xlu0 %809
        %811 = vrot.lane.b32.xlu0 %v299, 20
        %v812 = vpop.permute.xlu0 %811
        %813 = vrot.lane.b32.xlu0 %v300, 20
        %v814 = vpop.permute.xlu0 %813
        %815 = vrot.lane.b32.xlu0 %v301, 20
        %v816 = vpop.permute.xlu0 %815
        %vm842 = vcmask 195749
        %843 = vst.msk [vmem:[#allocation2 - $0x5] sm:$0xe0] %vm842, %v768
        %vm844 = vcmask 195744
        %845 = vst.msk [vmem:[#allocation2 + $0x3] sm:$0xff] %vm844, %v770
        %846 = vst.msk [vmem:[#allocation2 + $0xb] sm:$0xff] %vm844, %v772
        %847 = vst.msk [vmem:[#allocation2 + $0x13] sm:$0xff] %vm844, %v774
        %848 = vst.msk [vmem:[#allocation2 + $0x1b] sm:$0xff] %vm844, %v776
        %849 = vst.msk [vmem:[#allocation2 + $0x23] sm:$0xff] %vm844, %v778
        %850 = vst.msk [vmem:[#allocation2 + $0x2b] sm:$0xff] %vm844, %v780
        %851 = vst.msk [vmem:[#allocation2 + $0x33] sm:$0xff] %vm844, %v782
        %852 = vst.msk [vmem:[#allocation2 + $0x3b] sm:$0xff] %vm844, %v784
        %853 = vst.msk [vmem:[#allocation2 + $0x43] sm:$0xff] %vm844, %v786
        %854 = vst.msk [vmem:[#allocation2 + $0x4b] sm:$0xff] %vm844, %v788
        %855 = vst.msk [vmem:[#allocation2 + $0x53] sm:$0xff] %vm844, %v790
        %856 = vst.msk [vmem:[#allocation2 + $0x5b] sm:$0xff] %vm844, %v792
        %857 = vst.msk [vmem:[#allocation2 + $0x63] sm:$0xff] %vm844, %v794
        %858 = vst.msk [vmem:[#allocation2 + $0x6b] sm:$0xff] %vm844, %v796
        %859 = vst.msk [vmem:[#allocation2 + $0x73] sm:$0xff] %vm844, %v798
        %860 = vst.msk [vmem:[#allocation2 + $0x7b] sm:$0xff] %vm844, %v800
        %861 = vst.msk [vmem:[#allocation2 + $0x83] sm:$0xff] %vm844, %v802
        %862 = vst.msk [vmem:[#allocation2 + $0x8b] sm:$0xff] %vm844, %v804
        %863 = vst.msk [vmem:[#allocation2 + $0x93] sm:$0xff] %vm844, %v806
        %864 = vst.msk [vmem:[#allocation2 + $0x9b] sm:$0xff] %vm844, %v808
        %865 = vst.msk [vmem:[#allocation2 + $0xa3] sm:$0xff] %vm844, %v810
        %866 = vst.msk [vmem:[#allocation2 + $0xab] sm:$0xff] %vm844, %v812
        %867 = vst.msk [vmem:[#allocation2 + $0xb3] sm:$0xff] %vm844, %v814
        %vm868 = vcmask 192672
        %869 = vst.msk [vmem:[#allocation2 + $0xbb] sm:$0x1f] %vm868, %v816
        %870 = vrot.lane.b32.xlu0 %v277, 24
        %v871 = vpop.permute.xlu0 %870
        %872 = vrot.lane.b32.xlu0 %v278, 24
        %v873 = vpop.permute.xlu0 %872
        %874 = vrot.lane.b32.xlu0 %v279, 24
        %v875 = vpop.permute.xlu0 %874
        %876 = vrot.lane.b32.xlu0 %v280, 24
        %v877 = vpop.permute.xlu0 %876
        %878 = vrot.lane.b32.xlu0 %v281, 24
        %v879 = vpop.permute.xlu0 %878
        %880 = vrot.lane.b32.xlu0 %v282, 24
        %v881 = vpop.permute.xlu0 %880
        %882 = vrot.lane.b32.xlu0 %v283, 24
        %v883 = vpop.permute.xlu0 %882
        %884 = vrot.lane.b32.xlu0 %v284, 24
        %v885 = vpop.permute.xlu0 %884
        %886 = vrot.lane.b32.xlu0 %v285, 24
        %v887 = vpop.permute.xlu0 %886
        %888 = vrot.lane.b32.xlu0 %v286, 24
        %v889 = vpop.permute.xlu0 %888
        %890 = vrot.lane.b32.xlu0 %v287, 24
        %v891 = vpop.permute.xlu0 %890
        %892 = vrot.lane.b32.xlu0 %v288, 24
        %v893 = vpop.permute.xlu0 %892
        %894 = vrot.lane.b32.xlu0 %v289, 24
        %v895 = vpop.permute.xlu0 %894
        %896 = vrot.lane.b32.xlu0 %v290, 24
        %v897 = vpop.permute.xlu0 %896
        %898 = vrot.lane.b32.xlu0 %v291, 24
        %v899 = vpop.permute.xlu0 %898
        %900 = vrot.lane.b32.xlu0 %v292, 24
        %v901 = vpop.permute.xlu0 %900
        %902 = vrot.lane.b32.xlu0 %v293, 24
        %v903 = vpop.permute.xlu0 %902
        %904 = vrot.lane.b32.xlu0 %v294, 24
        %v905 = vpop.permute.xlu0 %904
        %906 = vrot.lane.b32.xlu0 %v295, 24
        %v907 = vpop.permute.xlu0 %906
        %908 = vrot.lane.b32.xlu0 %v296, 24
        %v909 = vpop.permute.xlu0 %908
        %910 = vrot.lane.b32.xlu0 %v297, 24
        %v911 = vpop.permute.xlu0 %910
        %912 = vrot.lane.b32.xlu0 %v298, 24
        %v913 = vpop.permute.xlu0 %912
        %914 = vrot.lane.b32.xlu0 %v299, 24
        %v915 = vpop.permute.xlu0 %914
        %916 = vrot.lane.b32.xlu0 %v300, 24
        %v917 = vpop.permute.xlu0 %916
        %918 = vrot.lane.b32.xlu0 %v301, 24
        %v919 = vpop.permute.xlu0 %918
        %vm945 = vcmask 228550
        %946 = vst.msk [vmem:[#allocation2 - $0x6] sm:$0xc0] %vm945, %v871
        %vm947 = vcmask 228544
        %948 = vst.msk [vmem:[#allocation2 + $0x2] sm:$0xff] %vm947, %v873
        %949 = vst.msk [vmem:[#allocation2 + $0xa] sm:$0xff] %vm947, %v875
        %950 = vst.msk [vmem:[#allocation2 + $0x12] sm:$0xff] %vm947, %v877
        %951 = vst.msk [vmem:[#allocation2 + $0x1a] sm:$0xff] %vm947, %v879
        %952 = vst.msk [vmem:[#allocation2 + $0x22] sm:$0xff] %vm947, %v881
        %953 = vst.msk [vmem:[#allocation2 + $0x2a] sm:$0xff] %vm947, %v883
        %954 = vst.msk [vmem:[#allocation2 + $0x32] sm:$0xff] %vm947, %v885
        %955 = vst.msk [vmem:[#allocation2 + $0x3a] sm:$0xff] %vm947, %v887
        %956 = vst.msk [vmem:[#allocation2 + $0x42] sm:$0xff] %vm947, %v889
        %957 = vst.msk [vmem:[#allocation2 + $0x4a] sm:$0xff] %vm947, %v891
        %958 = vst.msk [vmem:[#allocation2 + $0x52] sm:$0xff] %vm947, %v893
        %959 = vst.msk [vmem:[#allocation2 + $0x5a] sm:$0xff] %vm947, %v895
        %960 = vst.msk [vmem:[#allocation2 + $0x62] sm:$0xff] %vm947, %v897
        %961 = vst.msk [vmem:[#allocation2 + $0x6a] sm:$0xff] %vm947, %v899
        %962 = vst.msk [vmem:[#allocation2 + $0x72] sm:$0xff] %vm947, %v901
        %963 = vst.msk [vmem:[#allocation2 + $0x7a] sm:$0xff] %vm947, %v903
        %964 = vst.msk [vmem:[#allocation2 + $0x82] sm:$0xff] %vm947, %v905
        %965 = vst.msk [vmem:[#allocation2 + $0x8a] sm:$0xff] %vm947, %v907
        %966 = vst.msk [vmem:[#allocation2 + $0x92] sm:$0xff] %vm947, %v909
        %967 = vst.msk [vmem:[#allocation2 + $0x9a] sm:$0xff] %vm947, %v911
        %968 = vst.msk [vmem:[#allocation2 + $0xa2] sm:$0xff] %vm947, %v913
        %969 = vst.msk [vmem:[#allocation2 + $0xaa] sm:$0xff] %vm947, %v915
        %970 = vst.msk [vmem:[#allocation2 + $0xb2] sm:$0xff] %vm947, %v917
        %vm971 = vcmask 226496
        %972 = vst.msk [vmem:[#allocation2 + $0xba] sm:$0x3f] %vm971, %v919
        %973 = vrot.lane.b32.xlu0 %v277, 28
        %v974 = vpop.permute.xlu0 %973
        %975 = vrot.lane.b32.xlu0 %v278, 28
        %v976 = vpop.permute.xlu0 %975
        %977 = vrot.lane.b32.xlu0 %v279, 28
        %v978 = vpop.permute.xlu0 %977
        %979 = vrot.lane.b32.xlu0 %v280, 28
        %v980 = vpop.permute.xlu0 %979
        %981 = vrot.lane.b32.xlu0 %v281, 28
        %v982 = vpop.permute.xlu0 %981
        %983 = vrot.lane.b32.xlu0 %v282, 28
        %v984 = vpop.permute.xlu0 %983
        %985 = vrot.lane.b32.xlu0 %v283, 28
        %v986 = vpop.permute.xlu0 %985
        %987 = vrot.lane.b32.xlu0 %v284, 28
        %v988 = vpop.permute.xlu0 %987
        %989 = vrot.lane.b32.xlu0 %v285, 28
        %v990 = vpop.permute.xlu0 %989
        %991 = vrot.lane.b32.xlu0 %v286, 28
        %v992 = vpop.permute.xlu0 %991
        %993 = vrot.lane.b32.xlu0 %v287, 28
        %v994 = vpop.permute.xlu0 %993
        %995 = vrot.lane.b32.xlu0 %v288, 28
        %v996 = vpop.permute.xlu0 %995
        %997 = vrot.lane.b32.xlu0 %v289, 28
        %v998 = vpop.permute.xlu0 %997
        %999 = vrot.lane.b32.xlu0 %v290, 28
        %v1000 = vpop.permute.xlu0 %999
        %1001 = vrot.lane.b32.xlu0 %v291, 28
        %v1002 = vpop.permute.xlu0 %1001
        %1003 = vrot.lane.b32.xlu0 %v292, 28
        %v1004 = vpop.permute.xlu0 %1003
        %1005 = vrot.lane.b32.xlu0 %v293, 28
        %v1006 = vpop.permute.xlu0 %1005
        %1007 = vrot.lane.b32.xlu0 %v294, 28
        %v1008 = vpop.permute.xlu0 %1007
        %1009 = vrot.lane.b32.xlu0 %v295, 28
        %v1010 = vpop.permute.xlu0 %1009
        %1011 = vrot.lane.b32.xlu0 %v296, 28
        %v1012 = vpop.permute.xlu0 %1011
        %1013 = vrot.lane.b32.xlu0 %v297, 28
        %v1014 = vpop.permute.xlu0 %1013
        %1015 = vrot.lane.b32.xlu0 %v298, 28
        %v1016 = vpop.permute.xlu0 %1015
        %1017 = vrot.lane.b32.xlu0 %v299, 28
        %v1018 = vpop.permute.xlu0 %1017
        %1019 = vrot.lane.b32.xlu0 %v300, 28
        %v1020 = vpop.permute.xlu0 %1019
        %1021 = vrot.lane.b32.xlu0 %v301, 28
        %v1022 = vpop.permute.xlu0 %1021
        %vm1048 = vcmask 261351
        %1049 = vst.msk [vmem:[#allocation2 - $0x7] sm:$0x80] %vm1048, %v974
        %vm1050 = vcmask 261344
        %1051 = vst.msk [vmem:[#allocation2 + $0x1] sm:$0xff] %vm1050, %v976
        %1052 = vst.msk [vmem:[#allocation2 + $0x9] sm:$0xff] %vm1050, %v978
        %1053 = vst.msk [vmem:[#allocation2 + $0x11] sm:$0xff] %vm1050, %v980
        %1054 = vst.msk [vmem:[#allocation2 + $0x19] sm:$0xff] %vm1050, %v982
        %1055 = vst.msk [vmem:[#allocation2 + $0x21] sm:$0xff] %vm1050, %v984
        %1056 = vst.msk [vmem:[#allocation2 + $0x29] sm:$0xff] %vm1050, %v986
        %1057 = vst.msk [vmem:[#allocation2 + $0x31] sm:$0xff] %vm1050, %v988
        %1058 = vst.msk [vmem:[#allocation2 + $0x39] sm:$0xff] %vm1050, %v990
        %1059 = vst.msk [vmem:[#allocation2 + $0x41] sm:$0xff] %vm1050, %v992
        %1060 = vst.msk [vmem:[#allocation2 + $0x49] sm:$0xff] %vm1050, %v994
        %1061 = vst.msk [vmem:[#allocation2 + $0x51] sm:$0xff] %vm1050, %v996
        %1062 = vst.msk [vmem:[#allocation2 + $0x59] sm:$0xff] %vm1050, %v998
        %1063 = vst.msk [vmem:[#allocation2 + $0x61] sm:$0xff] %vm1050, %v1000
        %1064 = vst.msk [vmem:[#allocation2 + $0x69] sm:$0xff] %vm1050, %v1002
        %1065 = vst.msk [vmem:[#allocation2 + $0x71] sm:$0xff] %vm1050, %v1004
        %1066 = vst.msk [vmem:[#allocation2 + $0x79] sm:$0xff] %vm1050, %v1006
        %1067 = vst.msk [vmem:[#allocation2 + $0x81] sm:$0xff] %vm1050, %v1008
        %1068 = vst.msk [vmem:[#allocation2 + $0x89] sm:$0xff] %vm1050, %v1010
        %1069 = vst.msk [vmem:[#allocation2 + $0x91] sm:$0xff] %vm1050, %v1012
        %1070 = vst.msk [vmem:[#allocation2 + $0x99] sm:$0xff] %vm1050, %v1014
        %1071 = vst.msk [vmem:[#allocation2 + $0xa1] sm:$0xff] %vm1050, %v1016
        %1072 = vst.msk [vmem:[#allocation2 + $0xa9] sm:$0xff] %vm1050, %v1018
        %1073 = vst.msk [vmem:[#allocation2 + $0xb1] sm:$0xff] %vm1050, %v1020
        %vm1074 = vcmask 260320
        %1075 = vst.msk [vmem:[#allocation2 + $0xb9] sm:$0x7f] %vm1074, %v1022
        %1076 = vrot.lane.b32.xlu0 %v278, 32
        %v1077 = vpop.permute.xlu0 %1076
        %1078 = vrot.lane.b32.xlu0 %v279, 32
        %v1079 = vpop.permute.xlu0 %1078
        %1080 = vrot.lane.b32.xlu0 %v280, 32
        %v1081 = vpop.permute.xlu0 %1080
        %1082 = vrot.lane.b32.xlu0 %v281, 32
        %v1083 = vpop.permute.xlu0 %1082
        %1084 = vrot.lane.b32.xlu0 %v282, 32
        %v1085 = vpop.permute.xlu0 %1084
        %1086 = vrot.lane.b32.xlu0 %v283, 32
        %v1087 = vpop.permute.xlu0 %1086
        %1088 = vrot.lane.b32.xlu0 %v284, 32
        %v1089 = vpop.permute.xlu0 %1088
        %1090 = vrot.lane.b32.xlu0 %v285, 32
        %v1091 = vpop.permute.xlu0 %1090
        %1092 = vrot.lane.b32.xlu0 %v286, 32
        %v1093 = vpop.permute.xlu0 %1092
        %1094 = vrot.lane.b32.xlu0 %v287, 32
        %v1095 = vpop.permute.xlu0 %1094
        %1096 = vrot.lane.b32.xlu0 %v288, 32
        %v1097 = vpop.permute.xlu0 %1096
        %1098 = vrot.lane.b32.xlu0 %v289, 32
        %v1099 = vpop.permute.xlu0 %1098
        %1100 = vrot.lane.b32.xlu0 %v290, 32
        %v1101 = vpop.permute.xlu0 %1100
        %1102 = vrot.lane.b32.xlu0 %v291, 32
        %v1103 = vpop.permute.xlu0 %1102
        %1104 = vrot.lane.b32.xlu0 %v292, 32
        %v1105 = vpop.permute.xlu0 %1104
        %1106 = vrot.lane.b32.xlu0 %v293, 32
        %v1107 = vpop.permute.xlu0 %1106
        %1108 = vrot.lane.b32.xlu0 %v294, 32
        %v1109 = vpop.permute.xlu0 %1108
        %1110 = vrot.lane.b32.xlu0 %v295, 32
        %v1111 = vpop.permute.xlu0 %1110
        %1112 = vrot.lane.b32.xlu0 %v296, 32
        %v1113 = vpop.permute.xlu0 %1112
        %1114 = vrot.lane.b32.xlu0 %v297, 32
        %v1115 = vpop.permute.xlu0 %1114
        %1116 = vrot.lane.b32.xlu0 %v298, 32
        %v1117 = vpop.permute.xlu0 %1116
        %1118 = vrot.lane.b32.xlu0 %v299, 32
        %v1119 = vpop.permute.xlu0 %1118
        %1120 = vrot.lane.b32.xlu0 %v300, 32
        %v1121 = vpop.permute.xlu0 %1120
        %1122 = vrot.lane.b32.xlu0 %v301, 32
        %v1123 = vpop.permute.xlu0 %1122
        %vm1148 = vcmask 294144
        %1149 = vst.msk [vmem:[#allocation2] sm:$0xff] %vm1148, %v1077
        %1150 = vst.msk [vmem:[#allocation2 + $0x8] sm:$0xff] %vm1148, %v1079
        %1151 = vst.msk [vmem:[#allocation2 + $0x10] sm:$0xff] %vm1148, %v1081
        %1152 = vst.msk [vmem:[#allocation2 + $0x18] sm:$0xff] %vm1148, %v1083
        %1153 = vst.msk [vmem:[#allocation2 + $0x20] sm:$0xff] %vm1148, %v1085
        %1154 = vst.msk [vmem:[#allocation2 + $0x28] sm:$0xff] %vm1148, %v1087
        %1155 = vst.msk [vmem:[#allocation2 + $0x30] sm:$0xff] %vm1148, %v1089
        %1156 = vst.msk [vmem:[#allocation2 + $0x38] sm:$0xff] %vm1148, %v1091
        %1157 = vst.msk [vmem:[#allocation2 + $0x40] sm:$0xff] %vm1148, %v1093
        %1158 = vst.msk [vmem:[#allocation2 + $0x48] sm:$0xff] %vm1148, %v1095
        %1159 = vst.msk [vmem:[#allocation2 + $0x50] sm:$0xff] %vm1148, %v1097
        %1160 = vst.msk [vmem:[#allocation2 + $0x58] sm:$0xff] %vm1148, %v1099
        %1161 = vst.msk [vmem:[#allocation2 + $0x60] sm:$0xff] %vm1148, %v1101
        %1162 = vst.msk [vmem:[#allocation2 + $0x68] sm:$0xff] %vm1148, %v1103
        %1163 = vst.msk [vmem:[#allocation2 + $0x70] sm:$0xff] %vm1148, %v1105
        %1164 = vst.msk [vmem:[#allocation2 + $0x78] sm:$0xff] %vm1148, %v1107
        %1165 = vst.msk [vmem:[#allocation2 + $0x80] sm:$0xff] %vm1148, %v1109
        %1166 = vst.msk [vmem:[#allocation2 + $0x88] sm:$0xff] %vm1148, %v1111
        %1167 = vst.msk [vmem:[#allocation2 + $0x90] sm:$0xff] %vm1148, %v1113
        %1168 = vst.msk [vmem:[#allocation2 + $0x98] sm:$0xff] %vm1148, %v1115
        %1169 = vst.msk [vmem:[#allocation2 + $0xa0] sm:$0xff] %vm1148, %v1117
        %1170 = vst.msk [vmem:[#allocation2 + $0xa8] sm:$0xff] %vm1148, %v1119
        %1171 = vst.msk [vmem:[#allocation2 + $0xb0] sm:$0xff] %vm1148, %v1121
        %1172 = vst.msk [vmem:[#allocation2 + $0xb8] sm:$0xff] %vm1148, %v1123
        %1174 = vrot.lane.b32.xlu0 %v278, 36
        %v1175 = vpop.permute.xlu0 %1174
        %1176 = vrot.lane.b32.xlu0 %v279, 36
        %v1177 = vpop.permute.xlu0 %1176
        %1178 = vrot.lane.b32.xlu0 %v280, 36
        %v1179 = vpop.permute.xlu0 %1178
        %1180 = vrot.lane.b32.xlu0 %v281, 36
        %v1181 = vpop.permute.xlu0 %1180
        %1182 = vrot.lane.b32.xlu0 %v282, 36
        %v1183 = vpop.permute.xlu0 %1182
        %1184 = vrot.lane.b32.xlu0 %v283, 36
        %v1185 = vpop.permute.xlu0 %1184
        %1186 = vrot.lane.b32.xlu0 %v284, 36
        %v1187 = vpop.permute.xlu0 %1186
        %1188 = vrot.lane.b32.xlu0 %v285, 36
        %v1189 = vpop.permute.xlu0 %1188
        %1190 = vrot.lane.b32.xlu0 %v286, 36
        %v1191 = vpop.permute.xlu0 %1190
        %1192 = vrot.lane.b32.xlu0 %v287, 36
        %v1193 = vpop.permute.xlu0 %1192
        %1194 = vrot.lane.b32.xlu0 %v288, 36
        %v1195 = vpop.permute.xlu0 %1194
        %1196 = vrot.lane.b32.xlu0 %v289, 36
        %v1197 = vpop.permute.xlu0 %1196
        %1198 = vrot.lane.b32.xlu0 %v290, 36
        %v1199 = vpop.permute.xlu0 %1198
        %1200 = vrot.lane.b32.xlu0 %v291, 36
        %v1201 = vpop.permute.xlu0 %1200
        %1202 = vrot.lane.b32.xlu0 %v292, 36
        %v1203 = vpop.permute.xlu0 %1202
        %1204 = vrot.lane.b32.xlu0 %v293, 36
        %v1205 = vpop.permute.xlu0 %1204
        %1206 = vrot.lane.b32.xlu0 %v294, 36
        %v1207 = vpop.permute.xlu0 %1206
        %1208 = vrot.lane.b32.xlu0 %v295, 36
        %v1209 = vpop.permute.xlu0 %1208
        %1210 = vrot.lane.b32.xlu0 %v296, 36
        %v1211 = vpop.permute.xlu0 %1210
        %1212 = vrot.lane.b32.xlu0 %v297, 36
        %v1213 = vpop.permute.xlu0 %1212
        %1214 = vrot.lane.b32.xlu0 %v298, 36
        %v1215 = vpop.permute.xlu0 %1214
        %1216 = vrot.lane.b32.xlu0 %v299, 36
        %v1217 = vpop.permute.xlu0 %1216
        %1218 = vrot.lane.b32.xlu0 %v300, 36
        %v1219 = vpop.permute.xlu0 %1218
        %1220 = vrot.lane.b32.xlu0 %v301, 36
        %v1221 = vpop.permute.xlu0 %1220
        %1222 = vrot.lane.b32.xlu0 %v302, 36
        %v1223 = vpop.permute.xlu0 %1222
        %vm1249 = vcmask 326945
        %1250 = vst.msk [vmem:[#allocation2 - $0x1] sm:$0xfe] %vm1249, %v1175
        %vm1251 = vcmask 326944
        %1252 = vst.msk [vmem:[#allocation2 + $0x7] sm:$0xff] %vm1251, %v1177
        %1253 = vst.msk [vmem:[#allocation2 + $0xf] sm:$0xff] %vm1251, %v1179
        %1254 = vst.msk [vmem:[#allocation2 + $0x17] sm:$0xff] %vm1251, %v1181
        %1255 = vst.msk [vmem:[#allocation2 + $0x1f] sm:$0xff] %vm1251, %v1183
        %1256 = vst.msk [vmem:[#allocation2 + $0x27] sm:$0xff] %vm1251, %v1185
        %1257 = vst.msk [vmem:[#allocation2 + $0x2f] sm:$0xff] %vm1251, %v1187
        %1258 = vst.msk [vmem:[#allocation2 + $0x37] sm:$0xff] %vm1251, %v1189
        %1259 = vst.msk [vmem:[#allocation2 + $0x3f] sm:$0xff] %vm1251, %v1191
        %1260 = vst.msk [vmem:[#allocation2 + $0x47] sm:$0xff] %vm1251, %v1193
        %1261 = vst.msk [vmem:[#allocation2 + $0x4f] sm:$0xff] %vm1251, %v1195
        %1262 = vst.msk [vmem:[#allocation2 + $0x57] sm:$0xff] %vm1251, %v1197
        %1263 = vst.msk [vmem:[#allocation2 + $0x5f] sm:$0xff] %vm1251, %v1199
        %1264 = vst.msk [vmem:[#allocation2 + $0x67] sm:$0xff] %vm1251, %v1201
        %1265 = vst.msk [vmem:[#allocation2 + $0x6f] sm:$0xff] %vm1251, %v1203
        %1266 = vst.msk [vmem:[#allocation2 + $0x77] sm:$0xff] %vm1251, %v1205
        %1267 = vst.msk [vmem:[#allocation2 + $0x7f] sm:$0xff] %vm1251, %v1207
        %1268 = vst.msk [vmem:[#allocation2 + $0x87] sm:$0xff] %vm1251, %v1209
        %1269 = vst.msk [vmem:[#allocation2 + $0x8f] sm:$0xff] %vm1251, %v1211
        %1270 = vst.msk [vmem:[#allocation2 + $0x97] sm:$0xff] %vm1251, %v1213
        %1271 = vst.msk [vmem:[#allocation2 + $0x9f] sm:$0xff] %vm1251, %v1215
        %1272 = vst.msk [vmem:[#allocation2 + $0xa7] sm:$0xff] %vm1251, %v1217
        %1273 = vst.msk [vmem:[#allocation2 + $0xaf] sm:$0xff] %vm1251, %v1219
        %1274 = vst.msk [vmem:[#allocation2 + $0xb7] sm:$0xff] %vm1251, %v1221
        %vm1275 = vcmask 319776
        %1276 = vst.msk [vmem:[#allocation2 + $0xbf] sm:$0x1] %vm1275, %v1223
        %1277 = vrot.lane.b32.xlu0 %v278, 40
        %v1278 = vpop.permute.xlu0 %1277
        %1279 = vrot.lane.b32.xlu0 %v279, 40
        %v1280 = vpop.permute.xlu0 %1279
        %1281 = vrot.lane.b32.xlu0 %v280, 40
        %v1282 = vpop.permute.xlu0 %1281
        %1283 = vrot.lane.b32.xlu0 %v281, 40
        %v1284 = vpop.permute.xlu0 %1283
        %1285 = vrot.lane.b32.xlu0 %v282, 40
        %v1286 = vpop.permute.xlu0 %1285
        %1287 = vrot.lane.b32.xlu0 %v283, 40
        %v1288 = vpop.permute.xlu0 %1287
        %1289 = vrot.lane.b32.xlu0 %v284, 40
        %v1290 = vpop.permute.xlu0 %1289
        %1291 = vrot.lane.b32.xlu0 %v285, 40
        %v1292 = vpop.permute.xlu0 %1291
        %1293 = vrot.lane.b32.xlu0 %v286, 40
        %v1294 = vpop.permute.xlu0 %1293
        %1295 = vrot.lane.b32.xlu0 %v287, 40
        %v1296 = vpop.permute.xlu0 %1295
        %1297 = vrot.lane.b32.xlu0 %v288, 40
        %v1298 = vpop.permute.xlu0 %1297
        %1299 = vrot.lane.b32.xlu0 %v289, 40
        %v1300 = vpop.permute.xlu0 %1299
        %1301 = vrot.lane.b32.xlu0 %v290, 40
        %v1302 = vpop.permute.xlu0 %1301
        %1303 = vrot.lane.b32.xlu0 %v291, 40
        %v1304 = vpop.permute.xlu0 %1303
        %1305 = vrot.lane.b32.xlu0 %v292, 40
        %v1306 = vpop.permute.xlu0 %1305
        %1307 = vrot.lane.b32.xlu0 %v293, 40
        %v1308 = vpop.permute.xlu0 %1307
        %1309 = vrot.lane.b32.xlu0 %v294, 40
        %v1310 = vpop.permute.xlu0 %1309
        %1311 = vrot.lane.b32.xlu0 %v295, 40
        %v1312 = vpop.permute.xlu0 %1311
        %1313 = vrot.lane.b32.xlu0 %v296, 40
        %v1314 = vpop.permute.xlu0 %1313
        %1315 = vrot.lane.b32.xlu0 %v297, 40
        %v1316 = vpop.permute.xlu0 %1315
        %1317 = vrot.lane.b32.xlu0 %v298, 40
        %v1318 = vpop.permute.xlu0 %1317
        %1319 = vrot.lane.b32.xlu0 %v299, 40
        %v1320 = vpop.permute.xlu0 %1319
        %1321 = vrot.lane.b32.xlu0 %v300, 40
        %v1322 = vpop.permute.xlu0 %1321
        %1323 = vrot.lane.b32.xlu0 %v301, 40
        %v1324 = vpop.permute.xlu0 %1323
        %1325 = vrot.lane.b32.xlu0 %v302, 40
        %v1326 = vpop.permute.xlu0 %1325
        %vm1352 = vcmask 359746
        %1353 = vst.msk [vmem:[#allocation2 - $0x2] sm:$0xfc] %vm1352, %v1278
        %vm1354 = vcmask 359744
        %1355 = vst.msk [vmem:[#allocation2 + $0x6] sm:$0xff] %vm1354, %v1280
        %1356 = vst.msk [vmem:[#allocation2 + $0xe] sm:$0xff] %vm1354, %v1282
        %1357 = vst.msk [vmem:[#allocation2 + $0x16] sm:$0xff] %vm1354, %v1284
        %1358 = vst.msk [vmem:[#allocation2 + $0x1e] sm:$0xff] %vm1354, %v1286
        %1359 = vst.msk [vmem:[#allocation2 + $0x26] sm:$0xff] %vm1354, %v1288
        %1360 = vst.msk [vmem:[#allocation2 + $0x2e] sm:$0xff] %vm1354, %v1290
        %1361 = vst.msk [vmem:[#allocation2 + $0x36] sm:$0xff] %vm1354, %v1292
        %1362 = vst.msk [vmem:[#allocation2 + $0x3e] sm:$0xff] %vm1354, %v1294
        %1363 = vst.msk [vmem:[#allocation2 + $0x46] sm:$0xff] %vm1354, %v1296
        %1364 = vst.msk [vmem:[#allocation2 + $0x4e] sm:$0xff] %vm1354, %v1298
        %1365 = vst.msk [vmem:[#allocation2 + $0x56] sm:$0xff] %vm1354, %v1300
        %1366 = vst.msk [vmem:[#allocation2 + $0x5e] sm:$0xff] %vm1354, %v1302
        %1367 = vst.msk [vmem:[#allocation2 + $0x66] sm:$0xff] %vm1354, %v1304
        %1368 = vst.msk [vmem:[#allocation2 + $0x6e] sm:$0xff] %vm1354, %v1306
        %1369 = vst.msk [vmem:[#allocation2 + $0x76] sm:$0xff] %vm1354, %v1308
        %1370 = vst.msk [vmem:[#allocation2 + $0x7e] sm:$0xff] %vm1354, %v1310
        %1371 = vst.msk [vmem:[#allocation2 + $0x86] sm:$0xff] %vm1354, %v1312
        %1372 = vst.msk [vmem:[#allocation2 + $0x8e] sm:$0xff] %vm1354, %v1314
        %1373 = vst.msk [vmem:[#allocation2 + $0x96] sm:$0xff] %vm1354, %v1316
        %1374 = vst.msk [vmem:[#allocation2 + $0x9e] sm:$0xff] %vm1354, %v1318
        %1375 = vst.msk [vmem:[#allocation2 + $0xa6] sm:$0xff] %vm1354, %v1320
        %1376 = vst.msk [vmem:[#allocation2 + $0xae] sm:$0xff] %vm1354, %v1322
        %1377 = vst.msk [vmem:[#allocation2 + $0xb6] sm:$0xff] %vm1354, %v1324
        %vm1378 = vcmask 353600
        %1379 = vst.msk [vmem:[#allocation2 + $0xbe] sm:$0x3] %vm1378, %v1326
        %1380 = vrot.lane.b32.xlu0 %v278, 44
        %v1381 = vpop.permute.xlu0 %1380
        %1382 = vrot.lane.b32.xlu0 %v279, 44
        %v1383 = vpop.permute.xlu0 %1382
        %1384 = vrot.lane.b32.xlu0 %v280, 44
        %v1385 = vpop.permute.xlu0 %1384
        %1386 = vrot.lane.b32.xlu0 %v281, 44
        %v1387 = vpop.permute.xlu0 %1386
        %1388 = vrot.lane.b32.xlu0 %v282, 44
        %v1389 = vpop.permute.xlu0 %1388
        %1390 = vrot.lane.b32.xlu0 %v283, 44
        %v1391 = vpop.permute.xlu0 %1390
        %1392 = vrot.lane.b32.xlu0 %v284, 44
        %v1393 = vpop.permute.xlu0 %1392
        %1394 = vrot.lane.b32.xlu0 %v285, 44
        %v1395 = vpop.permute.xlu0 %1394
        %1396 = vrot.lane.b32.xlu0 %v286, 44
        %v1397 = vpop.permute.xlu0 %1396
        %1398 = vrot.lane.b32.xlu0 %v287, 44
        %v1399 = vpop.permute.xlu0 %1398
        %1400 = vrot.lane.b32.xlu0 %v288, 44
        %v1401 = vpop.permute.xlu0 %1400
        %1402 = vrot.lane.b32.xlu0 %v289, 44
        %v1403 = vpop.permute.xlu0 %1402
        %1404 = vrot.lane.b32.xlu0 %v290, 44
        %v1405 = vpop.permute.xlu0 %1404
        %1406 = vrot.lane.b32.xlu0 %v291, 44
        %v1407 = vpop.permute.xlu0 %1406
        %1408 = vrot.lane.b32.xlu0 %v292, 44
        %v1409 = vpop.permute.xlu0 %1408
        %1410 = vrot.lane.b32.xlu0 %v293, 44
        %v1411 = vpop.permute.xlu0 %1410
        %1412 = vrot.lane.b32.xlu0 %v294, 44
        %v1413 = vpop.permute.xlu0 %1412
        %1414 = vrot.lane.b32.xlu0 %v295, 44
        %v1415 = vpop.permute.xlu0 %1414
        %1416 = vrot.lane.b32.xlu0 %v296, 44
        %v1417 = vpop.permute.xlu0 %1416
        %1418 = vrot.lane.b32.xlu0 %v297, 44
        %v1419 = vpop.permute.xlu0 %1418
        %1420 = vrot.lane.b32.xlu0 %v298, 44
        %v1421 = vpop.permute.xlu0 %1420
        %1422 = vrot.lane.b32.xlu0 %v299, 44
        %v1423 = vpop.permute.xlu0 %1422
        %1424 = vrot.lane.b32.xlu0 %v300, 44
        %v1425 = vpop.permute.xlu0 %1424
        %1426 = vrot.lane.b32.xlu0 %v301, 44
        %v1427 = vpop.permute.xlu0 %1426
        %1428 = vrot.lane.b32.xlu0 %v302, 44
        %v1429 = vpop.permute.xlu0 %1428
        %vm1455 = vcmask 392547
        %1456 = vst.msk [vmem:[#allocation2 - $0x3] sm:$0xf8] %vm1455, %v1381
        %vm1457 = vcmask 392544
        %1458 = vst.msk [vmem:[#allocation2 + $0x5] sm:$0xff] %vm1457, %v1383
        %1459 = vst.msk [vmem:[#allocation2 + $0xd] sm:$0xff] %vm1457, %v1385
        %1460 = vst.msk [vmem:[#allocation2 + $0x15] sm:$0xff] %vm1457, %v1387
        %1461 = vst.msk [vmem:[#allocation2 + $0x1d] sm:$0xff] %vm1457, %v1389
        %1462 = vst.msk [vmem:[#allocation2 + $0x25] sm:$0xff] %vm1457, %v1391
        %1463 = vst.msk [vmem:[#allocation2 + $0x2d] sm:$0xff] %vm1457, %v1393
        %1464 = vst.msk [vmem:[#allocation2 + $0x35] sm:$0xff] %vm1457, %v1395
        %1465 = vst.msk [vmem:[#allocation2 + $0x3d] sm:$0xff] %vm1457, %v1397
        %1466 = vst.msk [vmem:[#allocation2 + $0x45] sm:$0xff] %vm1457, %v1399
        %1467 = vst.msk [vmem:[#allocation2 + $0x4d] sm:$0xff] %vm1457, %v1401
        %1468 = vst.msk [vmem:[#allocation2 + $0x55] sm:$0xff] %vm1457, %v1403
        %1469 = vst.msk [vmem:[#allocation2 + $0x5d] sm:$0xff] %vm1457, %v1405
        %1470 = vst.msk [vmem:[#allocation2 + $0x65] sm:$0xff] %vm1457, %v1407
        %1471 = vst.msk [vmem:[#allocation2 + $0x6d] sm:$0xff] %vm1457, %v1409
        %1472 = vst.msk [vmem:[#allocation2 + $0x75] sm:$0xff] %vm1457, %v1411
        %1473 = vst.msk [vmem:[#allocation2 + $0x7d] sm:$0xff] %vm1457, %v1413
        %1474 = vst.msk [vmem:[#allocation2 + $0x85] sm:$0xff] %vm1457, %v1415
        %1475 = vst.msk [vmem:[#allocation2 + $0x8d] sm:$0xff] %vm1457, %v1417
        %1476 = vst.msk [vmem:[#allocation2 + $0x95] sm:$0xff] %vm1457, %v1419
        %1477 = vst.msk [vmem:[#allocation2 + $0x9d] sm:$0xff] %vm1457, %v1421
        %1478 = vst.msk [vmem:[#allocation2 + $0xa5] sm:$0xff] %vm1457, %v1423
        %1479 = vst.msk [vmem:[#allocation2 + $0xad] sm:$0xff] %vm1457, %v1425
        %1480 = vst.msk [vmem:[#allocation2 + $0xb5] sm:$0xff] %vm1457, %v1427
        %vm1481 = vcmask 387424
        %1482 = vst.msk [vmem:[#allocation2 + $0xbd] sm:$0x7] %vm1481, %v1429
        %1483 = vrot.lane.b32.xlu0 %v278, 48
        %v1484 = vpop.permute.xlu0 %1483
        %1485 = vrot.lane.b32.xlu0 %v279, 48
        %v1486 = vpop.permute.xlu0 %1485
        %1487 = vrot.lane.b32.xlu0 %v280, 48
        %v1488 = vpop.permute.xlu0 %1487
        %1489 = vrot.lane.b32.xlu0 %v281, 48
        %v1490 = vpop.permute.xlu0 %1489
        %1491 = vrot.lane.b32.xlu0 %v282, 48
        %v1492 = vpop.permute.xlu0 %1491
        %1493 = vrot.lane.b32.xlu0 %v283, 48
        %v1494 = vpop.permute.xlu0 %1493
        %1495 = vrot.lane.b32.xlu0 %v284, 48
        %v1496 = vpop.permute.xlu0 %1495
        %1497 = vrot.lane.b32.xlu0 %v285, 48
        %v1498 = vpop.permute.xlu0 %1497
        %1499 = vrot.lane.b32.xlu0 %v286, 48
        %v1500 = vpop.permute.xlu0 %1499
        %1501 = vrot.lane.b32.xlu0 %v287, 48
        %v1502 = vpop.permute.xlu0 %1501
        %1503 = vrot.lane.b32.xlu0 %v288, 48
        %v1504 = vpop.permute.xlu0 %1503
        %1505 = vrot.lane.b32.xlu0 %v289, 48
        %v1506 = vpop.permute.xlu0 %1505
        %1507 = vrot.lane.b32.xlu0 %v290, 48
        %v1508 = vpop.permute.xlu0 %1507
        %1509 = vrot.lane.b32.xlu0 %v291, 48
        %v1510 = vpop.permute.xlu0 %1509
        %1511 = vrot.lane.b32.xlu0 %v292, 48
        %v1512 = vpop.permute.xlu0 %1511
        %1513 = vrot.lane.b32.xlu0 %v293, 48
        %v1514 = vpop.permute.xlu0 %1513
        %1515 = vrot.lane.b32.xlu0 %v294, 48
        %v1516 = vpop.permute.xlu0 %1515
        %1517 = vrot.lane.b32.xlu0 %v295, 48
        %v1518 = vpop.permute.xlu0 %1517
        %1519 = vrot.lane.b32.xlu0 %v296, 48
        %v1520 = vpop.permute.xlu0 %1519
        %1521 = vrot.lane.b32.xlu0 %v297, 48
        %v1522 = vpop.permute.xlu0 %1521
        %1523 = vrot.lane.b32.xlu0 %v298, 48
        %v1524 = vpop.permute.xlu0 %1523
        %1525 = vrot.lane.b32.xlu0 %v299, 48
        %v1526 = vpop.permute.xlu0 %1525
        %1527 = vrot.lane.b32.xlu0 %v300, 48
        %v1528 = vpop.permute.xlu0 %1527
        %1529 = vrot.lane.b32.xlu0 %v301, 48
        %v1530 = vpop.permute.xlu0 %1529
        %1531 = vrot.lane.b32.xlu0 %v302, 48
        %v1532 = vpop.permute.xlu0 %1531
        %vm1558 = vcmask 425348
        %1559 = vst.msk [vmem:[#allocation2 - $0x4] sm:$0xf0] %vm1558, %v1484
        %vm1560 = vcmask 425344
        %1561 = vst.msk [vmem:[#allocation2 + $0x4] sm:$0xff] %vm1560, %v1486
        %1562 = vst.msk [vmem:[#allocation2 + $0xc] sm:$0xff] %vm1560, %v1488
        %1563 = vst.msk [vmem:[#allocation2 + $0x14] sm:$0xff] %vm1560, %v1490
        %1564 = vst.msk [vmem:[#allocation2 + $0x1c] sm:$0xff] %vm1560, %v1492
        %1565 = vst.msk [vmem:[#allocation2 + $0x24] sm:$0xff] %vm1560, %v1494
        %1566 = vst.msk [vmem:[#allocation2 + $0x2c] sm:$0xff] %vm1560, %v1496
        %1567 = vst.msk [vmem:[#allocation2 + $0x34] sm:$0xff] %vm1560, %v1498
        %1568 = vst.msk [vmem:[#allocation2 + $0x3c] sm:$0xff] %vm1560, %v1500
        %1569 = vst.msk [vmem:[#allocation2 + $0x44] sm:$0xff] %vm1560, %v1502
        %1570 = vst.msk [vmem:[#allocation2 + $0x4c] sm:$0xff] %vm1560, %v1504
        %1571 = vst.msk [vmem:[#allocation2 + $0x54] sm:$0xff] %vm1560, %v1506
        %1572 = vst.msk [vmem:[#allocation2 + $0x5c] sm:$0xff] %vm1560, %v1508
        %1573 = vst.msk [vmem:[#allocation2 + $0x64] sm:$0xff] %vm1560, %v1510
        %1574 = vst.msk [vmem:[#allocation2 + $0x6c] sm:$0xff] %vm1560, %v1512
        %1575 = vst.msk [vmem:[#allocation2 + $0x74] sm:$0xff] %vm1560, %v1514
        %1576 = vst.msk [vmem:[#allocation2 + $0x7c] sm:$0xff] %vm1560, %v1516
        %1577 = vst.msk [vmem:[#allocation2 + $0x84] sm:$0xff] %vm1560, %v1518
        %1578 = vst.msk [vmem:[#allocation2 + $0x8c] sm:$0xff] %vm1560, %v1520
        %1579 = vst.msk [vmem:[#allocation2 + $0x94] sm:$0xff] %vm1560, %v1522
        %1580 = vst.msk [vmem:[#allocation2 + $0x9c] sm:$0xff] %vm1560, %v1524
        %1581 = vst.msk [vmem:[#allocation2 + $0xa4] sm:$0xff] %vm1560, %v1526
        %1582 = vst.msk [vmem:[#allocation2 + $0xac] sm:$0xff] %vm1560, %v1528
        %1583 = vst.msk [vmem:[#allocation2 + $0xb4] sm:$0xff] %vm1560, %v1530
        %vm1584 = vcmask 421248
        %1585 = vst.msk [vmem:[#allocation2 + $0xbc] sm:$0xf] %vm1584, %v1532
        %1586 = vrot.lane.b32.xlu0 %v278, 52
        %v1587 = vpop.permute.xlu0 %1586
        %1588 = vrot.lane.b32.xlu0 %v279, 52
        %v1589 = vpop.permute.xlu0 %1588
        %1590 = vrot.lane.b32.xlu0 %v280, 52
        %v1591 = vpop.permute.xlu0 %1590
        %1592 = vrot.lane.b32.xlu0 %v281, 52
        %v1593 = vpop.permute.xlu0 %1592
        %1594 = vrot.lane.b32.xlu0 %v282, 52
        %v1595 = vpop.permute.xlu0 %1594
        %1596 = vrot.lane.b32.xlu0 %v283, 52
        %v1597 = vpop.permute.xlu0 %1596
        %1598 = vrot.lane.b32.xlu0 %v284, 52
        %v1599 = vpop.permute.xlu0 %1598
        %1600 = vrot.lane.b32.xlu0 %v285, 52
        %v1601 = vpop.permute.xlu0 %1600
        %1602 = vrot.lane.b32.xlu0 %v286, 52
        %v1603 = vpop.permute.xlu0 %1602
        %1604 = vrot.lane.b32.xlu0 %v287, 52
        %v1605 = vpop.permute.xlu0 %1604
        %1606 = vrot.lane.b32.xlu0 %v288, 52
        %v1607 = vpop.permute.xlu0 %1606
        %1608 = vrot.lane.b32.xlu0 %v289, 52
        %v1609 = vpop.permute.xlu0 %1608
        %1610 = vrot.lane.b32.xlu0 %v290, 52
        %v1611 = vpop.permute.xlu0 %1610
        %1612 = vrot.lane.b32.xlu0 %v291, 52
        %v1613 = vpop.permute.xlu0 %1612
        %1614 = vrot.lane.b32.xlu0 %v292, 52
        %v1615 = vpop.permute.xlu0 %1614
        %1616 = vrot.lane.b32.xlu0 %v293, 52
        %v1617 = vpop.permute.xlu0 %1616
        %1618 = vrot.lane.b32.xlu0 %v294, 52
        %v1619 = vpop.permute.xlu0 %1618
        %1620 = vrot.lane.b32.xlu0 %v295, 52
        %v1621 = vpop.permute.xlu0 %1620
        %1622 = vrot.lane.b32.xlu0 %v296, 52
        %v1623 = vpop.permute.xlu0 %1622
        %1624 = vrot.lane.b32.xlu0 %v297, 52
        %v1625 = vpop.permute.xlu0 %1624
        %1626 = vrot.lane.b32.xlu0 %v298, 52
        %v1627 = vpop.permute.xlu0 %1626
        %1628 = vrot.lane.b32.xlu0 %v299, 52
        %v1629 = vpop.permute.xlu0 %1628
        %1630 = vrot.lane.b32.xlu0 %v300, 52
        %v1631 = vpop.permute.xlu0 %1630
        %1632 = vrot.lane.b32.xlu0 %v301, 52
        %v1633 = vpop.permute.xlu0 %1632
        %1634 = vrot.lane.b32.xlu0 %v302, 52
        %v1635 = vpop.permute.xlu0 %1634
        %vm1661 = vcmask 458149
        %1662 = vst.msk [vmem:[#allocation2 - $0x5] sm:$0xe0] %vm1661, %v1587
        %vm1663 = vcmask 458144
        %1664 = vst.msk [vmem:[#allocation2 + $0x3] sm:$0xff] %vm1663, %v1589
        %1665 = vst.msk [vmem:[#allocation2 + $0xb] sm:$0xff] %vm1663, %v1591
        %1666 = vst.msk [vmem:[#allocation2 + $0x13] sm:$0xff] %vm1663, %v1593
        %1667 = vst.msk [vmem:[#allocation2 + $0x1b] sm:$0xff] %vm1663, %v1595
        %1668 = vst.msk [vmem:[#allocation2 + $0x23] sm:$0xff] %vm1663, %v1597
        %1669 = vst.msk [vmem:[#allocation2 + $0x2b] sm:$0xff] %vm1663, %v1599
        %1670 = vst.msk [vmem:[#allocation2 + $0x33] sm:$0xff] %vm1663, %v1601
        %1671 = vst.msk [vmem:[#allocation2 + $0x3b] sm:$0xff] %vm1663, %v1603
        %1672 = vst.msk [vmem:[#allocation2 + $0x43] sm:$0xff] %vm1663, %v1605
        %1673 = vst.msk [vmem:[#allocation2 + $0x4b] sm:$0xff] %vm1663, %v1607
        %1674 = vst.msk [vmem:[#allocation2 + $0x53] sm:$0xff] %vm1663, %v1609
        %1675 = vst.msk [vmem:[#allocation2 + $0x5b] sm:$0xff] %vm1663, %v1611
        %1676 = vst.msk [vmem:[#allocation2 + $0x63] sm:$0xff] %vm1663, %v1613
        %1677 = vst.msk [vmem:[#allocation2 + $0x6b] sm:$0xff] %vm1663, %v1615
        %1678 = vst.msk [vmem:[#allocation2 + $0x73] sm:$0xff] %vm1663, %v1617
        %1679 = vst.msk [vmem:[#allocation2 + $0x7b] sm:$0xff] %vm1663, %v1619
        %1680 = vst.msk [vmem:[#allocation2 + $0x83] sm:$0xff] %vm1663, %v1621
        %1681 = vst.msk [vmem:[#allocation2 + $0x8b] sm:$0xff] %vm1663, %v1623
        %1682 = vst.msk [vmem:[#allocation2 + $0x93] sm:$0xff] %vm1663, %v1625
        %1683 = vst.msk [vmem:[#allocation2 + $0x9b] sm:$0xff] %vm1663, %v1627
        %1684 = vst.msk [vmem:[#allocation2 + $0xa3] sm:$0xff] %vm1663, %v1629
        %1685 = vst.msk [vmem:[#allocation2 + $0xab] sm:$0xff] %vm1663, %v1631
        %1686 = vst.msk [vmem:[#allocation2 + $0xb3] sm:$0xff] %vm1663, %v1633
        %vm1687 = vcmask 455072
        %1688 = vst.msk [vmem:[#allocation2 + $0xbb] sm:$0x1f] %vm1687, %v1635
        %1689 = vrot.lane.b32.xlu0 %v278, 56
        %v1690 = vpop.permute.xlu0 %1689
        %1691 = vrot.lane.b32.xlu0 %v279, 56
        %v1692 = vpop.permute.xlu0 %1691
        %1693 = vrot.lane.b32.xlu0 %v280, 56
        %v1694 = vpop.permute.xlu0 %1693
        %1695 = vrot.lane.b32.xlu0 %v281, 56
        %v1696 = vpop.permute.xlu0 %1695
        %1697 = vrot.lane.b32.xlu0 %v282, 56
        %v1698 = vpop.permute.xlu0 %1697
        %1699 = vrot.lane.b32.xlu0 %v283, 56
        %v1700 = vpop.permute.xlu0 %1699
        %1701 = vrot.lane.b32.xlu0 %v284, 56
        %v1702 = vpop.permute.xlu0 %1701
        %1703 = vrot.lane.b32.xlu0 %v285, 56
        %v1704 = vpop.permute.xlu0 %1703
        %1705 = vrot.lane.b32.xlu0 %v286, 56
        %v1706 = vpop.permute.xlu0 %1705
        %1707 = vrot.lane.b32.xlu0 %v287, 56
        %v1708 = vpop.permute.xlu0 %1707
        %1709 = vrot.lane.b32.xlu0 %v288, 56
        %v1710 = vpop.permute.xlu0 %1709
        %1711 = vrot.lane.b32.xlu0 %v289, 56
        %v1712 = vpop.permute.xlu0 %1711
        %1713 = vrot.lane.b32.xlu0 %v290, 56
        %v1714 = vpop.permute.xlu0 %1713
        %1715 = vrot.lane.b32.xlu0 %v291, 56
        %v1716 = vpop.permute.xlu0 %1715
        %1717 = vrot.lane.b32.xlu0 %v292, 56
        %v1718 = vpop.permute.xlu0 %1717
        %1719 = vrot.lane.b32.xlu0 %v293, 56
        %v1720 = vpop.permute.xlu0 %1719
        %1721 = vrot.lane.b32.xlu0 %v294, 56
        %v1722 = vpop.permute.xlu0 %1721
        %1723 = vrot.lane.b32.xlu0 %v295, 56
        %v1724 = vpop.permute.xlu0 %1723
        %1725 = vrot.lane.b32.xlu0 %v296, 56
        %v1726 = vpop.permute.xlu0 %1725
        %1727 = vrot.lane.b32.xlu0 %v297, 56
        %v1728 = vpop.permute.xlu0 %1727
        %1729 = vrot.lane.b32.xlu0 %v298, 56
        %v1730 = vpop.permute.xlu0 %1729
        %1731 = vrot.lane.b32.xlu0 %v299, 56
        %v1732 = vpop.permute.xlu0 %1731
        %1733 = vrot.lane.b32.xlu0 %v300, 56
        %v1734 = vpop.permute.xlu0 %1733
        %1735 = vrot.lane.b32.xlu0 %v301, 56
        %v1736 = vpop.permute.xlu0 %1735
        %1737 = vrot.lane.b32.xlu0 %v302, 56
        %v1738 = vpop.permute.xlu0 %1737
        %vm1764 = vcmask 490950
        %1765 = vst.msk [vmem:[#allocation2 - $0x6] sm:$0xc0] %vm1764, %v1690
        %vm1766 = vcmask 490944
        %1767 = vst.msk [vmem:[#allocation2 + $0x2] sm:$0xff] %vm1766, %v1692
        %1768 = vst.msk [vmem:[#allocation2 + $0xa] sm:$0xff] %vm1766, %v1694
        %1769 = vst.msk [vmem:[#allocation2 + $0x12] sm:$0xff] %vm1766, %v1696
        %1770 = vst.msk [vmem:[#allocation2 + $0x1a] sm:$0xff] %vm1766, %v1698
        %1771 = vst.msk [vmem:[#allocation2 + $0x22] sm:$0xff] %vm1766, %v1700
        %1772 = vst.msk [vmem:[#allocation2 + $0x2a] sm:$0xff] %vm1766, %v1702
        %1773 = vst.msk [vmem:[#allocation2 + $0x32] sm:$0xff] %vm1766, %v1704
        %1774 = vst.msk [vmem:[#allocation2 + $0x3a] sm:$0xff] %vm1766, %v1706
        %1775 = vst.msk [vmem:[#allocation2 + $0x42] sm:$0xff] %vm1766, %v1708
        %1776 = vst.msk [vmem:[#allocation2 + $0x4a] sm:$0xff] %vm1766, %v1710
        %1777 = vst.msk [vmem:[#allocation2 + $0x52] sm:$0xff] %vm1766, %v1712
        %1778 = vst.msk [vmem:[#allocation2 + $0x5a] sm:$0xff] %vm1766, %v1714
        %1779 = vst.msk [vmem:[#allocation2 + $0x62] sm:$0xff] %vm1766, %v1716
        %1780 = vst.msk [vmem:[#allocation2 + $0x6a] sm:$0xff] %vm1766, %v1718
        %1781 = vst.msk [vmem:[#allocation2 + $0x72] sm:$0xff] %vm1766, %v1720
        %1782 = vst.msk [vmem:[#allocation2 + $0x7a] sm:$0xff] %vm1766, %v1722
        %1783 = vst.msk [vmem:[#allocation2 + $0x82] sm:$0xff] %vm1766, %v1724
        %1784 = vst.msk [vmem:[#allocation2 + $0x8a] sm:$0xff] %vm1766, %v1726
        %1785 = vst.msk [vmem:[#allocation2 + $0x92] sm:$0xff] %vm1766, %v1728
        %1786 = vst.msk [vmem:[#allocation2 + $0x9a] sm:$0xff] %vm1766, %v1730
        %1787 = vst.msk [vmem:[#allocation2 + $0xa2] sm:$0xff] %vm1766, %v1732
        %1788 = vst.msk [vmem:[#allocation2 + $0xaa] sm:$0xff] %vm1766, %v1734
        %1789 = vst.msk [vmem:[#allocation2 + $0xb2] sm:$0xff] %vm1766, %v1736
        %vm1790 = vcmask 488896
        %1791 = vst.msk [vmem:[#allocation2 + $0xba] sm:$0x3f] %vm1790, %v1738
        %1792 = vrot.lane.b32.xlu0 %v278, 60
        %v1793 = vpop.permute.xlu0 %1792
        %1794 = vrot.lane.b32.xlu0 %v279, 60
        %v1795 = vpop.permute.xlu0 %1794
        %1796 = vrot.lane.b32.xlu0 %v280, 60
        %v1797 = vpop.permute.xlu0 %1796
        %1798 = vrot.lane.b32.xlu0 %v281, 60
        %v1799 = vpop.permute.xlu0 %1798
        %1800 = vrot.lane.b32.xlu0 %v282, 60
        %v1801 = vpop.permute.xlu0 %1800
        %1802 = vrot.lane.b32.xlu0 %v283, 60
        %v1803 = vpop.permute.xlu0 %1802
        %1804 = vrot.lane.b32.xlu0 %v284, 60
        %v1805 = vpop.permute.xlu0 %1804
        %1806 = vrot.lane.b32.xlu0 %v285, 60
        %v1807 = vpop.permute.xlu0 %1806
        %1808 = vrot.lane.b32.xlu0 %v286, 60
        %v1809 = vpop.permute.xlu0 %1808
        %1810 = vrot.lane.b32.xlu0 %v287, 60
        %v1811 = vpop.permute.xlu0 %1810
        %1812 = vrot.lane.b32.xlu0 %v288, 60
        %v1813 = vpop.permute.xlu0 %1812
        %1814 = vrot.lane.b32.xlu0 %v289, 60
        %v1815 = vpop.permute.xlu0 %1814
        %1816 = vrot.lane.b32.xlu0 %v290, 60
        %v1817 = vpop.permute.xlu0 %1816
        %1818 = vrot.lane.b32.xlu0 %v291, 60
        %v1819 = vpop.permute.xlu0 %1818
        %1820 = vrot.lane.b32.xlu0 %v292, 60
        %v1821 = vpop.permute.xlu0 %1820
        %1822 = vrot.lane.b32.xlu0 %v293, 60
        %v1823 = vpop.permute.xlu0 %1822
        %1824 = vrot.lane.b32.xlu0 %v294, 60
        %v1825 = vpop.permute.xlu0 %1824
        %1826 = vrot.lane.b32.xlu0 %v295, 60
        %v1827 = vpop.permute.xlu0 %1826
        %1828 = vrot.lane.b32.xlu0 %v296, 60
        %v1829 = vpop.permute.xlu0 %1828
        %1830 = vrot.lane.b32.xlu0 %v297, 60
        %v1831 = vpop.permute.xlu0 %1830
        %1832 = vrot.lane.b32.xlu0 %v298, 60
        %v1833 = vpop.permute.xlu0 %1832
        %1834 = vrot.lane.b32.xlu0 %v299, 60
        %v1835 = vpop.permute.xlu0 %1834
        %1836 = vrot.lane.b32.xlu0 %v300, 60
        %v1837 = vpop.permute.xlu0 %1836
        %1838 = vrot.lane.b32.xlu0 %v301, 60
        %v1839 = vpop.permute.xlu0 %1838
        %1840 = vrot.lane.b32.xlu0 %v302, 60
        %v1841 = vpop.permute.xlu0 %1840
        %vm1867 = vcmask 523751
        %1868 = vst.msk [vmem:[#allocation2 - $0x7] sm:$0x80] %vm1867, %v1793
        %vm1869 = vcmask 523744
        %1870 = vst.msk [vmem:[#allocation2 + $0x1] sm:$0xff] %vm1869, %v1795
        %1871 = vst.msk [vmem:[#allocation2 + $0x9] sm:$0xff] %vm1869, %v1797
        %1872 = vst.msk [vmem:[#allocation2 + $0x11] sm:$0xff] %vm1869, %v1799
        %1873 = vst.msk [vmem:[#allocation2 + $0x19] sm:$0xff] %vm1869, %v1801
        %1874 = vst.msk [vmem:[#allocation2 + $0x21] sm:$0xff] %vm1869, %v1803
        %1875 = vst.msk [vmem:[#allocation2 + $0x29] sm:$0xff] %vm1869, %v1805
        %1876 = vst.msk [vmem:[#allocation2 + $0x31] sm:$0xff] %vm1869, %v1807
        %1877 = vst.msk [vmem:[#allocation2 + $0x39] sm:$0xff] %vm1869, %v1809
        %1878 = vst.msk [vmem:[#allocation2 + $0x41] sm:$0xff] %vm1869, %v1811
        %1879 = vst.msk [vmem:[#allocation2 + $0x49] sm:$0xff] %vm1869, %v1813
        %1880 = vst.msk [vmem:[#allocation2 + $0x51] sm:$0xff] %vm1869, %v1815
        %1881 = vst.msk [vmem:[#allocation2 + $0x59] sm:$0xff] %vm1869, %v1817
        %1882 = vst.msk [vmem:[#allocation2 + $0x61] sm:$0xff] %vm1869, %v1819
        %1883 = vst.msk [vmem:[#allocation2 + $0x69] sm:$0xff] %vm1869, %v1821
        %1884 = vst.msk [vmem:[#allocation2 + $0x71] sm:$0xff] %vm1869, %v1823
        %1885 = vst.msk [vmem:[#allocation2 + $0x79] sm:$0xff] %vm1869, %v1825
        %1886 = vst.msk [vmem:[#allocation2 + $0x81] sm:$0xff] %vm1869, %v1827
        %1887 = vst.msk [vmem:[#allocation2 + $0x89] sm:$0xff] %vm1869, %v1829
        %1888 = vst.msk [vmem:[#allocation2 + $0x91] sm:$0xff] %vm1869, %v1831
        %1889 = vst.msk [vmem:[#allocation2 + $0x99] sm:$0xff] %vm1869, %v1833
        %1890 = vst.msk [vmem:[#allocation2 + $0xa1] sm:$0xff] %vm1869, %v1835
        %1891 = vst.msk [vmem:[#allocation2 + $0xa9] sm:$0xff] %vm1869, %v1837
        %1892 = vst.msk [vmem:[#allocation2 + $0xb1] sm:$0xff] %vm1869, %v1839
        %vm1893 = vcmask 522720
        %1894 = vst.msk [vmem:[#allocation2 + $0xb9] sm:$0x7f] %vm1893, %v1841
        %1895 = vrot.lane.b32.xlu0 %v279, 64
        %v1896 = vpop.permute.xlu0 %1895
        %1897 = vrot.lane.b32.xlu0 %v280, 64
        %v1898 = vpop.permute.xlu0 %1897
        %1899 = vrot.lane.b32.xlu0 %v281, 64
        %v1900 = vpop.permute.xlu0 %1899
        %1901 = vrot.lane.b32.xlu0 %v282, 64
        %v1902 = vpop.permute.xlu0 %1901
        %1903 = vrot.lane.b32.xlu0 %v283, 64
        %v1904 = vpop.permute.xlu0 %1903
        %1905 = vrot.lane.b32.xlu0 %v284, 64
        %v1906 = vpop.permute.xlu0 %1905
        %1907 = vrot.lane.b32.xlu0 %v285, 64
        %v1908 = vpop.permute.xlu0 %1907
        %1909 = vrot.lane.b32.xlu0 %v286, 64
        %v1910 = vpop.permute.xlu0 %1909
        %1911 = vrot.lane.b32.xlu0 %v287, 64
        %v1912 = vpop.permute.xlu0 %1911
        %1913 = vrot.lane.b32.xlu0 %v288, 64
        %v1914 = vpop.permute.xlu0 %1913
        %1915 = vrot.lane.b32.xlu0 %v289, 64
        %v1916 = vpop.permute.xlu0 %1915
        %1917 = vrot.lane.b32.xlu0 %v290, 64
        %v1918 = vpop.permute.xlu0 %1917
        %1919 = vrot.lane.b32.xlu0 %v291, 64
        %v1920 = vpop.permute.xlu0 %1919
        %1921 = vrot.lane.b32.xlu0 %v292, 64
        %v1922 = vpop.permute.xlu0 %1921
        %1923 = vrot.lane.b32.xlu0 %v293, 64
        %v1924 = vpop.permute.xlu0 %1923
        %1925 = vrot.lane.b32.xlu0 %v294, 64
        %v1926 = vpop.permute.xlu0 %1925
        %1927 = vrot.lane.b32.xlu0 %v295, 64
        %v1928 = vpop.permute.xlu0 %1927
        %1929 = vrot.lane.b32.xlu0 %v296, 64
        %v1930 = vpop.permute.xlu0 %1929
        %1931 = vrot.lane.b32.xlu0 %v297, 64
        %v1932 = vpop.permute.xlu0 %1931
        %1933 = vrot.lane.b32.xlu0 %v298, 64
        %v1934 = vpop.permute.xlu0 %1933
        %1935 = vrot.lane.b32.xlu0 %v299, 64
        %v1936 = vpop.permute.xlu0 %1935
        %1937 = vrot.lane.b32.xlu0 %v300, 64
        %v1938 = vpop.permute.xlu0 %1937
        %1939 = vrot.lane.b32.xlu0 %v301, 64
        %v1940 = vpop.permute.xlu0 %1939
        %1941 = vrot.lane.b32.xlu0 %v302, 64
        %v1942 = vpop.permute.xlu0 %1941
        %vm1967 = vcmask 556544
        %1968 = vst.msk [vmem:[#allocation2] sm:$0xff] %vm1967, %v1896
        %1969 = vst.msk [vmem:[#allocation2 + $0x8] sm:$0xff] %vm1967, %v1898
        %1970 = vst.msk [vmem:[#allocation2 + $0x10] sm:$0xff] %vm1967, %v1900
        %1971 = vst.msk [vmem:[#allocation2 + $0x18] sm:$0xff] %vm1967, %v1902
        %1972 = vst.msk [vmem:[#allocation2 + $0x20] sm:$0xff] %vm1967, %v1904
        %1973 = vst.msk [vmem:[#allocation2 + $0x28] sm:$0xff] %vm1967, %v1906
        %1974 = vst.msk [vmem:[#allocation2 + $0x30] sm:$0xff] %vm1967, %v1908
        %1975 = vst.msk [vmem:[#allocation2 + $0x38] sm:$0xff] %vm1967, %v1910
        %1976 = vst.msk [vmem:[#allocation2 + $0x40] sm:$0xff] %vm1967, %v1912
        %1977 = vst.msk [vmem:[#allocation2 + $0x48] sm:$0xff] %vm1967, %v1914
        %1978 = vst.msk [vmem:[#allocation2 + $0x50] sm:$0xff] %vm1967, %v1916
        %1979 = vst.msk [vmem:[#allocation2 + $0x58] sm:$0xff] %vm1967, %v1918
        %1980 = vst.msk [vmem:[#allocation2 + $0x60] sm:$0xff] %vm1967, %v1920
        %1981 = vst.msk [vmem:[#allocation2 + $0x68] sm:$0xff] %vm1967, %v1922
        %1982 = vst.msk [vmem:[#allocation2 + $0x70] sm:$0xff] %vm1967, %v1924
        %1983 = vst.msk [vmem:[#allocation2 + $0x78] sm:$0xff] %vm1967, %v1926
        %1984 = vst.msk [vmem:[#allocation2 + $0x80] sm:$0xff] %vm1967, %v1928
        %1985 = vst.msk [vmem:[#allocation2 + $0x88] sm:$0xff] %vm1967, %v1930
        %1986 = vst.msk [vmem:[#allocation2 + $0x90] sm:$0xff] %vm1967, %v1932
        %1987 = vst.msk [vmem:[#allocation2 + $0x98] sm:$0xff] %vm1967, %v1934
        %1988 = vst.msk [vmem:[#allocation2 + $0xa0] sm:$0xff] %vm1967, %v1936
        %1989 = vst.msk [vmem:[#allocation2 + $0xa8] sm:$0xff] %vm1967, %v1938
        %1990 = vst.msk [vmem:[#allocation2 + $0xb0] sm:$0xff] %vm1967, %v1940
        %1991 = vst.msk [vmem:[#allocation2 + $0xb8] sm:$0xff] %vm1967, %v1942
        %1993 = vrot.lane.b32.xlu0 %v279, 68
        %v1994 = vpop.permute.xlu0 %1993
        %1995 = vrot.lane.b32.xlu0 %v280, 68
        %v1996 = vpop.permute.xlu0 %1995
        %1997 = vrot.lane.b32.xlu0 %v281, 68
        %v1998 = vpop.permute.xlu0 %1997
        %1999 = vrot.lane.b32.xlu0 %v282, 68
        %v2000 = vpop.permute.xlu0 %1999
        %2001 = vrot.lane.b32.xlu0 %v283, 68
        %v2002 = vpop.permute.xlu0 %2001
        %2003 = vrot.lane.b32.xlu0 %v284, 68
        %v2004 = vpop.permute.xlu0 %2003
        %2005 = vrot.lane.b32.xlu0 %v285, 68
        %v2006 = vpop.permute.xlu0 %2005
        %2007 = vrot.lane.b32.xlu0 %v286, 68
        %v2008 = vpop.permute.xlu0 %2007
        %2009 = vrot.lane.b32.xlu0 %v287, 68
        %v2010 = vpop.permute.xlu0 %2009
        %2011 = vrot.lane.b32.xlu0 %v288, 68
        %v2012 = vpop.permute.xlu0 %2011
        %2013 = vrot.lane.b32.xlu0 %v289, 68
        %v2014 = vpop.permute.xlu0 %2013
        %2015 = vrot.lane.b32.xlu0 %v290, 68
        %v2016 = vpop.permute.xlu0 %2015
        %2017 = vrot.lane.b32.xlu0 %v291, 68
        %v2018 = vpop.permute.xlu0 %2017
        %2019 = vrot.lane.b32.xlu0 %v292, 68
        %v2020 = vpop.permute.xlu0 %2019
        %2021 = vrot.lane.b32.xlu0 %v293, 68
        %v2022 = vpop.permute.xlu0 %2021
        %2023 = vrot.lane.b32.xlu0 %v294, 68
        %v2024 = vpop.permute.xlu0 %2023
        %2025 = vrot.lane.b32.xlu0 %v295, 68
        %v2026 = vpop.permute.xlu0 %2025
        %2027 = vrot.lane.b32.xlu0 %v296, 68
        %v2028 = vpop.permute.xlu0 %2027
        %2029 = vrot.lane.b32.xlu0 %v297, 68
        %v2030 = vpop.permute.xlu0 %2029
        %2031 = vrot.lane.b32.xlu0 %v298, 68
        %v2032 = vpop.permute.xlu0 %2031
        %2033 = vrot.lane.b32.xlu0 %v299, 68
        %v2034 = vpop.permute.xlu0 %2033
        %2035 = vrot.lane.b32.xlu0 %v300, 68
        %v2036 = vpop.permute.xlu0 %2035
        %2037 = vrot.lane.b32.xlu0 %v301, 68
        %v2038 = vpop.permute.xlu0 %2037
        %2039 = vrot.lane.b32.xlu0 %v302, 68
        %v2040 = vpop.permute.xlu0 %2039
        %2041 = vrot.lane.b32.xlu0 %v303, 68
        %v2042 = vpop.permute.xlu0 %2041
        %vm2068 = vcmask 589345
        %2069 = vst.msk [vmem:[#allocation2 - $0x1] sm:$0xfe] %vm2068, %v1994
        %vm2070 = vcmask 589344
        %2071 = vst.msk [vmem:[#allocation2 + $0x7] sm:$0xff] %vm2070, %v1996
        %2072 = vst.msk [vmem:[#allocation2 + $0xf] sm:$0xff] %vm2070, %v1998
        %2073 = vst.msk [vmem:[#allocation2 + $0x17] sm:$0xff] %vm2070, %v2000
        %2074 = vst.msk [vmem:[#allocation2 + $0x1f] sm:$0xff] %vm2070, %v2002
        %2075 = vst.msk [vmem:[#allocation2 + $0x27] sm:$0xff] %vm2070, %v2004
        %2076 = vst.msk [vmem:[#allocation2 + $0x2f] sm:$0xff] %vm2070, %v2006
        %2077 = vst.msk [vmem:[#allocation2 + $0x37] sm:$0xff] %vm2070, %v2008
        %2078 = vst.msk [vmem:[#allocation2 + $0x3f] sm:$0xff] %vm2070, %v2010
        %2079 = vst.msk [vmem:[#allocation2 + $0x47] sm:$0xff] %vm2070, %v2012
        %2080 = vst.msk [vmem:[#allocation2 + $0x4f] sm:$0xff] %vm2070, %v2014
        %2081 = vst.msk [vmem:[#allocation2 + $0x57] sm:$0xff] %vm2070, %v2016
        %2082 = vst.msk [vmem:[#allocation2 + $0x5f] sm:$0xff] %vm2070, %v2018
        %2083 = vst.msk [vmem:[#allocation2 + $0x67] sm:$0xff] %vm2070, %v2020
        %2084 = vst.msk [vmem:[#allocation2 + $0x6f] sm:$0xff] %vm2070, %v2022
        %2085 = vst.msk [vmem:[#allocation2 + $0x77] sm:$0xff] %vm2070, %v2024
        %2086 = vst.msk [vmem:[#allocation2 + $0x7f] sm:$0xff] %vm2070, %v2026
        %2087 = vst.msk [vmem:[#allocation2 + $0x87] sm:$0xff] %vm2070, %v2028
        %2088 = vst.msk [vmem:[#allocation2 + $0x8f] sm:$0xff] %vm2070, %v2030
        %2089 = vst.msk [vmem:[#allocation2 + $0x97] sm:$0xff] %vm2070, %v2032
        %2090 = vst.msk [vmem:[#allocation2 + $0x9f] sm:$0xff] %vm2070, %v2034
        %2091 = vst.msk [vmem:[#allocation2 + $0xa7] sm:$0xff] %vm2070, %v2036
        %2092 = vst.msk [vmem:[#allocation2 + $0xaf] sm:$0xff] %vm2070, %v2038
        %2093 = vst.msk [vmem:[#allocation2 + $0xb7] sm:$0xff] %vm2070, %v2040
        %vm2094 = vcmask 582176
        %2095 = vst.msk [vmem:[#allocation2 + $0xbf] sm:$0x1] %vm2094, %v2042
        %2096 = vrot.lane.b32.xlu0 %v279, 72
        %v2097 = vpop.permute.xlu0 %2096
        %2098 = vrot.lane.b32.xlu0 %v280, 72
        %v2099 = vpop.permute.xlu0 %2098
        %2100 = vrot.lane.b32.xlu0 %v281, 72
        %v2101 = vpop.permute.xlu0 %2100
        %2102 = vrot.lane.b32.xlu0 %v282, 72
        %v2103 = vpop.permute.xlu0 %2102
        %2104 = vrot.lane.b32.xlu0 %v283, 72
        %v2105 = vpop.permute.xlu0 %2104
        %2106 = vrot.lane.b32.xlu0 %v284, 72
        %v2107 = vpop.permute.xlu0 %2106
        %2108 = vrot.lane.b32.xlu0 %v285, 72
        %v2109 = vpop.permute.xlu0 %2108
        %2110 = vrot.lane.b32.xlu0 %v286, 72
        %v2111 = vpop.permute.xlu0 %2110
        %2112 = vrot.lane.b32.xlu0 %v287, 72
        %v2113 = vpop.permute.xlu0 %2112
        %2114 = vrot.lane.b32.xlu0 %v288, 72
        %v2115 = vpop.permute.xlu0 %2114
        %2116 = vrot.lane.b32.xlu0 %v289, 72
        %v2117 = vpop.permute.xlu0 %2116
        %2118 = vrot.lane.b32.xlu0 %v290, 72
        %v2119 = vpop.permute.xlu0 %2118
        %2120 = vrot.lane.b32.xlu0 %v291, 72
        %v2121 = vpop.permute.xlu0 %2120
        %2122 = vrot.lane.b32.xlu0 %v292, 72
        %v2123 = vpop.permute.xlu0 %2122
        %2124 = vrot.lane.b32.xlu0 %v293, 72
        %v2125 = vpop.permute.xlu0 %2124
        %2126 = vrot.lane.b32.xlu0 %v294, 72
        %v2127 = vpop.permute.xlu0 %2126
        %2128 = vrot.lane.b32.xlu0 %v295, 72
        %v2129 = vpop.permute.xlu0 %2128
        %2130 = vrot.lane.b32.xlu0 %v296, 72
        %v2131 = vpop.permute.xlu0 %2130
        %2132 = vrot.lane.b32.xlu0 %v297, 72
        %v2133 = vpop.permute.xlu0 %2132
        %2134 = vrot.lane.b32.xlu0 %v298, 72
        %v2135 = vpop.permute.xlu0 %2134
        %2136 = vrot.lane.b32.xlu0 %v299, 72
        %v2137 = vpop.permute.xlu0 %2136
        %2138 = vrot.lane.b32.xlu0 %v300, 72
        %v2139 = vpop.permute.xlu0 %2138
        %2140 = vrot.lane.b32.xlu0 %v301, 72
        %v2141 = vpop.permute.xlu0 %2140
        %2142 = vrot.lane.b32.xlu0 %v302, 72
        %v2143 = vpop.permute.xlu0 %2142
        %2144 = vrot.lane.b32.xlu0 %v303, 72
        %v2145 = vpop.permute.xlu0 %2144
        %vm2171 = vcmask 622146
        %2172 = vst.msk [vmem:[#allocation2 - $0x2] sm:$0xfc] %vm2171, %v2097
        %vm2173 = vcmask 622144
        %2174 = vst.msk [vmem:[#allocation2 + $0x6] sm:$0xff] %vm2173, %v2099
        %2175 = vst.msk [vmem:[#allocation2 + $0xe] sm:$0xff] %vm2173, %v2101
        %2176 = vst.msk [vmem:[#allocation2 + $0x16] sm:$0xff] %vm2173, %v2103
        %2177 = vst.msk [vmem:[#allocation2 + $0x1e] sm:$0xff] %vm2173, %v2105
        %2178 = vst.msk [vmem:[#allocation2 + $0x26] sm:$0xff] %vm2173, %v2107
        %2179 = vst.msk [vmem:[#allocation2 + $0x2e] sm:$0xff] %vm2173, %v2109
        %2180 = vst.msk [vmem:[#allocation2 + $0x36] sm:$0xff] %vm2173, %v2111
        %2181 = vst.msk [vmem:[#allocation2 + $0x3e] sm:$0xff] %vm2173, %v2113
        %2182 = vst.msk [vmem:[#allocation2 + $0x46] sm:$0xff] %vm2173, %v2115
        %2183 = vst.msk [vmem:[#allocation2 + $0x4e] sm:$0xff] %vm2173, %v2117
        %2184 = vst.msk [vmem:[#allocation2 + $0x56] sm:$0xff] %vm2173, %v2119
        %2185 = vst.msk [vmem:[#allocation2 + $0x5e] sm:$0xff] %vm2173, %v2121
        %2186 = vst.msk [vmem:[#allocation2 + $0x66] sm:$0xff] %vm2173, %v2123
        %2187 = vst.msk [vmem:[#allocation2 + $0x6e] sm:$0xff] %vm2173, %v2125
        %2188 = vst.msk [vmem:[#allocation2 + $0x76] sm:$0xff] %vm2173, %v2127
        %2189 = vst.msk [vmem:[#allocation2 + $0x7e] sm:$0xff] %vm2173, %v2129
        %2190 = vst.msk [vmem:[#allocation2 + $0x86] sm:$0xff] %vm2173, %v2131
        %2191 = vst.msk [vmem:[#allocation2 + $0x8e] sm:$0xff] %vm2173, %v2133
        %2192 = vst.msk [vmem:[#allocation2 + $0x96] sm:$0xff] %vm2173, %v2135
        %2193 = vst.msk [vmem:[#allocation2 + $0x9e] sm:$0xff] %vm2173, %v2137
        %2194 = vst.msk [vmem:[#allocation2 + $0xa6] sm:$0xff] %vm2173, %v2139
        %2195 = vst.msk [vmem:[#allocation2 + $0xae] sm:$0xff] %vm2173, %v2141
        %2196 = vst.msk [vmem:[#allocation2 + $0xb6] sm:$0xff] %vm2173, %v2143
        %vm2197 = vcmask 616000
        %2198 = vst.msk [vmem:[#allocation2 + $0xbe] sm:$0x3] %vm2197, %v2145
        %2199 = vrot.lane.b32.xlu0 %v279, 76
        %v2200 = vpop.permute.xlu0 %2199
        %2201 = vrot.lane.b32.xlu0 %v280, 76
        %v2202 = vpop.permute.xlu0 %2201
        %2203 = vrot.lane.b32.xlu0 %v281, 76
        %v2204 = vpop.permute.xlu0 %2203
        %2205 = vrot.lane.b32.xlu0 %v282, 76
        %v2206 = vpop.permute.xlu0 %2205
        %2207 = vrot.lane.b32.xlu0 %v283, 76
        %v2208 = vpop.permute.xlu0 %2207
        %2209 = vrot.lane.b32.xlu0 %v284, 76
        %v2210 = vpop.permute.xlu0 %2209
        %2211 = vrot.lane.b32.xlu0 %v285, 76
        %v2212 = vpop.permute.xlu0 %2211
        %2213 = vrot.lane.b32.xlu0 %v286, 76
        %v2214 = vpop.permute.xlu0 %2213
        %2215 = vrot.lane.b32.xlu0 %v287, 76
        %v2216 = vpop.permute.xlu0 %2215
        %2217 = vrot.lane.b32.xlu0 %v288, 76
        %v2218 = vpop.permute.xlu0 %2217
        %2219 = vrot.lane.b32.xlu0 %v289, 76
        %v2220 = vpop.permute.xlu0 %2219
        %2221 = vrot.lane.b32.xlu0 %v290, 76
        %v2222 = vpop.permute.xlu0 %2221
        %2223 = vrot.lane.b32.xlu0 %v291, 76
        %v2224 = vpop.permute.xlu0 %2223
        %2225 = vrot.lane.b32.xlu0 %v292, 76
        %v2226 = vpop.permute.xlu0 %2225
        %2227 = vrot.lane.b32.xlu0 %v293, 76
        %v2228 = vpop.permute.xlu0 %2227
        %2229 = vrot.lane.b32.xlu0 %v294, 76
        %v2230 = vpop.permute.xlu0 %2229
        %2231 = vrot.lane.b32.xlu0 %v295, 76
        %v2232 = vpop.permute.xlu0 %2231
        %2233 = vrot.lane.b32.xlu0 %v296, 76
        %v2234 = vpop.permute.xlu0 %2233
        %2235 = vrot.lane.b32.xlu0 %v297, 76
        %v2236 = vpop.permute.xlu0 %2235
        %2237 = vrot.lane.b32.xlu0 %v298, 76
        %v2238 = vpop.permute.xlu0 %2237
        %2239 = vrot.lane.b32.xlu0 %v299, 76
        %v2240 = vpop.permute.xlu0 %2239
        %2241 = vrot.lane.b32.xlu0 %v300, 76
        %v2242 = vpop.permute.xlu0 %2241
        %2243 = vrot.lane.b32.xlu0 %v301, 76
        %v2244 = vpop.permute.xlu0 %2243
        %2245 = vrot.lane.b32.xlu0 %v302, 76
        %v2246 = vpop.permute.xlu0 %2245
        %2247 = vrot.lane.b32.xlu0 %v303, 76
        %v2248 = vpop.permute.xlu0 %2247
        %vm2274 = vcmask 654947
        %2275 = vst.msk [vmem:[#allocation2 - $0x3] sm:$0xf8] %vm2274, %v2200
        %vm2276 = vcmask 654944
        %2277 = vst.msk [vmem:[#allocation2 + $0x5] sm:$0xff] %vm2276, %v2202
        %2278 = vst.msk [vmem:[#allocation2 + $0xd] sm:$0xff] %vm2276, %v2204
        %2279 = vst.msk [vmem:[#allocation2 + $0x15] sm:$0xff] %vm2276, %v2206
        %2280 = vst.msk [vmem:[#allocation2 + $0x1d] sm:$0xff] %vm2276, %v2208
        %2281 = vst.msk [vmem:[#allocation2 + $0x25] sm:$0xff] %vm2276, %v2210
        %2282 = vst.msk [vmem:[#allocation2 + $0x2d] sm:$0xff] %vm2276, %v2212
        %2283 = vst.msk [vmem:[#allocation2 + $0x35] sm:$0xff] %vm2276, %v2214
        %2284 = vst.msk [vmem:[#allocation2 + $0x3d] sm:$0xff] %vm2276, %v2216
        %2285 = vst.msk [vmem:[#allocation2 + $0x45] sm:$0xff] %vm2276, %v2218
        %2286 = vst.msk [vmem:[#allocation2 + $0x4d] sm:$0xff] %vm2276, %v2220
        %2287 = vst.msk [vmem:[#allocation2 + $0x55] sm:$0xff] %vm2276, %v2222
        %2288 = vst.msk [vmem:[#allocation2 + $0x5d] sm:$0xff] %vm2276, %v2224
        %2289 = vst.msk [vmem:[#allocation2 + $0x65] sm:$0xff] %vm2276, %v2226
        %2290 = vst.msk [vmem:[#allocation2 + $0x6d] sm:$0xff] %vm2276, %v2228
        %2291 = vst.msk [vmem:[#allocation2 + $0x75] sm:$0xff] %vm2276, %v2230
        %2292 = vst.msk [vmem:[#allocation2 + $0x7d] sm:$0xff] %vm2276, %v2232
        %2293 = vst.msk [vmem:[#allocation2 + $0x85] sm:$0xff] %vm2276, %v2234
        %2294 = vst.msk [vmem:[#allocation2 + $0x8d] sm:$0xff] %vm2276, %v2236
        %2295 = vst.msk [vmem:[#allocation2 + $0x95] sm:$0xff] %vm2276, %v2238
        %2296 = vst.msk [vmem:[#allocation2 + $0x9d] sm:$0xff] %vm2276, %v2240
        %2297 = vst.msk [vmem:[#allocation2 + $0xa5] sm:$0xff] %vm2276, %v2242
        %2298 = vst.msk [vmem:[#allocation2 + $0xad] sm:$0xff] %vm2276, %v2244
        %2299 = vst.msk [vmem:[#allocation2 + $0xb5] sm:$0xff] %vm2276, %v2246
        %vm2300 = vcmask 649824
        %2301 = vst.msk [vmem:[#allocation2 + $0xbd] sm:$0x7] %vm2300, %v2248
        %2302 = vrot.lane.b32.xlu0 %v279, 80
        %v2303 = vpop.permute.xlu0 %2302
        %2304 = vrot.lane.b32.xlu0 %v280, 80
        %v2305 = vpop.permute.xlu0 %2304
        %2306 = vrot.lane.b32.xlu0 %v281, 80
        %v2307 = vpop.permute.xlu0 %2306
        %2308 = vrot.lane.b32.xlu0 %v282, 80
        %v2309 = vpop.permute.xlu0 %2308
        %2310 = vrot.lane.b32.xlu0 %v283, 80
        %v2311 = vpop.permute.xlu0 %2310
        %2312 = vrot.lane.b32.xlu0 %v284, 80
        %v2313 = vpop.permute.xlu0 %2312
        %2314 = vrot.lane.b32.xlu0 %v285, 80
        %v2315 = vpop.permute.xlu0 %2314
        %2316 = vrot.lane.b32.xlu0 %v286, 80
        %v2317 = vpop.permute.xlu0 %2316
        %2318 = vrot.lane.b32.xlu0 %v287, 80
        %v2319 = vpop.permute.xlu0 %2318
        %2320 = vrot.lane.b32.xlu0 %v288, 80
        %v2321 = vpop.permute.xlu0 %2320
        %2322 = vrot.lane.b32.xlu0 %v289, 80
        %v2323 = vpop.permute.xlu0 %2322
        %2324 = vrot.lane.b32.xlu0 %v290, 80
        %v2325 = vpop.permute.xlu0 %2324
        %2326 = vrot.lane.b32.xlu0 %v291, 80
        %v2327 = vpop.permute.xlu0 %2326
        %2328 = vrot.lane.b32.xlu0 %v292, 80
        %v2329 = vpop.permute.xlu0 %2328
        %2330 = vrot.lane.b32.xlu0 %v293, 80
        %v2331 = vpop.permute.xlu0 %2330
        %2332 = vrot.lane.b32.xlu0 %v294, 80
        %v2333 = vpop.permute.xlu0 %2332
        %2334 = vrot.lane.b32.xlu0 %v295, 80
        %v2335 = vpop.permute.xlu0 %2334
        %2336 = vrot.lane.b32.xlu0 %v296, 80
        %v2337 = vpop.permute.xlu0 %2336
        %2338 = vrot.lane.b32.xlu0 %v297, 80
        %v2339 = vpop.permute.xlu0 %2338
        %2340 = vrot.lane.b32.xlu0 %v298, 80
        %v2341 = vpop.permute.xlu0 %2340
        %2342 = vrot.lane.b32.xlu0 %v299, 80
        %v2343 = vpop.permute.xlu0 %2342
        %2344 = vrot.lane.b32.xlu0 %v300, 80
        %v2345 = vpop.permute.xlu0 %2344
        %2346 = vrot.lane.b32.xlu0 %v301, 80
        %v2347 = vpop.permute.xlu0 %2346
        %2348 = vrot.lane.b32.xlu0 %v302, 80
        %v2349 = vpop.permute.xlu0 %2348
        %2350 = vrot.lane.b32.xlu0 %v303, 80
        %v2351 = vpop.permute.xlu0 %2350
        %vm2377 = vcmask 687748
        %2378 = vst.msk [vmem:[#allocation2 - $0x4] sm:$0xf0] %vm2377, %v2303
        %vm2379 = vcmask 687744
        %2380 = vst.msk [vmem:[#allocation2 + $0x4] sm:$0xff] %vm2379, %v2305
        %2381 = vst.msk [vmem:[#allocation2 + $0xc] sm:$0xff] %vm2379, %v2307
        %2382 = vst.msk [vmem:[#allocation2 + $0x14] sm:$0xff] %vm2379, %v2309
        %2383 = vst.msk [vmem:[#allocation2 + $0x1c] sm:$0xff] %vm2379, %v2311
        %2384 = vst.msk [vmem:[#allocation2 + $0x24] sm:$0xff] %vm2379, %v2313
        %2385 = vst.msk [vmem:[#allocation2 + $0x2c] sm:$0xff] %vm2379, %v2315
        %2386 = vst.msk [vmem:[#allocation2 + $0x34] sm:$0xff] %vm2379, %v2317
        %2387 = vst.msk [vmem:[#allocation2 + $0x3c] sm:$0xff] %vm2379, %v2319
        %2388 = vst.msk [vmem:[#allocation2 + $0x44] sm:$0xff] %vm2379, %v2321
        %2389 = vst.msk [vmem:[#allocation2 + $0x4c] sm:$0xff] %vm2379, %v2323
        %2390 = vst.msk [vmem:[#allocation2 + $0x54] sm:$0xff] %vm2379, %v2325
        %2391 = vst.msk [vmem:[#allocation2 + $0x5c] sm:$0xff] %vm2379, %v2327
        %2392 = vst.msk [vmem:[#allocation2 + $0x64] sm:$0xff] %vm2379, %v2329
        %2393 = vst.msk [vmem:[#allocation2 + $0x6c] sm:$0xff] %vm2379, %v2331
        %2394 = vst.msk [vmem:[#allocation2 + $0x74] sm:$0xff] %vm2379, %v2333
        %2395 = vst.msk [vmem:[#allocation2 + $0x7c] sm:$0xff] %vm2379, %v2335
        %2396 = vst.msk [vmem:[#allocation2 + $0x84] sm:$0xff] %vm2379, %v2337
        %2397 = vst.msk [vmem:[#allocation2 + $0x8c] sm:$0xff] %vm2379, %v2339
        %2398 = vst.msk [vmem:[#allocation2 + $0x94] sm:$0xff] %vm2379, %v2341
        %2399 = vst.msk [vmem:[#allocation2 + $0x9c] sm:$0xff] %vm2379, %v2343
        %2400 = vst.msk [vmem:[#allocation2 + $0xa4] sm:$0xff] %vm2379, %v2345
        %2401 = vst.msk [vmem:[#allocation2 + $0xac] sm:$0xff] %vm2379, %v2347
        %2402 = vst.msk [vmem:[#allocation2 + $0xb4] sm:$0xff] %vm2379, %v2349
        %vm2403 = vcmask 683648
        %2404 = vst.msk [vmem:[#allocation2 + $0xbc] sm:$0xf] %vm2403, %v2351
        %2405 = vrot.lane.b32.xlu0 %v279, 84
        %v2406 = vpop.permute.xlu0 %2405
        %2407 = vrot.lane.b32.xlu0 %v280, 84
        %v2408 = vpop.permute.xlu0 %2407
        %2409 = vrot.lane.b32.xlu0 %v281, 84
        %v2410 = vpop.permute.xlu0 %2409
        %2411 = vrot.lane.b32.xlu0 %v282, 84
        %v2412 = vpop.permute.xlu0 %2411
        %2413 = vrot.lane.b32.xlu0 %v283, 84
        %v2414 = vpop.permute.xlu0 %2413
        %2415 = vrot.lane.b32.xlu0 %v284, 84
        %v2416 = vpop.permute.xlu0 %2415
        %2417 = vrot.lane.b32.xlu0 %v285, 84
        %v2418 = vpop.permute.xlu0 %2417
        %2419 = vrot.lane.b32.xlu0 %v286, 84
        %v2420 = vpop.permute.xlu0 %2419
        %2421 = vrot.lane.b32.xlu0 %v287, 84
        %v2422 = vpop.permute.xlu0 %2421
        %2423 = vrot.lane.b32.xlu0 %v288, 84
        %v2424 = vpop.permute.xlu0 %2423
        %2425 = vrot.lane.b32.xlu0 %v289, 84
        %v2426 = vpop.permute.xlu0 %2425
        %2427 = vrot.lane.b32.xlu0 %v290, 84
        %v2428 = vpop.permute.xlu0 %2427
        %2429 = vrot.lane.b32.xlu0 %v291, 84
        %v2430 = vpop.permute.xlu0 %2429
        %2431 = vrot.lane.b32.xlu0 %v292, 84
        %v2432 = vpop.permute.xlu0 %2431
        %2433 = vrot.lane.b32.xlu0 %v293, 84
        %v2434 = vpop.permute.xlu0 %2433
        %2435 = vrot.lane.b32.xlu0 %v294, 84
        %v2436 = vpop.permute.xlu0 %2435
        %2437 = vrot.lane.b32.xlu0 %v295, 84
        %v2438 = vpop.permute.xlu0 %2437
        %2439 = vrot.lane.b32.xlu0 %v296, 84
        %v2440 = vpop.permute.xlu0 %2439
        %2441 = vrot.lane.b32.xlu0 %v297, 84
        %v2442 = vpop.permute.xlu0 %2441
        %2443 = vrot.lane.b32.xlu0 %v298, 84
        %v2444 = vpop.permute.xlu0 %2443
        %2445 = vrot.lane.b32.xlu0 %v299, 84
        %v2446 = vpop.permute.xlu0 %2445
        %2447 = vrot.lane.b32.xlu0 %v300, 84
        %v2448 = vpop.permute.xlu0 %2447
        %2449 = vrot.lane.b32.xlu0 %v301, 84
        %v2450 = vpop.permute.xlu0 %2449
        %2451 = vrot.lane.b32.xlu0 %v302, 84
        %v2452 = vpop.permute.xlu0 %2451
        %2453 = vrot.lane.b32.xlu0 %v303, 84
        %v2454 = vpop.permute.xlu0 %2453
        %vm2480 = vcmask 720549
        %2481 = vst.msk [vmem:[#allocation2 - $0x5] sm:$0xe0] %vm2480, %v2406
        %vm2482 = vcmask 720544
        %2483 = vst.msk [vmem:[#allocation2 + $0x3] sm:$0xff] %vm2482, %v2408
        %2484 = vst.msk [vmem:[#allocation2 + $0xb] sm:$0xff] %vm2482, %v2410
        %2485 = vst.msk [vmem:[#allocation2 + $0x13] sm:$0xff] %vm2482, %v2412
        %2486 = vst.msk [vmem:[#allocation2 + $0x1b] sm:$0xff] %vm2482, %v2414
        %2487 = vst.msk [vmem:[#allocation2 + $0x23] sm:$0xff] %vm2482, %v2416
        %2488 = vst.msk [vmem:[#allocation2 + $0x2b] sm:$0xff] %vm2482, %v2418
        %2489 = vst.msk [vmem:[#allocation2 + $0x33] sm:$0xff] %vm2482, %v2420
        %2490 = vst.msk [vmem:[#allocation2 + $0x3b] sm:$0xff] %vm2482, %v2422
        %2491 = vst.msk [vmem:[#allocation2 + $0x43] sm:$0xff] %vm2482, %v2424
        %2492 = vst.msk [vmem:[#allocation2 + $0x4b] sm:$0xff] %vm2482, %v2426
        %2493 = vst.msk [vmem:[#allocation2 + $0x53] sm:$0xff] %vm2482, %v2428
        %2494 = vst.msk [vmem:[#allocation2 + $0x5b] sm:$0xff] %vm2482, %v2430
        %2495 = vst.msk [vmem:[#allocation2 + $0x63] sm:$0xff] %vm2482, %v2432
        %2496 = vst.msk [vmem:[#allocation2 + $0x6b] sm:$0xff] %vm2482, %v2434
        %2497 = vst.msk [vmem:[#allocation2 + $0x73] sm:$0xff] %vm2482, %v2436
        %2498 = vst.msk [vmem:[#allocation2 + $0x7b] sm:$0xff] %vm2482, %v2438
        %2499 = vst.msk [vmem:[#allocation2 + $0x83] sm:$0xff] %vm2482, %v2440
        %2500 = vst.msk [vmem:[#allocation2 + $0x8b] sm:$0xff] %vm2482, %v2442
        %2501 = vst.msk [vmem:[#allocation2 + $0x93] sm:$0xff] %vm2482, %v2444
        %2502 = vst.msk [vmem:[#allocation2 + $0x9b] sm:$0xff] %vm2482, %v2446
        %2503 = vst.msk [vmem:[#allocation2 + $0xa3] sm:$0xff] %vm2482, %v2448
        %2504 = vst.msk [vmem:[#allocation2 + $0xab] sm:$0xff] %vm2482, %v2450
        %2505 = vst.msk [vmem:[#allocation2 + $0xb3] sm:$0xff] %vm2482, %v2452
        %vm2506 = vcmask 717472
        %2507 = vst.msk [vmem:[#allocation2 + $0xbb] sm:$0x1f] %vm2506, %v2454
        %2508 = vrot.lane.b32.xlu0 %v279, 88
        %v2509 = vpop.permute.xlu0 %2508
        %2510 = vrot.lane.b32.xlu0 %v280, 88
        %v2511 = vpop.permute.xlu0 %2510
        %2512 = vrot.lane.b32.xlu0 %v281, 88
        %v2513 = vpop.permute.xlu0 %2512
        %2514 = vrot.lane.b32.xlu0 %v282, 88
        %v2515 = vpop.permute.xlu0 %2514
        %2516 = vrot.lane.b32.xlu0 %v283, 88
        %v2517 = vpop.permute.xlu0 %2516
        %2518 = vrot.lane.b32.xlu0 %v284, 88
        %v2519 = vpop.permute.xlu0 %2518
        %2520 = vrot.lane.b32.xlu0 %v285, 88
        %v2521 = vpop.permute.xlu0 %2520
        %2522 = vrot.lane.b32.xlu0 %v286, 88
        %v2523 = vpop.permute.xlu0 %2522
        %2524 = vrot.lane.b32.xlu0 %v287, 88
        %v2525 = vpop.permute.xlu0 %2524
        %2526 = vrot.lane.b32.xlu0 %v288, 88
        %v2527 = vpop.permute.xlu0 %2526
        %2528 = vrot.lane.b32.xlu0 %v289, 88
        %v2529 = vpop.permute.xlu0 %2528
        %2530 = vrot.lane.b32.xlu0 %v290, 88
        %v2531 = vpop.permute.xlu0 %2530
        %2532 = vrot.lane.b32.xlu0 %v291, 88
        %v2533 = vpop.permute.xlu0 %2532
        %2534 = vrot.lane.b32.xlu0 %v292, 88
        %v2535 = vpop.permute.xlu0 %2534
        %2536 = vrot.lane.b32.xlu0 %v293, 88
        %v2537 = vpop.permute.xlu0 %2536
        %2538 = vrot.lane.b32.xlu0 %v294, 88
        %v2539 = vpop.permute.xlu0 %2538
        %2540 = vrot.lane.b32.xlu0 %v295, 88
        %v2541 = vpop.permute.xlu0 %2540
        %2542 = vrot.lane.b32.xlu0 %v296, 88
        %v2543 = vpop.permute.xlu0 %2542
        %2544 = vrot.lane.b32.xlu0 %v297, 88
        %v2545 = vpop.permute.xlu0 %2544
        %2546 = vrot.lane.b32.xlu0 %v298, 88
        %v2547 = vpop.permute.xlu0 %2546
        %2548 = vrot.lane.b32.xlu0 %v299, 88
        %v2549 = vpop.permute.xlu0 %2548
        %2550 = vrot.lane.b32.xlu0 %v300, 88
        %v2551 = vpop.permute.xlu0 %2550
        %2552 = vrot.lane.b32.xlu0 %v301, 88
        %v2553 = vpop.permute.xlu0 %2552
        %2554 = vrot.lane.b32.xlu0 %v302, 88
        %v2555 = vpop.permute.xlu0 %2554
        %2556 = vrot.lane.b32.xlu0 %v303, 88
        %v2557 = vpop.permute.xlu0 %2556
        %vm2583 = vcmask 753350
        %2584 = vst.msk [vmem:[#allocation2 - $0x6] sm:$0xc0] %vm2583, %v2509
        %vm2585 = vcmask 753344
        %2586 = vst.msk [vmem:[#allocation2 + $0x2] sm:$0xff] %vm2585, %v2511
        %2587 = vst.msk [vmem:[#allocation2 + $0xa] sm:$0xff] %vm2585, %v2513
        %2588 = vst.msk [vmem:[#allocation2 + $0x12] sm:$0xff] %vm2585, %v2515
        %2589 = vst.msk [vmem:[#allocation2 + $0x1a] sm:$0xff] %vm2585, %v2517
        %2590 = vst.msk [vmem:[#allocation2 + $0x22] sm:$0xff] %vm2585, %v2519
        %2591 = vst.msk [vmem:[#allocation2 + $0x2a] sm:$0xff] %vm2585, %v2521
        %2592 = vst.msk [vmem:[#allocation2 + $0x32] sm:$0xff] %vm2585, %v2523
        %2593 = vst.msk [vmem:[#allocation2 + $0x3a] sm:$0xff] %vm2585, %v2525
        %2594 = vst.msk [vmem:[#allocation2 + $0x42] sm:$0xff] %vm2585, %v2527
        %2595 = vst.msk [vmem:[#allocation2 + $0x4a] sm:$0xff] %vm2585, %v2529
        %2596 = vst.msk [vmem:[#allocation2 + $0x52] sm:$0xff] %vm2585, %v2531
        %2597 = vst.msk [vmem:[#allocation2 + $0x5a] sm:$0xff] %vm2585, %v2533
        %2598 = vst.msk [vmem:[#allocation2 + $0x62] sm:$0xff] %vm2585, %v2535
        %2599 = vst.msk [vmem:[#allocation2 + $0x6a] sm:$0xff] %vm2585, %v2537
        %2600 = vst.msk [vmem:[#allocation2 + $0x72] sm:$0xff] %vm2585, %v2539
        %2601 = vst.msk [vmem:[#allocation2 + $0x7a] sm:$0xff] %vm2585, %v2541
        %2602 = vst.msk [vmem:[#allocation2 + $0x82] sm:$0xff] %vm2585, %v2543
        %2603 = vst.msk [vmem:[#allocation2 + $0x8a] sm:$0xff] %vm2585, %v2545
        %2604 = vst.msk [vmem:[#allocation2 + $0x92] sm:$0xff] %vm2585, %v2547
        %2605 = vst.msk [vmem:[#allocation2 + $0x9a] sm:$0xff] %vm2585, %v2549
        %2606 = vst.msk [vmem:[#allocation2 + $0xa2] sm:$0xff] %vm2585, %v2551
        %2607 = vst.msk [vmem:[#allocation2 + $0xaa] sm:$0xff] %vm2585, %v2553
        %2608 = vst.msk [vmem:[#allocation2 + $0xb2] sm:$0xff] %vm2585, %v2555
        %vm2609 = vcmask 751296
        %2610 = vst.msk [vmem:[#allocation2 + $0xba] sm:$0x3f] %vm2609, %v2557
        %2611 = vrot.lane.b32.xlu0 %v279, 92
        %v2612 = vpop.permute.xlu0 %2611
        %2613 = vrot.lane.b32.xlu0 %v280, 92
        %v2614 = vpop.permute.xlu0 %2613
        %2615 = vrot.lane.b32.xlu0 %v281, 92
        %v2616 = vpop.permute.xlu0 %2615
        %2617 = vrot.lane.b32.xlu0 %v282, 92
        %v2618 = vpop.permute.xlu0 %2617
        %2619 = vrot.lane.b32.xlu0 %v283, 92
        %v2620 = vpop.permute.xlu0 %2619
        %2621 = vrot.lane.b32.xlu0 %v284, 92
        %v2622 = vpop.permute.xlu0 %2621
        %2623 = vrot.lane.b32.xlu0 %v285, 92
        %v2624 = vpop.permute.xlu0 %2623
        %2625 = vrot.lane.b32.xlu0 %v286, 92
        %v2626 = vpop.permute.xlu0 %2625
        %2627 = vrot.lane.b32.xlu0 %v287, 92
        %v2628 = vpop.permute.xlu0 %2627
        %2629 = vrot.lane.b32.xlu0 %v288, 92
        %v2630 = vpop.permute.xlu0 %2629
        %2631 = vrot.lane.b32.xlu0 %v289, 92
        %v2632 = vpop.permute.xlu0 %2631
        %2633 = vrot.lane.b32.xlu0 %v290, 92
        %v2634 = vpop.permute.xlu0 %2633
        %2635 = vrot.lane.b32.xlu0 %v291, 92
        %v2636 = vpop.permute.xlu0 %2635
        %2637 = vrot.lane.b32.xlu0 %v292, 92
        %v2638 = vpop.permute.xlu0 %2637
        %2639 = vrot.lane.b32.xlu0 %v293, 92
        %v2640 = vpop.permute.xlu0 %2639
        %2641 = vrot.lane.b32.xlu0 %v294, 92
        %v2642 = vpop.permute.xlu0 %2641
        %2643 = vrot.lane.b32.xlu0 %v295, 92
        %v2644 = vpop.permute.xlu0 %2643
        %2645 = vrot.lane.b32.xlu0 %v296, 92
        %v2646 = vpop.permute.xlu0 %2645
        %2647 = vrot.lane.b32.xlu0 %v297, 92
        %v2648 = vpop.permute.xlu0 %2647
        %2649 = vrot.lane.b32.xlu0 %v298, 92
        %v2650 = vpop.permute.xlu0 %2649
        %2651 = vrot.lane.b32.xlu0 %v299, 92
        %v2652 = vpop.permute.xlu0 %2651
        %2653 = vrot.lane.b32.xlu0 %v300, 92
        %v2654 = vpop.permute.xlu0 %2653
        %2655 = vrot.lane.b32.xlu0 %v301, 92
        %v2656 = vpop.permute.xlu0 %2655
        %2657 = vrot.lane.b32.xlu0 %v302, 92
        %v2658 = vpop.permute.xlu0 %2657
        %2659 = vrot.lane.b32.xlu0 %v303, 92
        %v2660 = vpop.permute.xlu0 %2659
        %vm2686 = vcmask 786151
        %2687 = vst.msk [vmem:[#allocation2 - $0x7] sm:$0x80] %vm2686, %v2612
        %vm2688 = vcmask 786144
        %2689 = vst.msk [vmem:[#allocation2 + $0x1] sm:$0xff] %vm2688, %v2614
        %2690 = vst.msk [vmem:[#allocation2 + $0x9] sm:$0xff] %vm2688, %v2616
        %2691 = vst.msk [vmem:[#allocation2 + $0x11] sm:$0xff] %vm2688, %v2618
        %2692 = vst.msk [vmem:[#allocation2 + $0x19] sm:$0xff] %vm2688, %v2620
        %2693 = vst.msk [vmem:[#allocation2 + $0x21] sm:$0xff] %vm2688, %v2622
        %2694 = vst.msk [vmem:[#allocation2 + $0x29] sm:$0xff] %vm2688, %v2624
        %2695 = vst.msk [vmem:[#allocation2 + $0x31] sm:$0xff] %vm2688, %v2626
        %2696 = vst.msk [vmem:[#allocation2 + $0x39] sm:$0xff] %vm2688, %v2628
        %2697 = vst.msk [vmem:[#allocation2 + $0x41] sm:$0xff] %vm2688, %v2630
        %2698 = vst.msk [vmem:[#allocation2 + $0x49] sm:$0xff] %vm2688, %v2632
        %2699 = vst.msk [vmem:[#allocation2 + $0x51] sm:$0xff] %vm2688, %v2634
        %2700 = vst.msk [vmem:[#allocation2 + $0x59] sm:$0xff] %vm2688, %v2636
        %2701 = vst.msk [vmem:[#allocation2 + $0x61] sm:$0xff] %vm2688, %v2638
        %2702 = vst.msk [vmem:[#allocation2 + $0x69] sm:$0xff] %vm2688, %v2640
        %2703 = vst.msk [vmem:[#allocation2 + $0x71] sm:$0xff] %vm2688, %v2642
        %2704 = vst.msk [vmem:[#allocation2 + $0x79] sm:$0xff] %vm2688, %v2644
        %2705 = vst.msk [vmem:[#allocation2 + $0x81] sm:$0xff] %vm2688, %v2646
        %2706 = vst.msk [vmem:[#allocation2 + $0x89] sm:$0xff] %vm2688, %v2648
        %2707 = vst.msk [vmem:[#allocation2 + $0x91] sm:$0xff] %vm2688, %v2650
        %2708 = vst.msk [vmem:[#allocation2 + $0x99] sm:$0xff] %vm2688, %v2652
        %2709 = vst.msk [vmem:[#allocation2 + $0xa1] sm:$0xff] %vm2688, %v2654
        %2710 = vst.msk [vmem:[#allocation2 + $0xa9] sm:$0xff] %vm2688, %v2656
        %2711 = vst.msk [vmem:[#allocation2 + $0xb1] sm:$0xff] %vm2688, %v2658
        %vm2712 = vcmask 785120
        %2713 = vst.msk [vmem:[#allocation2 + $0xb9] sm:$0x7f] %vm2712, %v2660
        %2714 = vrot.lane.b32.xlu0 %v280, 96
        %v2715 = vpop.permute.xlu0 %2714
        %2716 = vrot.lane.b32.xlu0 %v281, 96
        %v2717 = vpop.permute.xlu0 %2716
        %2718 = vrot.lane.b32.xlu0 %v282, 96
        %v2719 = vpop.permute.xlu0 %2718
        %2720 = vrot.lane.b32.xlu0 %v283, 96
        %v2721 = vpop.permute.xlu0 %2720
        %2722 = vrot.lane.b32.xlu0 %v284, 96
        %v2723 = vpop.permute.xlu0 %2722
        %2724 = vrot.lane.b32.xlu0 %v285, 96
        %v2725 = vpop.permute.xlu0 %2724
        %2726 = vrot.lane.b32.xlu0 %v286, 96
        %v2727 = vpop.permute.xlu0 %2726
        %2728 = vrot.lane.b32.xlu0 %v287, 96
        %v2729 = vpop.permute.xlu0 %2728
        %2730 = vrot.lane.b32.xlu0 %v288, 96
        %v2731 = vpop.permute.xlu0 %2730
        %2732 = vrot.lane.b32.xlu0 %v289, 96
        %v2733 = vpop.permute.xlu0 %2732
        %2734 = vrot.lane.b32.xlu0 %v290, 96
        %v2735 = vpop.permute.xlu0 %2734
        %2736 = vrot.lane.b32.xlu0 %v291, 96
        %v2737 = vpop.permute.xlu0 %2736
        %2738 = vrot.lane.b32.xlu0 %v292, 96
        %v2739 = vpop.permute.xlu0 %2738
        %2740 = vrot.lane.b32.xlu0 %v293, 96
        %v2741 = vpop.permute.xlu0 %2740
        %2742 = vrot.lane.b32.xlu0 %v294, 96
        %v2743 = vpop.permute.xlu0 %2742
        %2744 = vrot.lane.b32.xlu0 %v295, 96
        %v2745 = vpop.permute.xlu0 %2744
        %2746 = vrot.lane.b32.xlu0 %v296, 96
        %v2747 = vpop.permute.xlu0 %2746
        %2748 = vrot.lane.b32.xlu0 %v297, 96
        %v2749 = vpop.permute.xlu0 %2748
        %2750 = vrot.lane.b32.xlu0 %v298, 96
        %v2751 = vpop.permute.xlu0 %2750
        %2752 = vrot.lane.b32.xlu0 %v299, 96
        %v2753 = vpop.permute.xlu0 %2752
        %2754 = vrot.lane.b32.xlu0 %v300, 96
        %v2755 = vpop.permute.xlu0 %2754
        %2756 = vrot.lane.b32.xlu0 %v301, 96
        %v2757 = vpop.permute.xlu0 %2756
        %2758 = vrot.lane.b32.xlu0 %v302, 96
        %v2759 = vpop.permute.xlu0 %2758
        %2760 = vrot.lane.b32.xlu0 %v303, 96
        %v2761 = vpop.permute.xlu0 %2760
        %vm2786 = vcmask 818944
        %2787 = vst.msk [vmem:[#allocation2] sm:$0xff] %vm2786, %v2715
        %2788 = vst.msk [vmem:[#allocation2 + $0x8] sm:$0xff] %vm2786, %v2717
        %2789 = vst.msk [vmem:[#allocation2 + $0x10] sm:$0xff] %vm2786, %v2719
        %2790 = vst.msk [vmem:[#allocation2 + $0x18] sm:$0xff] %vm2786, %v2721
        %2791 = vst.msk [vmem:[#allocation2 + $0x20] sm:$0xff] %vm2786, %v2723
        %2792 = vst.msk [vmem:[#allocation2 + $0x28] sm:$0xff] %vm2786, %v2725
        %2793 = vst.msk [vmem:[#allocation2 + $0x30] sm:$0xff] %vm2786, %v2727
        %2794 = vst.msk [vmem:[#allocation2 + $0x38] sm:$0xff] %vm2786, %v2729
        %2795 = vst.msk [vmem:[#allocation2 + $0x40] sm:$0xff] %vm2786, %v2731
        %2796 = vst.msk [vmem:[#allocation2 + $0x48] sm:$0xff] %vm2786, %v2733
        %2797 = vst.msk [vmem:[#allocation2 + $0x50] sm:$0xff] %vm2786, %v2735
        %2798 = vst.msk [vmem:[#allocation2 + $0x58] sm:$0xff] %vm2786, %v2737
        %2799 = vst.msk [vmem:[#allocation2 + $0x60] sm:$0xff] %vm2786, %v2739
        %2800 = vst.msk [vmem:[#allocation2 + $0x68] sm:$0xff] %vm2786, %v2741
        %2801 = vst.msk [vmem:[#allocation2 + $0x70] sm:$0xff] %vm2786, %v2743
        %2802 = vst.msk [vmem:[#allocation2 + $0x78] sm:$0xff] %vm2786, %v2745
        %2803 = vst.msk [vmem:[#allocation2 + $0x80] sm:$0xff] %vm2786, %v2747
        %2804 = vst.msk [vmem:[#allocation2 + $0x88] sm:$0xff] %vm2786, %v2749
        %2805 = vst.msk [vmem:[#allocation2 + $0x90] sm:$0xff] %vm2786, %v2751
        %2806 = vst.msk [vmem:[#allocation2 + $0x98] sm:$0xff] %vm2786, %v2753
        %2807 = vst.msk [vmem:[#allocation2 + $0xa0] sm:$0xff] %vm2786, %v2755
        %2808 = vst.msk [vmem:[#allocation2 + $0xa8] sm:$0xff] %vm2786, %v2757
        %2809 = vst.msk [vmem:[#allocation2 + $0xb0] sm:$0xff] %vm2786, %v2759
        %2810 = vst.msk [vmem:[#allocation2 + $0xb8] sm:$0xff] %vm2786, %v2761
        %2812 = vrot.lane.b32.xlu0 %v280, 100
        %v2813 = vpop.permute.xlu0 %2812
        %2814 = vrot.lane.b32.xlu0 %v281, 100
        %v2815 = vpop.permute.xlu0 %2814
        %2816 = vrot.lane.b32.xlu0 %v282, 100
        %v2817 = vpop.permute.xlu0 %2816
        %2818 = vrot.lane.b32.xlu0 %v283, 100
        %v2819 = vpop.permute.xlu0 %2818
        %2820 = vrot.lane.b32.xlu0 %v284, 100
        %v2821 = vpop.permute.xlu0 %2820
        %2822 = vrot.lane.b32.xlu0 %v285, 100
        %v2823 = vpop.permute.xlu0 %2822
        %2824 = vrot.lane.b32.xlu0 %v286, 100
        %v2825 = vpop.permute.xlu0 %2824
        %2826 = vrot.lane.b32.xlu0 %v287, 100
        %v2827 = vpop.permute.xlu0 %2826
        %2828 = vrot.lane.b32.xlu0 %v288, 100
        %v2829 = vpop.permute.xlu0 %2828
        %2830 = vrot.lane.b32.xlu0 %v289, 100
        %v2831 = vpop.permute.xlu0 %2830
        %2832 = vrot.lane.b32.xlu0 %v290, 100
        %v2833 = vpop.permute.xlu0 %2832
        %2834 = vrot.lane.b32.xlu0 %v291, 100
        %v2835 = vpop.permute.xlu0 %2834
        %2836 = vrot.lane.b32.xlu0 %v292, 100
        %v2837 = vpop.permute.xlu0 %2836
        %2838 = vrot.lane.b32.xlu0 %v293, 100
        %v2839 = vpop.permute.xlu0 %2838
        %2840 = vrot.lane.b32.xlu0 %v294, 100
        %v2841 = vpop.permute.xlu0 %2840
        %2842 = vrot.lane.b32.xlu0 %v295, 100
        %v2843 = vpop.permute.xlu0 %2842
        %2844 = vrot.lane.b32.xlu0 %v296, 100
        %v2845 = vpop.permute.xlu0 %2844
        %2846 = vrot.lane.b32.xlu0 %v297, 100
        %v2847 = vpop.permute.xlu0 %2846
        %2848 = vrot.lane.b32.xlu0 %v298, 100
        %v2849 = vpop.permute.xlu0 %2848
        %2850 = vrot.lane.b32.xlu0 %v299, 100
        %v2851 = vpop.permute.xlu0 %2850
        %2852 = vrot.lane.b32.xlu0 %v300, 100
        %v2853 = vpop.permute.xlu0 %2852
        %2854 = vrot.lane.b32.xlu0 %v301, 100
        %v2855 = vpop.permute.xlu0 %2854
        %2856 = vrot.lane.b32.xlu0 %v302, 100
        %v2857 = vpop.permute.xlu0 %2856
        %2858 = vrot.lane.b32.xlu0 %v303, 100
        %v2859 = vpop.permute.xlu0 %2858
        %2860 = vrot.lane.b32.xlu0 %v304, 100
        %v2861 = vpop.permute.xlu0 %2860
        %vm2887 = vcmask 851745
        %2888 = vst.msk [vmem:[#allocation2 - $0x1] sm:$0xfe] %vm2887, %v2813
        %vm2889 = vcmask 851744
        %2890 = vst.msk [vmem:[#allocation2 + $0x7] sm:$0xff] %vm2889, %v2815
        %2891 = vst.msk [vmem:[#allocation2 + $0xf] sm:$0xff] %vm2889, %v2817
        %2892 = vst.msk [vmem:[#allocation2 + $0x17] sm:$0xff] %vm2889, %v2819
        %2893 = vst.msk [vmem:[#allocation2 + $0x1f] sm:$0xff] %vm2889, %v2821
        %2894 = vst.msk [vmem:[#allocation2 + $0x27] sm:$0xff] %vm2889, %v2823
        %2895 = vst.msk [vmem:[#allocation2 + $0x2f] sm:$0xff] %vm2889, %v2825
        %2896 = vst.msk [vmem:[#allocation2 + $0x37] sm:$0xff] %vm2889, %v2827
        %2897 = vst.msk [vmem:[#allocation2 + $0x3f] sm:$0xff] %vm2889, %v2829
        %2898 = vst.msk [vmem:[#allocation2 + $0x47] sm:$0xff] %vm2889, %v2831
        %2899 = vst.msk [vmem:[#allocation2 + $0x4f] sm:$0xff] %vm2889, %v2833
        %2900 = vst.msk [vmem:[#allocation2 + $0x57] sm:$0xff] %vm2889, %v2835
        %2901 = vst.msk [vmem:[#allocation2 + $0x5f] sm:$0xff] %vm2889, %v2837
        %2902 = vst.msk [vmem:[#allocation2 + $0x67] sm:$0xff] %vm2889, %v2839
        %2903 = vst.msk [vmem:[#allocation2 + $0x6f] sm:$0xff] %vm2889, %v2841
        %2904 = vst.msk [vmem:[#allocation2 + $0x77] sm:$0xff] %vm2889, %v2843
        %2905 = vst.msk [vmem:[#allocation2 + $0x7f] sm:$0xff] %vm2889, %v2845
        %2906 = vst.msk [vmem:[#allocation2 + $0x87] sm:$0xff] %vm2889, %v2847
        %2907 = vst.msk [vmem:[#allocation2 + $0x8f] sm:$0xff] %vm2889, %v2849
        %2908 = vst.msk [vmem:[#allocation2 + $0x97] sm:$0xff] %vm2889, %v2851
        %2909 = vst.msk [vmem:[#allocation2 + $0x9f] sm:$0xff] %vm2889, %v2853
        %2910 = vst.msk [vmem:[#allocation2 + $0xa7] sm:$0xff] %vm2889, %v2855
        %2911 = vst.msk [vmem:[#allocation2 + $0xaf] sm:$0xff] %vm2889, %v2857
        %2912 = vst.msk [vmem:[#allocation2 + $0xb7] sm:$0xff] %vm2889, %v2859
        %vm2913 = vcmask 844576
        %2914 = vst.msk [vmem:[#allocation2 + $0xbf] sm:$0x1] %vm2913, %v2861
        %2915 = vrot.lane.b32.xlu0 %v280, 104
        %v2916 = vpop.permute.xlu0 %2915
        %2917 = vrot.lane.b32.xlu0 %v281, 104
        %v2918 = vpop.permute.xlu0 %2917
        %2919 = vrot.lane.b32.xlu0 %v282, 104
        %v2920 = vpop.permute.xlu0 %2919
        %2921 = vrot.lane.b32.xlu0 %v283, 104
        %v2922 = vpop.permute.xlu0 %2921
        %2923 = vrot.lane.b32.xlu0 %v284, 104
        %v2924 = vpop.permute.xlu0 %2923
        %2925 = vrot.lane.b32.xlu0 %v285, 104
        %v2926 = vpop.permute.xlu0 %2925
        %2927 = vrot.lane.b32.xlu0 %v286, 104
        %v2928 = vpop.permute.xlu0 %2927
        %2929 = vrot.lane.b32.xlu0 %v287, 104
        %v2930 = vpop.permute.xlu0 %2929
        %2931 = vrot.lane.b32.xlu0 %v288, 104
        %v2932 = vpop.permute.xlu0 %2931
        %2933 = vrot.lane.b32.xlu0 %v289, 104
        %v2934 = vpop.permute.xlu0 %2933
        %2935 = vrot.lane.b32.xlu0 %v290, 104
        %v2936 = vpop.permute.xlu0 %2935
        %2937 = vrot.lane.b32.xlu0 %v291, 104
        %v2938 = vpop.permute.xlu0 %2937
        %2939 = vrot.lane.b32.xlu0 %v292, 104
        %v2940 = vpop.permute.xlu0 %2939
        %2941 = vrot.lane.b32.xlu0 %v293, 104
        %v2942 = vpop.permute.xlu0 %2941
        %2943 = vrot.lane.b32.xlu0 %v294, 104
        %v2944 = vpop.permute.xlu0 %2943
        %2945 = vrot.lane.b32.xlu0 %v295, 104
        %v2946 = vpop.permute.xlu0 %2945
        %2947 = vrot.lane.b32.xlu0 %v296, 104
        %v2948 = vpop.permute.xlu0 %2947
        %2949 = vrot.lane.b32.xlu0 %v297, 104
        %v2950 = vpop.permute.xlu0 %2949
        %2951 = vrot.lane.b32.xlu0 %v298, 104
        %v2952 = vpop.permute.xlu0 %2951
        %2953 = vrot.lane.b32.xlu0 %v299, 104
        %v2954 = vpop.permute.xlu0 %2953
        %2955 = vrot.lane.b32.xlu0 %v300, 104
        %v2956 = vpop.permute.xlu0 %2955
        %2957 = vrot.lane.b32.xlu0 %v301, 104
        %v2958 = vpop.permute.xlu0 %2957
        %2959 = vrot.lane.b32.xlu0 %v302, 104
        %v2960 = vpop.permute.xlu0 %2959
        %2961 = vrot.lane.b32.xlu0 %v303, 104
        %v2962 = vpop.permute.xlu0 %2961
        %2963 = vrot.lane.b32.xlu0 %v304, 104
        %v2964 = vpop.permute.xlu0 %2963
        %vm2990 = vcmask 884546
        %2991 = vst.msk [vmem:[#allocation2 - $0x2] sm:$0xfc] %vm2990, %v2916
        %vm2992 = vcmask 884544
        %2993 = vst.msk [vmem:[#allocation2 + $0x6] sm:$0xff] %vm2992, %v2918
        %2994 = vst.msk [vmem:[#allocation2 + $0xe] sm:$0xff] %vm2992, %v2920
        %2995 = vst.msk [vmem:[#allocation2 + $0x16] sm:$0xff] %vm2992, %v2922
        %2996 = vst.msk [vmem:[#allocation2 + $0x1e] sm:$0xff] %vm2992, %v2924
        %2997 = vst.msk [vmem:[#allocation2 + $0x26] sm:$0xff] %vm2992, %v2926
        %2998 = vst.msk [vmem:[#allocation2 + $0x2e] sm:$0xff] %vm2992, %v2928
        %2999 = vst.msk [vmem:[#allocation2 + $0x36] sm:$0xff] %vm2992, %v2930
        %3000 = vst.msk [vmem:[#allocation2 + $0x3e] sm:$0xff] %vm2992, %v2932
        %3001 = vst.msk [vmem:[#allocation2 + $0x46] sm:$0xff] %vm2992, %v2934
        %3002 = vst.msk [vmem:[#allocation2 + $0x4e] sm:$0xff] %vm2992, %v2936
        %3003 = vst.msk [vmem:[#allocation2 + $0x56] sm:$0xff] %vm2992, %v2938
        %3004 = vst.msk [vmem:[#allocation2 + $0x5e] sm:$0xff] %vm2992, %v2940
        %3005 = vst.msk [vmem:[#allocation2 + $0x66] sm:$0xff] %vm2992, %v2942
        %3006 = vst.msk [vmem:[#allocation2 + $0x6e] sm:$0xff] %vm2992, %v2944
        %3007 = vst.msk [vmem:[#allocation2 + $0x76] sm:$0xff] %vm2992, %v2946
        %3008 = vst.msk [vmem:[#allocation2 + $0x7e] sm:$0xff] %vm2992, %v2948
        %3009 = vst.msk [vmem:[#allocation2 + $0x86] sm:$0xff] %vm2992, %v2950
        %3010 = vst.msk [vmem:[#allocation2 + $0x8e] sm:$0xff] %vm2992, %v2952
        %3011 = vst.msk [vmem:[#allocation2 + $0x96] sm:$0xff] %vm2992, %v2954
        %3012 = vst.msk [vmem:[#allocation2 + $0x9e] sm:$0xff] %vm2992, %v2956
        %3013 = vst.msk [vmem:[#allocation2 + $0xa6] sm:$0xff] %vm2992, %v2958
        %3014 = vst.msk [vmem:[#allocation2 + $0xae] sm:$0xff] %vm2992, %v2960
        %3015 = vst.msk [vmem:[#allocation2 + $0xb6] sm:$0xff] %vm2992, %v2962
        %vm3016 = vcmask 878400
        %3017 = vst.msk [vmem:[#allocation2 + $0xbe] sm:$0x3] %vm3016, %v2964
        %3018 = vrot.lane.b32.xlu0 %v280, 108
        %v3019 = vpop.permute.xlu0 %3018
        %3020 = vrot.lane.b32.xlu0 %v281, 108
        %v3021 = vpop.permute.xlu0 %3020
        %3022 = vrot.lane.b32.xlu0 %v282, 108
        %v3023 = vpop.permute.xlu0 %3022
        %3024 = vrot.lane.b32.xlu0 %v283, 108
        %v3025 = vpop.permute.xlu0 %3024
        %3026 = vrot.lane.b32.xlu0 %v284, 108
        %v3027 = vpop.permute.xlu0 %3026
        %3028 = vrot.lane.b32.xlu0 %v285, 108
        %v3029 = vpop.permute.xlu0 %3028
        %3030 = vrot.lane.b32.xlu0 %v286, 108
        %v3031 = vpop.permute.xlu0 %3030
        %3032 = vrot.lane.b32.xlu0 %v287, 108
        %v3033 = vpop.permute.xlu0 %3032
        %3034 = vrot.lane.b32.xlu0 %v288, 108
        %v3035 = vpop.permute.xlu0 %3034
        %3036 = vrot.lane.b32.xlu0 %v289, 108
        %v3037 = vpop.permute.xlu0 %3036
        %3038 = vrot.lane.b32.xlu0 %v290, 108
        %v3039 = vpop.permute.xlu0 %3038
        %3040 = vrot.lane.b32.xlu0 %v291, 108
        %v3041 = vpop.permute.xlu0 %3040
        %3042 = vrot.lane.b32.xlu0 %v292, 108
        %v3043 = vpop.permute.xlu0 %3042
        %3044 = vrot.lane.b32.xlu0 %v293, 108
        %v3045 = vpop.permute.xlu0 %3044
        %3046 = vrot.lane.b32.xlu0 %v294, 108
        %v3047 = vpop.permute.xlu0 %3046
        %3048 = vrot.lane.b32.xlu0 %v295, 108
        %v3049 = vpop.permute.xlu0 %3048
        %3050 = vrot.lane.b32.xlu0 %v296, 108
        %v3051 = vpop.permute.xlu0 %3050
        %3052 = vrot.lane.b32.xlu0 %v297, 108
        %v3053 = vpop.permute.xlu0 %3052
        %3054 = vrot.lane.b32.xlu0 %v298, 108
        %v3055 = vpop.permute.xlu0 %3054
        %3056 = vrot.lane.b32.xlu0 %v299, 108
        %v3057 = vpop.permute.xlu0 %3056
        %3058 = vrot.lane.b32.xlu0 %v300, 108
        %v3059 = vpop.permute.xlu0 %3058
        %3060 = vrot.lane.b32.xlu0 %v301, 108
        %v3061 = vpop.permute.xlu0 %3060
        %3062 = vrot.lane.b32.xlu0 %v302, 108
        %v3063 = vpop.permute.xlu0 %3062
        %3064 = vrot.lane.b32.xlu0 %v303, 108
        %v3065 = vpop.permute.xlu0 %3064
        %3066 = vrot.lane.b32.xlu0 %v304, 108
        %v3067 = vpop.permute.xlu0 %3066
        %vm3093 = vcmask 917347
        %3094 = vst.msk [vmem:[#allocation2 - $0x3] sm:$0xf8] %vm3093, %v3019
        %vm3095 = vcmask 917344
        %3096 = vst.msk [vmem:[#allocation2 + $0x5] sm:$0xff] %vm3095, %v3021
        %3097 = vst.msk [vmem:[#allocation2 + $0xd] sm:$0xff] %vm3095, %v3023
        %3098 = vst.msk [vmem:[#allocation2 + $0x15] sm:$0xff] %vm3095, %v3025
        %3099 = vst.msk [vmem:[#allocation2 + $0x1d] sm:$0xff] %vm3095, %v3027
        %3100 = vst.msk [vmem:[#allocation2 + $0x25] sm:$0xff] %vm3095, %v3029
        %3101 = vst.msk [vmem:[#allocation2 + $0x2d] sm:$0xff] %vm3095, %v3031
        %3102 = vst.msk [vmem:[#allocation2 + $0x35] sm:$0xff] %vm3095, %v3033
        %3103 = vst.msk [vmem:[#allocation2 + $0x3d] sm:$0xff] %vm3095, %v3035
        %3104 = vst.msk [vmem:[#allocation2 + $0x45] sm:$0xff] %vm3095, %v3037
        %3105 = vst.msk [vmem:[#allocation2 + $0x4d] sm:$0xff] %vm3095, %v3039
        %3106 = vst.msk [vmem:[#allocation2 + $0x55] sm:$0xff] %vm3095, %v3041
        %3107 = vst.msk [vmem:[#allocation2 + $0x5d] sm:$0xff] %vm3095, %v3043
        %3108 = vst.msk [vmem:[#allocation2 + $0x65] sm:$0xff] %vm3095, %v3045
        %3109 = vst.msk [vmem:[#allocation2 + $0x6d] sm:$0xff] %vm3095, %v3047
        %3110 = vst.msk [vmem:[#allocation2 + $0x75] sm:$0xff] %vm3095, %v3049
        %3111 = vst.msk [vmem:[#allocation2 + $0x7d] sm:$0xff] %vm3095, %v3051
        %3112 = vst.msk [vmem:[#allocation2 + $0x85] sm:$0xff] %vm3095, %v3053
        %3113 = vst.msk [vmem:[#allocation2 + $0x8d] sm:$0xff] %vm3095, %v3055
        %3114 = vst.msk [vmem:[#allocation2 + $0x95] sm:$0xff] %vm3095, %v3057
        %3115 = vst.msk [vmem:[#allocation2 + $0x9d] sm:$0xff] %vm3095, %v3059
        %3116 = vst.msk [vmem:[#allocation2 + $0xa5] sm:$0xff] %vm3095, %v3061
        %3117 = vst.msk [vmem:[#allocation2 + $0xad] sm:$0xff] %vm3095, %v3063
        %3118 = vst.msk [vmem:[#allocation2 + $0xb5] sm:$0xff] %vm3095, %v3065
        %vm3119 = vcmask 912224
        %3120 = vst.msk [vmem:[#allocation2 + $0xbd] sm:$0x7] %vm3119, %v3067
        %3121 = vrot.lane.b32.xlu0 %v280, 112
        %v3122 = vpop.permute.xlu0 %3121
        %3123 = vrot.lane.b32.xlu0 %v281, 112
        %v3124 = vpop.permute.xlu0 %3123
        %3125 = vrot.lane.b32.xlu0 %v282, 112
        %v3126 = vpop.permute.xlu0 %3125
        %3127 = vrot.lane.b32.xlu0 %v283, 112
        %v3128 = vpop.permute.xlu0 %3127
        %3129 = vrot.lane.b32.xlu0 %v284, 112
        %v3130 = vpop.permute.xlu0 %3129
        %3131 = vrot.lane.b32.xlu0 %v285, 112
        %v3132 = vpop.permute.xlu0 %3131
        %3133 = vrot.lane.b32.xlu0 %v286, 112
        %v3134 = vpop.permute.xlu0 %3133
        %3135 = vrot.lane.b32.xlu0 %v287, 112
        %v3136 = vpop.permute.xlu0 %3135
        %3137 = vrot.lane.b32.xlu0 %v288, 112
        %v3138 = vpop.permute.xlu0 %3137
        %3139 = vrot.lane.b32.xlu0 %v289, 112
        %v3140 = vpop.permute.xlu0 %3139
        %3141 = vrot.lane.b32.xlu0 %v290, 112
        %v3142 = vpop.permute.xlu0 %3141
        %3143 = vrot.lane.b32.xlu0 %v291, 112
        %v3144 = vpop.permute.xlu0 %3143
        %3145 = vrot.lane.b32.xlu0 %v292, 112
        %v3146 = vpop.permute.xlu0 %3145
        %3147 = vrot.lane.b32.xlu0 %v293, 112
        %v3148 = vpop.permute.xlu0 %3147
        %3149 = vrot.lane.b32.xlu0 %v294, 112
        %v3150 = vpop.permute.xlu0 %3149
        %3151 = vrot.lane.b32.xlu0 %v295, 112
        %v3152 = vpop.permute.xlu0 %3151
        %3153 = vrot.lane.b32.xlu0 %v296, 112
        %v3154 = vpop.permute.xlu0 %3153
        %3155 = vrot.lane.b32.xlu0 %v297, 112
        %v3156 = vpop.permute.xlu0 %3155
        %3157 = vrot.lane.b32.xlu0 %v298, 112
        %v3158 = vpop.permute.xlu0 %3157
        %3159 = vrot.lane.b32.xlu0 %v299, 112
        %v3160 = vpop.permute.xlu0 %3159
        %3161 = vrot.lane.b32.xlu0 %v300, 112
        %v3162 = vpop.permute.xlu0 %3161
        %3163 = vrot.lane.b32.xlu0 %v301, 112
        %v3164 = vpop.permute.xlu0 %3163
        %3165 = vrot.lane.b32.xlu0 %v302, 112
        %v3166 = vpop.permute.xlu0 %3165
        %3167 = vrot.lane.b32.xlu0 %v303, 112
        %v3168 = vpop.permute.xlu0 %3167
        %3169 = vrot.lane.b32.xlu0 %v304, 112
        %v3170 = vpop.permute.xlu0 %3169
        %vm3196 = vcmask 950148
        %3197 = vst.msk [vmem:[#allocation2 - $0x4] sm:$0xf0] %vm3196, %v3122
        %vm3198 = vcmask 950144
        %3199 = vst.msk [vmem:[#allocation2 + $0x4] sm:$0xff] %vm3198, %v3124
        %3200 = vst.msk [vmem:[#allocation2 + $0xc] sm:$0xff] %vm3198, %v3126
        %3201 = vst.msk [vmem:[#allocation2 + $0x14] sm:$0xff] %vm3198, %v3128
        %3202 = vst.msk [vmem:[#allocation2 + $0x1c] sm:$0xff] %vm3198, %v3130
        %3203 = vst.msk [vmem:[#allocation2 + $0x24] sm:$0xff] %vm3198, %v3132
        %3204 = vst.msk [vmem:[#allocation2 + $0x2c] sm:$0xff] %vm3198, %v3134
        %3205 = vst.msk [vmem:[#allocation2 + $0x34] sm:$0xff] %vm3198, %v3136
        %3206 = vst.msk [vmem:[#allocation2 + $0x3c] sm:$0xff] %vm3198, %v3138
        %3207 = vst.msk [vmem:[#allocation2 + $0x44] sm:$0xff] %vm3198, %v3140
        %3208 = vst.msk [vmem:[#allocation2 + $0x4c] sm:$0xff] %vm3198, %v3142
        %3209 = vst.msk [vmem:[#allocation2 + $0x54] sm:$0xff] %vm3198, %v3144
        %3210 = vst.msk [vmem:[#allocation2 + $0x5c] sm:$0xff] %vm3198, %v3146
        %3211 = vst.msk [vmem:[#allocation2 + $0x64] sm:$0xff] %vm3198, %v3148
        %3212 = vst.msk [vmem:[#allocation2 + $0x6c] sm:$0xff] %vm3198, %v3150
        %3213 = vst.msk [vmem:[#allocation2 + $0x74] sm:$0xff] %vm3198, %v3152
        %3214 = vst.msk [vmem:[#allocation2 + $0x7c] sm:$0xff] %vm3198, %v3154
        %3215 = vst.msk [vmem:[#allocation2 + $0x84] sm:$0xff] %vm3198, %v3156
        %3216 = vst.msk [vmem:[#allocation2 + $0x8c] sm:$0xff] %vm3198, %v3158
        %3217 = vst.msk [vmem:[#allocation2 + $0x94] sm:$0xff] %vm3198, %v3160
        %3218 = vst.msk [vmem:[#allocation2 + $0x9c] sm:$0xff] %vm3198, %v3162
        %3219 = vst.msk [vmem:[#allocation2 + $0xa4] sm:$0xff] %vm3198, %v3164
        %3220 = vst.msk [vmem:[#allocation2 + $0xac] sm:$0xff] %vm3198, %v3166
        %3221 = vst.msk [vmem:[#allocation2 + $0xb4] sm:$0xff] %vm3198, %v3168
        %vm3222 = vcmask 946048
        %3223 = vst.msk [vmem:[#allocation2 + $0xbc] sm:$0xf] %vm3222, %v3170
        %3224 = vrot.lane.b32.xlu0 %v280, 116
        %v3225 = vpop.permute.xlu0 %3224
        %3226 = vrot.lane.b32.xlu0 %v281, 116
        %v3227 = vpop.permute.xlu0 %3226
        %3228 = vrot.lane.b32.xlu0 %v282, 116
        %v3229 = vpop.permute.xlu0 %3228
        %3230 = vrot.lane.b32.xlu0 %v283, 116
        %v3231 = vpop.permute.xlu0 %3230
        %3232 = vrot.lane.b32.xlu0 %v284, 116
        %v3233 = vpop.permute.xlu0 %3232
        %3234 = vrot.lane.b32.xlu0 %v285, 116
        %v3235 = vpop.permute.xlu0 %3234
        %3236 = vrot.lane.b32.xlu0 %v286, 116
        %v3237 = vpop.permute.xlu0 %3236
        %3238 = vrot.lane.b32.xlu0 %v287, 116
        %v3239 = vpop.permute.xlu0 %3238
        %3240 = vrot.lane.b32.xlu0 %v288, 116
        %v3241 = vpop.permute.xlu0 %3240
        %3242 = vrot.lane.b32.xlu0 %v289, 116
        %v3243 = vpop.permute.xlu0 %3242
        %3244 = vrot.lane.b32.xlu0 %v290, 116
        %v3245 = vpop.permute.xlu0 %3244
        %3246 = vrot.lane.b32.xlu0 %v291, 116
        %v3247 = vpop.permute.xlu0 %3246
        %3248 = vrot.lane.b32.xlu0 %v292, 116
        %v3249 = vpop.permute.xlu0 %3248
        %3250 = vrot.lane.b32.xlu0 %v293, 116
        %v3251 = vpop.permute.xlu0 %3250
        %3252 = vrot.lane.b32.xlu0 %v294, 116
        %v3253 = vpop.permute.xlu0 %3252
        %3254 = vrot.lane.b32.xlu0 %v295, 116
        %v3255 = vpop.permute.xlu0 %3254
        %3256 = vrot.lane.b32.xlu0 %v296, 116
        %v3257 = vpop.permute.xlu0 %3256
        %3258 = vrot.lane.b32.xlu0 %v297, 116
        %v3259 = vpop.permute.xlu0 %3258
        %3260 = vrot.lane.b32.xlu0 %v298, 116
        %v3261 = vpop.permute.xlu0 %3260
        %3262 = vrot.lane.b32.xlu0 %v299, 116
        %v3263 = vpop.permute.xlu0 %3262
        %3264 = vrot.lane.b32.xlu0 %v300, 116
        %v3265 = vpop.permute.xlu0 %3264
        %3266 = vrot.lane.b32.xlu0 %v301, 116
        %v3267 = vpop.permute.xlu0 %3266
        %3268 = vrot.lane.b32.xlu0 %v302, 116
        %v3269 = vpop.permute.xlu0 %3268
        %3270 = vrot.lane.b32.xlu0 %v303, 116
        %v3271 = vpop.permute.xlu0 %3270
        %3272 = vrot.lane.b32.xlu0 %v304, 116
        %v3273 = vpop.permute.xlu0 %3272
        %vm3299 = vcmask 982949
        %3300 = vst.msk [vmem:[#allocation2 - $0x5] sm:$0xe0] %vm3299, %v3225
        %vm3301 = vcmask 982944
        %3302 = vst.msk [vmem:[#allocation2 + $0x3] sm:$0xff] %vm3301, %v3227
        %3303 = vst.msk [vmem:[#allocation2 + $0xb] sm:$0xff] %vm3301, %v3229
        %3304 = vst.msk [vmem:[#allocation2 + $0x13] sm:$0xff] %vm3301, %v3231
        %3305 = vst.msk [vmem:[#allocation2 + $0x1b] sm:$0xff] %vm3301, %v3233
        %3306 = vst.msk [vmem:[#allocation2 + $0x23] sm:$0xff] %vm3301, %v3235
        %3307 = vst.msk [vmem:[#allocation2 + $0x2b] sm:$0xff] %vm3301, %v3237
        %3308 = vst.msk [vmem:[#allocation2 + $0x33] sm:$0xff] %vm3301, %v3239
        %3309 = vst.msk [vmem:[#allocation2 + $0x3b] sm:$0xff] %vm3301, %v3241
        %3310 = vst.msk [vmem:[#allocation2 + $0x43] sm:$0xff] %vm3301, %v3243
        %3311 = vst.msk [vmem:[#allocation2 + $0x4b] sm:$0xff] %vm3301, %v3245
        %3312 = vst.msk [vmem:[#allocation2 + $0x53] sm:$0xff] %vm3301, %v3247
        %3313 = vst.msk [vmem:[#allocation2 + $0x5b] sm:$0xff] %vm3301, %v3249
        %3314 = vst.msk [vmem:[#allocation2 + $0x63] sm:$0xff] %vm3301, %v3251
        %3315 = vst.msk [vmem:[#allocation2 + $0x6b] sm:$0xff] %vm3301, %v3253
        %3316 = vst.msk [vmem:[#allocation2 + $0x73] sm:$0xff] %vm3301, %v3255
        %3317 = vst.msk [vmem:[#allocation2 + $0x7b] sm:$0xff] %vm3301, %v3257
        %3318 = vst.msk [vmem:[#allocation2 + $0x83] sm:$0xff] %vm3301, %v3259
        %3319 = vst.msk [vmem:[#allocation2 + $0x8b] sm:$0xff] %vm3301, %v3261
        %3320 = vst.msk [vmem:[#allocation2 + $0x93] sm:$0xff] %vm3301, %v3263
        %3321 = vst.msk [vmem:[#allocation2 + $0x9b] sm:$0xff] %vm3301, %v3265
        %3322 = vst.msk [vmem:[#allocation2 + $0xa3] sm:$0xff] %vm3301, %v3267
        %3323 = vst.msk [vmem:[#allocation2 + $0xab] sm:$0xff] %vm3301, %v3269
        %3324 = vst.msk [vmem:[#allocation2 + $0xb3] sm:$0xff] %vm3301, %v3271
        %vm3325 = vcmask 979872
        %3326 = vst.msk [vmem:[#allocation2 + $0xbb] sm:$0x1f] %vm3325, %v3273
        %3327 = vrot.lane.b32.xlu0 %v280, 120
        %v3328 = vpop.permute.xlu0 %3327
        %3329 = vrot.lane.b32.xlu0 %v281, 120
        %v3330 = vpop.permute.xlu0 %3329
        %3331 = vrot.lane.b32.xlu0 %v282, 120
        %v3332 = vpop.permute.xlu0 %3331
        %3333 = vrot.lane.b32.xlu0 %v283, 120
        %v3334 = vpop.permute.xlu0 %3333
        %3335 = vrot.lane.b32.xlu0 %v284, 120
        %v3336 = vpop.permute.xlu0 %3335
        %3337 = vrot.lane.b32.xlu0 %v285, 120
        %v3338 = vpop.permute.xlu0 %3337
        %3339 = vrot.lane.b32.xlu0 %v286, 120
        %v3340 = vpop.permute.xlu0 %3339
        %3341 = vrot.lane.b32.xlu0 %v287, 120
        %v3342 = vpop.permute.xlu0 %3341
        %3343 = vrot.lane.b32.xlu0 %v288, 120
        %v3344 = vpop.permute.xlu0 %3343
        %3345 = vrot.lane.b32.xlu0 %v289, 120
        %v3346 = vpop.permute.xlu0 %3345
        %3347 = vrot.lane.b32.xlu0 %v290, 120
        %v3348 = vpop.permute.xlu0 %3347
        %3349 = vrot.lane.b32.xlu0 %v291, 120
        %v3350 = vpop.permute.xlu0 %3349
        %3351 = vrot.lane.b32.xlu0 %v292, 120
        %v3352 = vpop.permute.xlu0 %3351
        %3353 = vrot.lane.b32.xlu0 %v293, 120
        %v3354 = vpop.permute.xlu0 %3353
        %3355 = vrot.lane.b32.xlu0 %v294, 120
        %v3356 = vpop.permute.xlu0 %3355
        %3357 = vrot.lane.b32.xlu0 %v295, 120
        %v3358 = vpop.permute.xlu0 %3357
        %3359 = vrot.lane.b32.xlu0 %v296, 120
        %v3360 = vpop.permute.xlu0 %3359
        %3361 = vrot.lane.b32.xlu0 %v297, 120
        %v3362 = vpop.permute.xlu0 %3361
        %3363 = vrot.lane.b32.xlu0 %v298, 120
        %v3364 = vpop.permute.xlu0 %3363
        %3365 = vrot.lane.b32.xlu0 %v299, 120
        %v3366 = vpop.permute.xlu0 %3365
        %3367 = vrot.lane.b32.xlu0 %v300, 120
        %v3368 = vpop.permute.xlu0 %3367
        %3369 = vrot.lane.b32.xlu0 %v301, 120
        %v3370 = vpop.permute.xlu0 %3369
        %3371 = vrot.lane.b32.xlu0 %v302, 120
        %v3372 = vpop.permute.xlu0 %3371
        %3373 = vrot.lane.b32.xlu0 %v303, 120
        %v3374 = vpop.permute.xlu0 %3373
        %3375 = vrot.lane.b32.xlu0 %v304, 120
        %v3376 = vpop.permute.xlu0 %3375
        %vm3402 = vcmask 1015750
        %3403 = vst.msk [vmem:[#allocation2 - $0x6] sm:$0xc0] %vm3402, %v3328
        %vm3404 = vcmask 1015744
        %3405 = vst.msk [vmem:[#allocation2 + $0x2] sm:$0xff] %vm3404, %v3330
        %3406 = vst.msk [vmem:[#allocation2 + $0xa] sm:$0xff] %vm3404, %v3332
        %3407 = vst.msk [vmem:[#allocation2 + $0x12] sm:$0xff] %vm3404, %v3334
        %3408 = vst.msk [vmem:[#allocation2 + $0x1a] sm:$0xff] %vm3404, %v3336
        %3409 = vst.msk [vmem:[#allocation2 + $0x22] sm:$0xff] %vm3404, %v3338
        %3410 = vst.msk [vmem:[#allocation2 + $0x2a] sm:$0xff] %vm3404, %v3340
        %3411 = vst.msk [vmem:[#allocation2 + $0x32] sm:$0xff] %vm3404, %v3342
        %3412 = vst.msk [vmem:[#allocation2 + $0x3a] sm:$0xff] %vm3404, %v3344
        %3413 = vst.msk [vmem:[#allocation2 + $0x42] sm:$0xff] %vm3404, %v3346
        %3414 = vst.msk [vmem:[#allocation2 + $0x4a] sm:$0xff] %vm3404, %v3348
        %3415 = vst.msk [vmem:[#allocation2 + $0x52] sm:$0xff] %vm3404, %v3350
        %3416 = vst.msk [vmem:[#allocation2 + $0x5a] sm:$0xff] %vm3404, %v3352
        %3417 = vst.msk [vmem:[#allocation2 + $0x62] sm:$0xff] %vm3404, %v3354
        %3418 = vst.msk [vmem:[#allocation2 + $0x6a] sm:$0xff] %vm3404, %v3356
        %3419 = vst.msk [vmem:[#allocation2 + $0x72] sm:$0xff] %vm3404, %v3358
        %3420 = vst.msk [vmem:[#allocation2 + $0x7a] sm:$0xff] %vm3404, %v3360
        %3421 = vst.msk [vmem:[#allocation2 + $0x82] sm:$0xff] %vm3404, %v3362
        %3422 = vst.msk [vmem:[#allocation2 + $0x8a] sm:$0xff] %vm3404, %v3364
        %3423 = vst.msk [vmem:[#allocation2 + $0x92] sm:$0xff] %vm3404, %v3366
        %3424 = vst.msk [vmem:[#allocation2 + $0x9a] sm:$0xff] %vm3404, %v3368
        %3425 = vst.msk [vmem:[#allocation2 + $0xa2] sm:$0xff] %vm3404, %v3370
        %3426 = vst.msk [vmem:[#allocation2 + $0xaa] sm:$0xff] %vm3404, %v3372
        %3427 = vst.msk [vmem:[#allocation2 + $0xb2] sm:$0xff] %vm3404, %v3374
        %vm3428 = vcmask 1013696
        %3429 = vst.msk [vmem:[#allocation2 + $0xba] sm:$0x3f] %vm3428, %v3376
        %3430 = vrot.lane.b32.xlu0 %v280, 124
        %v3431 = vpop.permute.xlu0 %3430
        %3432 = vrot.lane.b32.xlu0 %v281, 124
        %v3433 = vpop.permute.xlu0 %3432
        %3434 = vrot.lane.b32.xlu0 %v282, 124
        %v3435 = vpop.permute.xlu0 %3434
        %3436 = vrot.lane.b32.xlu0 %v283, 124
        %v3437 = vpop.permute.xlu0 %3436
        %3438 = vrot.lane.b32.xlu0 %v284, 124
        %v3439 = vpop.permute.xlu0 %3438
        %3440 = vrot.lane.b32.xlu0 %v285, 124
        %v3441 = vpop.permute.xlu0 %3440
        %3442 = vrot.lane.b32.xlu0 %v286, 124
        %v3443 = vpop.permute.xlu0 %3442
        %3444 = vrot.lane.b32.xlu0 %v287, 124
        %v3445 = vpop.permute.xlu0 %3444
        %3446 = vrot.lane.b32.xlu0 %v288, 124
        %v3447 = vpop.permute.xlu0 %3446
        %3448 = vrot.lane.b32.xlu0 %v289, 124
        %v3449 = vpop.permute.xlu0 %3448
        %3450 = vrot.lane.b32.xlu0 %v290, 124
        %v3451 = vpop.permute.xlu0 %3450
        %3452 = vrot.lane.b32.xlu0 %v291, 124
        %v3453 = vpop.permute.xlu0 %3452
        %3454 = vrot.lane.b32.xlu0 %v292, 124
        %v3455 = vpop.permute.xlu0 %3454
        %3456 = vrot.lane.b32.xlu0 %v293, 124
        %v3457 = vpop.permute.xlu0 %3456
        %3458 = vrot.lane.b32.xlu0 %v294, 124
        %v3459 = vpop.permute.xlu0 %3458
        %3460 = vrot.lane.b32.xlu0 %v295, 124
        %v3461 = vpop.permute.xlu0 %3460
        %3462 = vrot.lane.b32.xlu0 %v296, 124
        %v3463 = vpop.permute.xlu0 %3462
        %3464 = vrot.lane.b32.xlu0 %v297, 124
        %v3465 = vpop.permute.xlu0 %3464
        %3466 = vrot.lane.b32.xlu0 %v298, 124
        %v3467 = vpop.permute.xlu0 %3466
        %3468 = vrot.lane.b32.xlu0 %v299, 124
        %v3469 = vpop.permute.xlu0 %3468
        %3470 = vrot.lane.b32.xlu0 %v300, 124
        %v3471 = vpop.permute.xlu0 %3470
        %3472 = vrot.lane.b32.xlu0 %v301, 124
        %v3473 = vpop.permute.xlu0 %3472
        %3474 = vrot.lane.b32.xlu0 %v302, 124
        %v3475 = vpop.permute.xlu0 %3474
        %3476 = vrot.lane.b32.xlu0 %v303, 124
        %v3477 = vpop.permute.xlu0 %3476
        %3478 = vrot.lane.b32.xlu0 %v304, 124
        %v3479 = vpop.permute.xlu0 %3478
        %vm3505 = vcmask 1048551
        %3506 = vst.msk [vmem:[#allocation2 - $0x7] sm:$0x80] %vm3505, %v3431
        %vm3507 = vcmask 1048544
        %3508 = vst.msk [vmem:[#allocation2 + $0x1] sm:$0xff] %vm3507, %v3433
        %3509 = vst.msk [vmem:[#allocation2 + $0x9] sm:$0xff] %vm3507, %v3435
        %3510 = vst.msk [vmem:[#allocation2 + $0x11] sm:$0xff] %vm3507, %v3437
        %3511 = vst.msk [vmem:[#allocation2 + $0x19] sm:$0xff] %vm3507, %v3439
        %3512 = vst.msk [vmem:[#allocation2 + $0x21] sm:$0xff] %vm3507, %v3441
        %3513 = vst.msk [vmem:[#allocation2 + $0x29] sm:$0xff] %vm3507, %v3443
        %3514 = vst.msk [vmem:[#allocation2 + $0x31] sm:$0xff] %vm3507, %v3445
        %3515 = vst.msk [vmem:[#allocation2 + $0x39] sm:$0xff] %vm3507, %v3447
        %3516 = vst.msk [vmem:[#allocation2 + $0x41] sm:$0xff] %vm3507, %v3449
        %3517 = vst.msk [vmem:[#allocation2 + $0x49] sm:$0xff] %vm3507, %v3451
        %3518 = vst.msk [vmem:[#allocation2 + $0x51] sm:$0xff] %vm3507, %v3453
        %3519 = vst.msk [vmem:[#allocation2 + $0x59] sm:$0xff] %vm3507, %v3455
        %3520 = vst.msk [vmem:[#allocation2 + $0x61] sm:$0xff] %vm3507, %v3457
        %3521 = vst.msk [vmem:[#allocation2 + $0x69] sm:$0xff] %vm3507, %v3459
        %3522 = vst.msk [vmem:[#allocation2 + $0x71] sm:$0xff] %vm3507, %v3461
        %3523 = vst.msk [vmem:[#allocation2 + $0x79] sm:$0xff] %vm3507, %v3463
        %3524 = vst.msk [vmem:[#allocation2 + $0x81] sm:$0xff] %vm3507, %v3465
        %3525 = vst.msk [vmem:[#allocation2 + $0x89] sm:$0xff] %vm3507, %v3467
        %3526 = vst.msk [vmem:[#allocation2 + $0x91] sm:$0xff] %vm3507, %v3469
        %3527 = vst.msk [vmem:[#allocation2 + $0x99] sm:$0xff] %vm3507, %v3471
        %3528 = vst.msk [vmem:[#allocation2 + $0xa1] sm:$0xff] %vm3507, %v3473
        %3529 = vst.msk [vmem:[#allocation2 + $0xa9] sm:$0xff] %vm3507, %v3475
        %3530 = vst.msk [vmem:[#allocation2 + $0xb1] sm:$0xff] %vm3507, %v3477
        %vm3531 = vcmask 1047520
        %3532 = vst.msk [vmem:[#allocation2 + $0xb9] sm:$0x7f] %vm3531, %v3479
        %v3533 = vld [vmem:[#allocation2] sm:$0xff]
        %v3534 = vld [vmem:[#allocation2 + $0x8] sm:$0xff]
        %v3535 = vld [vmem:[#allocation2 + $0x10] sm:$0xff]
        %v3536 = vld [vmem:[#allocation2 + $0x18] sm:$0xff]
        %v3537 = vld [vmem:[#allocation2 + $0x20] sm:$0xff]
        %v3538 = vld [vmem:[#allocation2 + $0x28] sm:$0xff]
        %v3539 = vld [vmem:[#allocation2 + $0x30] sm:$0xff]
        %v3540 = vld [vmem:[#allocation2 + $0x38] sm:$0xff]
        %v3541 = vld [vmem:[#allocation2 + $0x40] sm:$0xff]
        %v3542 = vld [vmem:[#allocation2 + $0x48] sm:$0xff]
        %v3543 = vld [vmem:[#allocation2 + $0x50] sm:$0xff]
        %v3544 = vld [vmem:[#allocation2 + $0x58] sm:$0xff]
        %v3545 = vld [vmem:[#allocation2 + $0x60] sm:$0xff]
        %v3546 = vld [vmem:[#allocation2 + $0x68] sm:$0xff]
        %v3547 = vld [vmem:[#allocation2 + $0x70] sm:$0xff]
        %v3548 = vld [vmem:[#allocation2 + $0x78] sm:$0xff]
        %v3549 = vld [vmem:[#allocation2 + $0x80] sm:$0xff]
        %v3550 = vld [vmem:[#allocation2 + $0x88] sm:$0xff]
        %v3551 = vld [vmem:[#allocation2 + $0x90] sm:$0xff]
        %v3552 = vld [vmem:[#allocation2 + $0x98] sm:$0xff]
        %v3553 = vld [vmem:[#allocation2 + $0xa0] sm:$0xff]
        %v3554 = vld [vmem:[#allocation2 + $0xa8] sm:$0xff]
        %v3555 = vld [vmem:[#allocation2 + $0xb0] sm:$0xff]
        %v3556 = vld [vmem:[#allocation2 + $0xb8] sm:$0xff]
        %v3557 = vpack.c.bf16 %v3534, %v3533
        %v3558 = vpack.c.bf16 %v3536, %v3535
        %v3559 = vpack.c.bf16 %v3538, %v3537
        %v3560 = vpack.c.bf16 %v3540, %v3539
        %v3561 = vpack.c.bf16 %v3542, %v3541
        %v3562 = vpack.c.bf16 %v3544, %v3543
        %v3563 = vpack.c.bf16 %v3546, %v3545
        %v3564 = vpack.c.bf16 %v3548, %v3547
        %v3565 = vpack.c.bf16 %v3550, %v3549
        %v3566 = vpack.c.bf16 %v3552, %v3551
        %v3567 = vpack.c.bf16 %v3554, %v3553
        %v3568 = vpack.c.bf16 %v3556, %v3555
        %v3569 = vld [vmem:[%s1] sm:$0xf]
        %v3570 = vld [vmem:[%s1 + $0x4] sm:$0xf]
        %v3571 = vld [vmem:[%s1 + $0x8] sm:$0xf]
        %v3572 = vld [vmem:[%s1 + $0xc] sm:$0xf]
        %v3573 = vld [vmem:[%s1 + $0x10] sm:$0xf]
        %v3574 = vld [vmem:[%s1 + $0x14] sm:$0xf]
        %v3575 = vld [vmem:[%s1 + $0x18] sm:$0xf]
        %v3576 = vld [vmem:[%s1 + $0x1c] sm:$0xf]
        %v3577 = vld [vmem:[%s1 + $0x20] sm:$0xf]
        %v3578 = vld [vmem:[%s1 + $0x24] sm:$0xf]
        %v3579 = vld [vmem:[%s1 + $0x28] sm:$0xf]
        %v3580 = vld [vmem:[%s1 + $0x2c] sm:$0xf]
        %v3581 = vld [vmem:[%s1 + $0x30] sm:$0xf]
        %v3582 = vld [vmem:[%s1 + $0x34] sm:$0xf]
        %v3583 = vld [vmem:[%s1 + $0x38] sm:$0xf]
        %v3584 = vld [vmem:[%s1 + $0x3c] sm:$0xf]
        %v3585 = vld [vmem:[%s2] sm:$0x1]
        %v3587 = vlaneseq
        %v3588 = vshrl.u32 %v3587, 7
        %v3589 = vsub.s32 0, %v3588
        %v3590 = vrot.slane %v3585, %v3589
        %v3608 = vunpack.c.l.b16 %v3569
        %v3609 = vunpack.c.l.b16 %v3570
        %v3610 = vunpack.c.l.b16 %v3571
        %v3611 = vunpack.c.l.b16 %v3572
        %v3612 = vunpack.c.l.b16 %v3573
        %v3613 = vunpack.c.l.b16 %v3574
        %v3614 = vunpack.c.l.b16 %v3575
        %v3615 = vunpack.c.l.b16 %v3576
        %v3616 = vunpack.c.l.b16 %v3577
        %v3617 = vunpack.c.l.b16 %v3578
        %v3618 = vunpack.c.l.b16 %v3579
        %v3619 = vunpack.c.l.b16 %v3580
        %v3620 = vunpack.c.l.b16 %v3581
        %v3621 = vunpack.c.l.b16 %v3582
        %v3622 = vunpack.c.l.b16 %v3583
        %v3623 = vunpack.c.l.b16 %v3584
        %v3624 = vpack.c.b16 %v3609, %v3608
        %v3625 = vpack.c.b16 %v3611, %v3610
        %v3626 = vpack.c.b16 %v3613, %v3612
        %v3627 = vpack.c.b16 %v3615, %v3614
        %v3628 = vpack.c.b16 %v3617, %v3616
        %v3629 = vpack.c.b16 %v3619, %v3618
        %v3630 = vpack.c.b16 %v3621, %v3620
        %v3631 = vpack.c.b16 %v3623, %v3622
        %3640 = vmatprep.subr.bf16.mxu0 0
        %3641 = vmatpush1.bf16.msra.mxu0 %v3624
        %3642 = vmatprep.subr.bf16.mxu0 0
        %3643 = vmatpush1.bf16.msra.mxu0 %v3625
        %3644 = vmatprep.subr.bf16.mxu0 0
        %3645 = vmatpush1.bf16.msra.mxu0 %v3626
        %3646 = vmatprep.subr.bf16.mxu0 0
        %3647 = vmatpush1.bf16.msra.mxu0 %v3627
        %3648 = vmatprep.subr.bf16.mxu0 0
        %3649 = vmatpush1.bf16.msra.mxu0 %v3628
        %3650 = vmatprep.subr.bf16.mxu0 0
        %3651 = vmatpush1.bf16.msra.mxu0 %v3629
        %3652 = vmatprep.subr.bf16.mxu0 0
        %3653 = vmatpush1.bf16.msra.mxu0 %v3630
        %3654 = vmatprep.subr.bf16.mxu0 0
        %3655 = vmatpush1.bf16.msra.mxu0 %v3631
        %3656 = vmatprep.subr.bf16.mxu0 0
        %3657 = vmatpush1.bf16.msra.mxu0 0
        %3658 = vmatprep.subr.bf16.mxu0 0
        %3659 = vmatpush1.bf16.msra.mxu0 0
        %3660 = vmatprep.subr.bf16.mxu0 0
        %3661 = vmatpush1.bf16.msra.mxu0 0
        %3662 = vmatprep.subr.bf16.mxu0 0
        %3663 = vmatpush1.bf16.msra.mxu0 0
        %3664 = vmatprep.subr.bf16.mxu0 0
        %3665 = vmatpush1.bf16.msra.mxu0 0
        %3666 = vmatprep.subr.bf16.mxu0 0
        %3667 = vmatpush1.bf16.msra.mxu0 0
        %3668 = vmatprep.subr.bf16.mxu0 0
        %3669 = vmatpush1.bf16.msra.mxu0 0
        %3670 = vmatprep.subr.bf16.mxu0 0
        %3671 = vmatpush1.bf16.msra.mxu0 0
        %3672 = vmatprep.mubr.bf16.mxu0 0
        %3673 = vmatmul.mubr.bf16.gmra.mrb[0].mxu0 %v3557
        %v3674 = vpop.f32.mrb[0].mxu0
        %v3675 = vadd.f32 %v3590, %v3674
        %v3676 = vpop.f32.mrb[0].mxu0
        %v3677 = vpop.f32.mrb[0].mxu0
        %v3678 = vadd.f32 %v3590, %v3677
        %v3679 = vpop.f32.mrb[0].mxu0
        %3680 = vmatprep.mubr.bf16.mxu0 0
        %3681 = vmatmul.mubr.bf16.gmra.mrb[0].mxu0 %v3558
        %v3682 = vpop.f32.mrb[0].mxu0
        %v3683 = vadd.f32 %v3590, %v3682
        %v3684 = vpop.f32.mrb[0].mxu0
        %v3685 = vpop.f32.mrb[0].mxu0
        %v3686 = vadd.f32 %v3590, %v3685
        %v3687 = vpop.f32.mrb[0].mxu0
        %3688 = vmatprep.mubr.bf16.mxu0 0
        %3689 = vmatmul.mubr.bf16.gmra.mrb[0].mxu0 %v3559
        %v3690 = vpop.f32.mrb[0].mxu0
        %v3691 = vadd.f32 %v3590, %v3690
        %v3692 = vpop.f32.mrb[0].mxu0
        %v3693 = vpop.f32.mrb[0].mxu0
        %v3694 = vadd.f32 %v3590, %v3693
        %v3695 = vpop.f32.mrb[0].mxu0
        %3696 = vmatprep.mubr.bf16.mxu0 0
        %3697 = vmatmul.mubr.bf16.gmra.mrb[0].mxu0 %v3560
        %v3698 = vpop.f32.mrb[0].mxu0
        %v3699 = vadd.f32 %v3590, %v3698
        %v3700 = vpop.f32.mrb[0].mxu0
        %v3701 = vpop.f32.mrb[0].mxu0
        %v3702 = vadd.f32 %v3590, %v3701
        %v3703 = vpop.f32.mrb[0].mxu0
        %3704 = vmatprep.mubr.bf16.mxu0 0
        %3705 = vmatmul.mubr.bf16.gmra.mrb[0].mxu0 %v3561
        %v3706 = vpop.f32.mrb[0].mxu0
        %v3707 = vadd.f32 %v3590, %v3706
        %v3708 = vpop.f32.mrb[0].mxu0
        %v3709 = vpop.f32.mrb[0].mxu0
        %v3710 = vadd.f32 %v3590, %v3709
        %v3711 = vpop.f32.mrb[0].mxu0
        %3712 = vmatprep.mubr.bf16.mxu0 0
        %3713 = vmatmul.mubr.bf16.gmra.mrb[0].mxu0 %v3562
        %v3714 = vpop.f32.mrb[0].mxu0
        %v3715 = vadd.f32 %v3590, %v3714
        %v3716 = vpop.f32.mrb[0].mxu0
        %v3717 = vpop.f32.mrb[0].mxu0
        %v3718 = vadd.f32 %v3590, %v3717
        %v3719 = vpop.f32.mrb[0].mxu0
        %3720 = vmatprep.mubr.bf16.mxu0 0
        %3721 = vmatmul.mubr.bf16.gmra.mrb[0].mxu0 %v3563
        %v3722 = vpop.f32.mrb[0].mxu0
        %v3723 = vadd.f32 %v3590, %v3722
        %v3724 = vpop.f32.mrb[0].mxu0
        %v3725 = vpop.f32.mrb[0].mxu0
        %v3726 = vadd.f32 %v3590, %v3725
        %v3727 = vpop.f32.mrb[0].mxu0
        %3728 = vmatprep.mubr.bf16.mxu0 0
        %3729 = vmatmul.mubr.bf16.gmra.mrb[0].mxu0 %v3564
        %v3730 = vpop.f32.mrb[0].mxu0
        %v3731 = vadd.f32 %v3590, %v3730
        %v3732 = vpop.f32.mrb[0].mxu0
        %v3733 = vpop.f32.mrb[0].mxu0
        %v3734 = vadd.f32 %v3590, %v3733
        %v3735 = vpop.f32.mrb[0].mxu0
        %3736 = vmatprep.mubr.bf16.mxu0 0
        %3737 = vmatmul.mubr.bf16.gmra.mrb[0].mxu0 %v3565
        %v3738 = vpop.f32.mrb[0].mxu0
        %v3739 = vadd.f32 %v3590, %v3738
        %v3740 = vpop.f32.mrb[0].mxu0
        %v3741 = vpop.f32.mrb[0].mxu0
        %v3742 = vadd.f32 %v3590, %v3741
        %v3743 = vpop.f32.mrb[0].mxu0
        %3744 = vmatprep.mubr.bf16.mxu0 0
        %3745 = vmatmul.mubr.bf16.gmra.mrb[0].mxu0 %v3566
        %v3746 = vpop.f32.mrb[0].mxu0
        %v3747 = vadd.f32 %v3590, %v3746
        %v3748 = vpop.f32.mrb[0].mxu0
        %v3749 = vpop.f32.mrb[0].mxu0
        %v3750 = vadd.f32 %v3590, %v3749
        %v3751 = vpop.f32.mrb[0].mxu0
        %3752 = vmatprep.mubr.bf16.mxu0 0
        %3753 = vmatmul.mubr.bf16.gmra.mrb[0].mxu0 %v3567
        %v3754 = vpop.f32.mrb[0].mxu0
        %v3755 = vadd.f32 %v3590, %v3754
        %v3756 = vpop.f32.mrb[0].mxu0
        %v3757 = vpop.f32.mrb[0].mxu0
        %v3758 = vadd.f32 %v3590, %v3757
        %v3759 = vpop.f32.mrb[0].mxu0
        %3760 = vmatprep.mubr.bf16.mxu0 0
        %3761 = vmatmul.mubr.bf16.gmra.mrb[0].mxu0 %v3568
        %v3762 = vpop.f32.mrb[0].mxu0
        %v3763 = vadd.f32 %v3590, %v3762
        %v3764 = vpop.f32.mrb[0].mxu0
        %v3765 = vpop.f32.mrb[0].mxu0
        %v3766 = vadd.f32 %v3590, %v3765
        %v3767 = vpop.f32.mrb[0].mxu0
        %3768 = vdwg.mxu0
        %vm3769 = vcmp.gt.f32.partialorder %v3675, 0.0
        %vm3770 = vcmp.gt.f32.partialorder %v3678, 0.0
        %vm3771 = vcmp.gt.f32.partialorder %v3683, 0.0
        %vm3772 = vcmp.gt.f32.partialorder %v3686, 0.0
        %vm3773 = vcmp.gt.f32.partialorder %v3691, 0.0
        %vm3774 = vcmp.gt.f32.partialorder %v3694, 0.0
        %vm3775 = vcmp.gt.f32.partialorder %v3699, 0.0
        %vm3776 = vcmp.gt.f32.partialorder %v3702, 0.0
        %vm3777 = vcmp.gt.f32.partialorder %v3707, 0.0
        %vm3778 = vcmp.gt.f32.partialorder %v3710, 0.0
        %vm3779 = vcmp.gt.f32.partialorder %v3715, 0.0
        %vm3780 = vcmp.gt.f32.partialorder %v3718, 0.0
        %vm3781 = vcmp.gt.f32.partialorder %v3723, 0.0
        %vm3782 = vcmp.gt.f32.partialorder %v3726, 0.0
        %vm3783 = vcmp.gt.f32.partialorder %v3731, 0.0
        %vm3784 = vcmp.gt.f32.partialorder %v3734, 0.0
        %vm3785 = vcmp.gt.f32.partialorder %v3739, 0.0
        %vm3786 = vcmp.gt.f32.partialorder %v3742, 0.0
        %vm3787 = vcmp.gt.f32.partialorder %v3747, 0.0
        %vm3788 = vcmp.gt.f32.partialorder %v3750, 0.0
        %vm3789 = vcmp.gt.f32.partialorder %v3755, 0.0
        %vm3790 = vcmp.gt.f32.partialorder %v3758, 0.0
        %vm3791 = vcmp.gt.f32.partialorder %v3763, 0.0
        %vm3792 = vcmp.gt.f32.partialorder %v3766, 0.0
        %v3793 = vmin.f32 %v3675, 0.0
        %v3794 = vmin.f32 %v3678, 0.0
        %v3795 = vmin.f32 %v3683, 0.0
        %v3796 = vmin.f32 %v3686, 0.0
        %v3797 = vmin.f32 %v3691, 0.0
        %v3798 = vmin.f32 %v3694, 0.0
        %v3799 = vmin.f32 %v3699, 0.0
        %v3800 = vmin.f32 %v3702, 0.0
        %v3801 = vmin.f32 %v3707, 0.0
        %v3802 = vmin.f32 %v3710, 0.0
        %v3803 = vmin.f32 %v3715, 0.0
        %v3804 = vmin.f32 %v3718, 0.0
        %v3805 = vmin.f32 %v3723, 0.0
        %v3806 = vmin.f32 %v3726, 0.0
        %v3807 = vmin.f32 %v3731, 0.0
        %v3808 = vmin.f32 %v3734, 0.0
        %v3809 = vmin.f32 %v3739, 0.0
        %v3810 = vmin.f32 %v3742, 0.0
        %v3811 = vmin.f32 %v3747, 0.0
        %v3812 = vmin.f32 %v3750, 0.0
        %v3813 = vmin.f32 %v3755, 0.0
        %v3814 = vmin.f32 %v3758, 0.0
        %v3815 = vmin.f32 %v3763, 0.0
        %v3816 = vmin.f32 %v3766, 0.0
        %v3817 = vmul.f32 %v3793, 1.442695
        %v3818 = vpow.pop %v3817
        %v3819 = vmul.f32 %v3794, 1.442695
        %v3820 = vpow.pop %v3819
        %v3821 = vmul.f32 %v3795, 1.442695
        %v3822 = vpow.pop %v3821
        %v3823 = vmul.f32 %v3796, 1.442695
        %v3824 = vpow.pop %v3823
        %v3825 = vmul.f32 %v3797, 1.442695
        %v3826 = vpow.pop %v3825
        %v3827 = vmul.f32 %v3798, 1.442695
        %v3828 = vpow.pop %v3827
        %v3829 = vmul.f32 %v3799, 1.442695
        %v3830 = vpow.pop %v3829
        %v3831 = vmul.f32 %v3800, 1.442695
        %v3832 = vpow.pop %v3831
        %v3833 = vmul.f32 %v3801, 1.442695
        %v3834 = vpow.pop %v3833
        %v3835 = vmul.f32 %v3802, 1.442695
        %v3836 = vpow.pop %v3835
        %v3837 = vmul.f32 %v3803, 1.442695
        %v3838 = vpow.pop %v3837
        %v3839 = vmul.f32 %v3804, 1.442695
        %v3840 = vpow.pop %v3839
        %v3841 = vmul.f32 %v3805, 1.442695
        %v3842 = vpow.pop %v3841
        %v3843 = vmul.f32 %v3806, 1.442695
        %v3844 = vpow.pop %v3843
        %v3845 = vmul.f32 %v3807, 1.442695
        %v3846 = vpow.pop %v3845
        %v3847 = vmul.f32 %v3808, 1.442695
        %v3848 = vpow.pop %v3847
        %v3849 = vmul.f32 %v3809, 1.442695
        %v3850 = vpow.pop %v3849
        %v3851 = vmul.f32 %v3810, 1.442695
        %v3852 = vpow.pop %v3851
        %v3853 = vmul.f32 %v3811, 1.442695
        %v3854 = vpow.pop %v3853
        %v3855 = vmul.f32 %v3812, 1.442695
        %v3856 = vpow.pop %v3855
        %v3857 = vmul.f32 %v3813, 1.442695
        %v3858 = vpow.pop %v3857
        %v3859 = vmul.f32 %v3814, 1.442695
        %v3860 = vpow.pop %v3859
        %v3861 = vmul.f32 %v3815, 1.442695
        %v3862 = vpow.pop %v3861
        %v3863 = vmul.f32 %v3816, 1.442695
        %v3864 = vpow.pop %v3863
        %v3865 = vsub.f32 %v3818, 1.0
        %v3866 = vsub.f32 %v3820, 1.0
        %v3867 = vsub.f32 %v3822, 1.0
        %v3868 = vsub.f32 %v3824, 1.0
        %v3869 = vsub.f32 %v3826, 1.0
        %v3870 = vsub.f32 %v3828, 1.0
        %v3871 = vsub.f32 %v3830, 1.0
        %v3872 = vsub.f32 %v3832, 1.0
        %v3873 = vsub.f32 %v3834, 1.0
        %v3874 = vsub.f32 %v3836, 1.0
        %v3875 = vsub.f32 %v3838, 1.0
        %v3876 = vsub.f32 %v3840, 1.0
        %v3877 = vsub.f32 %v3842, 1.0
        %v3878 = vsub.f32 %v3844, 1.0
        %v3879 = vsub.f32 %v3846, 1.0
        %v3880 = vsub.f32 %v3848, 1.0
        %v3881 = vsub.f32 %v3850, 1.0
        %v3882 = vsub.f32 %v3852, 1.0
        %v3883 = vsub.f32 %v3854, 1.0
        %v3884 = vsub.f32 %v3856, 1.0
        %v3885 = vsub.f32 %v3858, 1.0
        %v3886 = vsub.f32 %v3860, 1.0
        %v3887 = vsub.f32 %v3862, 1.0
        %v3888 = vsub.f32 %v3864, 1.0
        %v3889 = vsel %vm3769, %v3675, %v3865
        %v3890 = vsel %vm3770, %v3678, %v3866
        %v3891 = vsel %vm3771, %v3683, %v3867
        %v3892 = vsel %vm3772, %v3686, %v3868
        %v3893 = vsel %vm3773, %v3691, %v3869
        %v3894 = vsel %vm3774, %v3694, %v3870
        %v3895 = vsel %vm3775, %v3699, %v3871
        %v3896 = vsel %vm3776, %v3702, %v3872
        %v3897 = vsel %vm3777, %v3707, %v3873
        %v3898 = vsel %vm3778, %v3710, %v3874
        %v3899 = vsel %vm3779, %v3715, %v3875
        %v3900 = vsel %vm3780, %v3718, %v3876
        %v3901 = vsel %vm3781, %v3723, %v3877
        %v3902 = vsel %vm3782, %v3726, %v3878
        %v3903 = vsel %vm3783, %v3731, %v3879
        %v3904 = vsel %vm3784, %v3734, %v3880
        %v3905 = vsel %vm3785, %v3739, %v3881
        %v3906 = vsel %vm3786, %v3742, %v3882
        %v3907 = vsel %vm3787, %v3747, %v3883
        %v3908 = vsel %vm3788, %v3750, %v3884
        %v3909 = vsel %vm3789, %v3755, %v3885
        %v3910 = vsel %vm3790, %v3758, %v3886
        %v3911 = vsel %vm3791, %v3763, %v3887
        %v3912 = vsel %vm3792, %v3766, %v3888
        %v3913 = vpack.c.bf16 %v3890, %v3889
        %v3914 = vpack.c.bf16 %v3892, %v3891
        %v3915 = vpack.c.bf16 %v3894, %v3893
        %v3916 = vpack.c.bf16 %v3896, %v3895
        %v3917 = vpack.c.bf16 %v3898, %v3897
        %v3918 = vpack.c.bf16 %v3900, %v3899
        %v3919 = vpack.c.bf16 %v3902, %v3901
        %v3920 = vpack.c.bf16 %v3904, %v3903
        %v3921 = vpack.c.bf16 %v3906, %v3905
        %v3922 = vpack.c.bf16 %v3908, %v3907
        %v3923 = vpack.c.bf16 %v3910, %v3909
        %v3924 = vpack.c.bf16 %v3912, %v3911
        %v3925 = vld [vmem:[%s3] sm:$0xf]
        %v3926 = vld [vmem:[%s3 + $0x4] sm:$0xf]
        %v3927 = vld [vmem:[%s3 + $0x8] sm:$0xf]
        %v3928 = vld [vmem:[%s3 + $0xc] sm:$0xf]
        %v3929 = vld [vmem:[%s4] sm:$0x1]
        %v3931 = vlaneseq
        %v3932 = vshrl.u32 %v3931, 7
        %v3933 = vsub.s32 0, %v3932
        %v3934 = vrot.slane %v3929, %v3933
        %v3940 = vunpack.c.l.b16 %v3925
        %v3941 = vunpack.c.l.b16 %v3926
        %v3942 = vunpack.c.l.b16 %v3927
        %v3943 = vunpack.c.l.b16 %v3928
        %v3944 = vpack.c.b16 %v3941, %v3940
        %v3945 = vpack.c.b16 %v3943, %v3942
        %vm3948 = vcmask 261120
        %v3950 = vsel %vm3948, %v3913, 0
        %v3953 = vsel %vm3948, %v3914, 0
        %v3956 = vsel %vm3948, %v3915, 0
        %v3959 = vsel %vm3948, %v3916, 0
        %v3962 = vsel %vm3948, %v3917, 0
        %v3965 = vsel %vm3948, %v3918, 0
        %v3968 = vsel %vm3948, %v3919, 0
        %v3971 = vsel %vm3948, %v3920, 0
        %v3974 = vsel %vm3948, %v3921, 0
        %v3977 = vsel %vm3948, %v3922, 0
        %v3980 = vsel %vm3948, %v3923, 0
        %v3983 = vsel %vm3948, %v3924, 0
        %3985 = vmatprep.subr.bf16.mxu0 0
        %3986 = vmatpush1.bf16.msra.mxu0 %v3944
        %3987 = vmatprep.subr.bf16.mxu0 0
        %3988 = vmatpush1.bf16.msra.mxu0 %v3945
        %3989 = vmatprep.subr.bf16.mxu0 0
        %3990 = vmatpush1.bf16.msra.mxu0 0
        %3991 = vmatprep.subr.bf16.mxu0 0
        %3992 = vmatpush1.bf16.msra.mxu0 0
        %3993 = vmatprep.subr.bf16.mxu0 0
        %3994 = vmatpush1.bf16.msra.mxu0 0
        %3995 = vmatprep.subr.bf16.mxu0 0
        %3996 = vmatpush1.bf16.msra.mxu0 0
        %3997 = vmatprep.subr.bf16.mxu0 0
        %3998 = vmatpush1.bf16.msra.mxu0 0
        %3999 = vmatprep.subr.bf16.mxu0 0
        %4000 = vmatpush1.bf16.msra.mxu0 0
        %4001 = vmatprep.subr.bf16.mxu0 0
        %4002 = vmatpush1.bf16.msra.mxu0 0
        %4003 = vmatprep.subr.bf16.mxu0 0
        %4004 = vmatpush1.bf16.msra.mxu0 0
        %4005 = vmatprep.subr.bf16.mxu0 0
        %4006 = vmatpush1.bf16.msra.mxu0 0
        %4007 = vmatprep.subr.bf16.mxu0 0
        %4008 = vmatpush1.bf16.msra.mxu0 0
        %4009 = vmatprep.subr.bf16.mxu0 0
        %4010 = vmatpush1.bf16.msra.mxu0 0
        %4011 = vmatprep.subr.bf16.mxu0 0
        %4012 = vmatpush1.bf16.msra.mxu0 0
        %4013 = vmatprep.subr.bf16.mxu0 0
        %4014 = vmatpush1.bf16.msra.mxu0 0
        %4015 = vmatprep.subr.bf16.mxu0 0
        %4016 = vmatpush1.bf16.msra.mxu0 0
        %4017 = vmatprep.mubr.bf16.mxu0 0
        %4018 = vmatmul.mubr.bf16.gmra.mrb[0].mxu0 %v3950
        %v4019 = vpop.f32.mrb[0].mxu0
        %v4020 = vadd.f32 %v3934, %v4019
        %v4021 = vpop.f32.mrb[0].mxu0
        %v4022 = vpop.f32.mrb[0].mxu0
        %v4023 = vadd.f32 %v3934, %v4022
        %v4024 = vpop.f32.mrb[0].mxu0
        %4025 = vmatprep.mubr.bf16.mxu0 0
        %4026 = vmatmul.mubr.bf16.gmra.mrb[0].mxu0 %v3953
        %v4027 = vpop.f32.mrb[0].mxu0
        %v4028 = vadd.f32 %v3934, %v4027
        %v4029 = vpop.f32.mrb[0].mxu0
        %v4030 = vpop.f32.mrb[0].mxu0
        %v4031 = vadd.f32 %v3934, %v4030
        %v4032 = vpop.f32.mrb[0].mxu0
        %4033 = vmatprep.mubr.bf16.mxu0 0
        %4034 = vmatmul.mubr.bf16.gmra.mrb[0].mxu0 %v3956
        %v4035 = vpop.f32.mrb[0].mxu0
        %v4036 = vadd.f32 %v3934, %v4035
        %v4037 = vpop.f32.mrb[0].mxu0
        %v4038 = vpop.f32.mrb[0].mxu0
        %v4039 = vadd.f32 %v3934, %v4038
        %v4040 = vpop.f32.mrb[0].mxu0
        %4041 = vmatprep.mubr.bf16.mxu0 0
        %4042 = vmatmul.mubr.bf16.gmra.mrb[0].mxu0 %v3959
        %v4043 = vpop.f32.mrb[0].mxu0
        %v4044 = vadd.f32 %v3934, %v4043
        %v4045 = vpop.f32.mrb[0].mxu0
        %v4046 = vpop.f32.mrb[0].mxu0
        %v4047 = vadd.f32 %v3934, %v4046
        %v4048 = vpop.f32.mrb[0].mxu0
        %4049 = vmatprep.mubr.bf16.mxu0 0
        %4050 = vmatmul.mubr.bf16.gmra.mrb[0].mxu0 %v3962
        %v4051 = vpop.f32.mrb[0].mxu0
        %v4052 = vadd.f32 %v3934, %v4051
        %v4053 = vpop.f32.mrb[0].mxu0
        %v4054 = vpop.f32.mrb[0].mxu0
        %v4055 = vadd.f32 %v3934, %v4054
        %v4056 = vpop.f32.mrb[0].mxu0
        %4057 = vmatprep.mubr.bf16.mxu0 0
        %4058 = vmatmul.mubr.bf16.gmra.mrb[0].mxu0 %v3965
        %v4059 = vpop.f32.mrb[0].mxu0
        %v4060 = vadd.f32 %v3934, %v4059
        %v4061 = vpop.f32.mrb[0].mxu0
        %v4062 = vpop.f32.mrb[0].mxu0
        %v4063 = vadd.f32 %v3934, %v4062
        %v4064 = vpop.f32.mrb[0].mxu0
        %4065 = vmatprep.mubr.bf16.mxu0 0
        %4066 = vmatmul.mubr.bf16.gmra.mrb[0].mxu0 %v3968
        %v4067 = vpop.f32.mrb[0].mxu0
        %v4068 = vadd.f32 %v3934, %v4067
        %v4069 = vpop.f32.mrb[0].mxu0
        %v4070 = vpop.f32.mrb[0].mxu0
        %v4071 = vadd.f32 %v3934, %v4070
        %v4072 = vpop.f32.mrb[0].mxu0
        %4073 = vmatprep.mubr.bf16.mxu0 0
        %4074 = vmatmul.mubr.bf16.gmra.mrb[0].mxu0 %v3971
        %v4075 = vpop.f32.mrb[0].mxu0
        %v4076 = vadd.f32 %v3934, %v4075
        %v4077 = vpop.f32.mrb[0].mxu0
        %v4078 = vpop.f32.mrb[0].mxu0
        %v4079 = vadd.f32 %v3934, %v4078
        %v4080 = vpop.f32.mrb[0].mxu0
        %4081 = vmatprep.mubr.bf16.mxu0 0
        %4082 = vmatmul.mubr.bf16.gmra.mrb[0].mxu0 %v3974
        %v4083 = vpop.f32.mrb[0].mxu0
        %v4084 = vadd.f32 %v3934, %v4083
        %v4085 = vpop.f32.mrb[0].mxu0
        %v4086 = vpop.f32.mrb[0].mxu0
        %v4087 = vadd.f32 %v3934, %v4086
        %v4088 = vpop.f32.mrb[0].mxu0
        %4089 = vmatprep.mubr.bf16.mxu0 0
        %4090 = vmatmul.mubr.bf16.gmra.mrb[0].mxu0 %v3977
        %v4091 = vpop.f32.mrb[0].mxu0
        %v4092 = vadd.f32 %v3934, %v4091
        %v4093 = vpop.f32.mrb[0].mxu0
        %v4094 = vpop.f32.mrb[0].mxu0
        %v4095 = vadd.f32 %v3934, %v4094
        %v4096 = vpop.f32.mrb[0].mxu0
        %4097 = vmatprep.mubr.bf16.mxu0 0
        %4098 = vmatmul.mubr.bf16.gmra.mrb[0].mxu0 %v3980
        %v4099 = vpop.f32.mrb[0].mxu0
        %v4100 = vadd.f32 %v3934, %v4099
        %v4101 = vpop.f32.mrb[0].mxu0
        %v4102 = vpop.f32.mrb[0].mxu0
        %v4103 = vadd.f32 %v3934, %v4102
        %v4104 = vpop.f32.mrb[0].mxu0
        %4105 = vmatprep.mubr.bf16.mxu0 0
        %4106 = vmatmul.mubr.bf16.gmra.mrb[0].mxu0 %v3983
        %v4107 = vpop.f32.mrb[0].mxu0
        %v4108 = vadd.f32 %v3934, %v4107
        %v4109 = vpop.f32.mrb[0].mxu0
        %v4110 = vpop.f32.mrb[0].mxu0
        %v4111 = vadd.f32 %v3934, %v4110
        %v4112 = vpop.f32.mrb[0].mxu0
        %4113 = vdwg.mxu0
        %vm4114 = vcmask 326656
        %v4115 = vsel %vm4114, %v4020, 0.0
        %v4116 = vsel %vm4114, %v4023, 0.0
        %v4117 = vadd.f32 %v4115, %v4116
        %v4118 = vsel %vm4114, %v4028, 0.0
        %v4119 = vadd.f32 %v4117, %v4118
        %v4120 = vsel %vm4114, %v4031, 0.0
        %v4121 = vadd.f32 %v4119, %v4120
        %v4122 = vsel %vm4114, %v4036, 0.0
        %v4123 = vadd.f32 %v4121, %v4122
        %v4124 = vsel %vm4114, %v4039, 0.0
        %v4125 = vadd.f32 %v4123, %v4124
        %v4126 = vsel %vm4114, %v4044, 0.0
        %v4127 = vadd.f32 %v4125, %v4126
        %v4128 = vsel %vm4114, %v4047, 0.0
        %v4129 = vadd.f32 %v4127, %v4128
        %v4130 = vrot.slane %v4129, 4
        %v4131 = vadd.f32 %v4129, %v4130
        %v4132 = vrot.slane %v4131, 2
        %v4133 = vadd.f32 %v4131, %v4132
        %v4134 = vrot.slane %v4133, 1
        %v4135 = vadd.f32 %v4133, %v4134
        %v4136 = vsel %vm4114, %v4052, 0.0
        %v4137 = vsel %vm4114, %v4055, 0.0
        %v4138 = vadd.f32 %v4136, %v4137
        %v4139 = vsel %vm4114, %v4060, 0.0
        %v4140 = vadd.f32 %v4138, %v4139
        %v4141 = vsel %vm4114, %v4063, 0.0
        %v4142 = vadd.f32 %v4140, %v4141
        %v4143 = vsel %vm4114, %v4068, 0.0
        %v4144 = vadd.f32 %v4142, %v4143
        %v4145 = vsel %vm4114, %v4071, 0.0
        %v4146 = vadd.f32 %v4144, %v4145
        %v4147 = vsel %vm4114, %v4076, 0.0
        %v4148 = vadd.f32 %v4146, %v4147
        %v4149 = vsel %vm4114, %v4079, 0.0
        %v4150 = vadd.f32 %v4148, %v4149
        %v4151 = vrot.slane %v4150, 4
        %v4152 = vadd.f32 %v4150, %v4151
        %v4153 = vrot.slane %v4152, 2
        %v4154 = vadd.f32 %v4152, %v4153
        %v4155 = vrot.slane %v4154, 1
        %v4156 = vadd.f32 %v4154, %v4155
        %v4157 = vsel %vm4114, %v4084, 0.0
        %v4158 = vsel %vm4114, %v4087, 0.0
        %v4159 = vadd.f32 %v4157, %v4158
        %v4160 = vsel %vm4114, %v4092, 0.0
        %v4161 = vadd.f32 %v4159, %v4160
        %v4162 = vsel %vm4114, %v4095, 0.0
        %v4163 = vadd.f32 %v4161, %v4162
        %v4164 = vsel %vm4114, %v4100, 0.0
        %v4165 = vadd.f32 %v4163, %v4164
        %v4166 = vsel %vm4114, %v4103, 0.0
        %v4167 = vadd.f32 %v4165, %v4166
        %v4168 = vsel %vm4114, %v4108, 0.0
        %v4169 = vadd.f32 %v4167, %v4168
        %v4170 = vsel %vm4114, %v4111, 0.0
        %v4171 = vadd.f32 %v4169, %v4170
        %v4172 = vrot.slane %v4171, 4
        %v4173 = vadd.f32 %v4171, %v4172
        %v4174 = vrot.slane %v4173, 2
        %v4175 = vadd.f32 %v4173, %v4174
        %v4176 = vrot.slane %v4175, 1
        %v4177 = vadd.f32 %v4175, %v4176
        %v4178 = vadd.f32 %v4135, %v4156
        %v4179 = vmul.f32 %v4178, 0.0078125
        %v4180 = vadd.f32 %v4156, %v4177
        %v4181 = vmul.f32 %v4180, 0.0078125
        %4183 = vrot.lane.b32.xlu0 %v4181, 40
        %v4184 = vpop.permute.xlu0 %4183
        %v4186 = vsel %vm4114, %v4179, %v4184
        %v4187 = vpack.c.bf16 %v4186, %v4186
        %v4188 = vld [vmem:[%s5] sm:$0xf]
        %v4189 = vld [vmem:[%s5 + $0x4] sm:$0xf]
        %v4190 = vld [vmem:[%s5 + $0x8] sm:$0xf]
        %v4191 = vld [vmem:[%s5 + $0xc] sm:$0xf]
        %v4192 = vld [vmem:[%s5 + $0x10] sm:$0xf]
        %v4193 = vld [vmem:[%s5 + $0x14] sm:$0xf]
        %v4194 = vld [vmem:[%s5 + $0x18] sm:$0xf]
        %v4195 = vld [vmem:[%s5 + $0x1c] sm:$0xf]
        %v4196 = vld [vmem:[%s5 + $0x20] sm:$0xf]
        %v4197 = vld [vmem:[%s5 + $0x24] sm:$0xf]
        %v4198 = vld [vmem:[%s6] sm:$0x1]
        %v4209 = vunpack.c.l.b16 %v4188
        %v4210 = vunpack.c.l.b16 %v4189
        %v4211 = vunpack.c.l.b16 %v4190
        %v4212 = vunpack.c.l.b16 %v4191
        %v4213 = vunpack.c.l.b16 %v4192
        %v4214 = vunpack.c.l.b16 %v4193
        %v4215 = vunpack.c.l.b16 %v4194
        %v4216 = vunpack.c.l.b16 %v4195
        %v4217 = vunpack.c.l.b16 %v4196
        %v4218 = vunpack.c.l.b16 %v4197
        %v4219 = vpack.c.b16 %v4210, %v4209
        %v4220 = vpack.c.b16 %v4212, %v4211
        %v4221 = vpack.c.b16 %v4214, %v4213
        %v4222 = vpack.c.b16 %v4216, %v4215
        %v4223 = vpack.c.b16 %v4218, %v4217
        %vm4229 = vcmask 654336
        %v4231 = vsel %vm4229, %v4187, 0
        %4233 = vmatprep.subr.bf16.mxu0 0
        %4234 = vmatpush1.bf16.msra.mxu0 %v4219
        %4235 = vmatprep.subr.bf16.mxu0 0
        %4236 = vmatpush1.bf16.msra.mxu0 %v4220
        %4237 = vmatprep.subr.bf16.mxu0 0
        %4238 = vmatpush1.bf16.msra.mxu0 %v4221
        %4239 = vmatprep.subr.bf16.mxu0 0
        %4240 = vmatpush1.bf16.msra.mxu0 %v4222
        %4241 = vmatprep.subr.bf16.mxu0 0
        %4242 = vmatpush1.bf16.msra.mxu0 %v4223
        %4243 = vmatprep.subr.bf16.mxu0 0
        %4244 = vmatpush1.bf16.msra.mxu0 0
        %4245 = vmatprep.subr.bf16.mxu0 0
        %4246 = vmatpush1.bf16.msra.mxu0 0
        %4247 = vmatprep.subr.bf16.mxu0 0
        %4248 = vmatpush1.bf16.msra.mxu0 0
        %4249 = vmatprep.subr.bf16.mxu0 0
        %4250 = vmatpush1.bf16.msra.mxu0 0
        %4251 = vmatprep.subr.bf16.mxu0 0
        %4252 = vmatpush1.bf16.msra.mxu0 0
        %4253 = vmatprep.subr.bf16.mxu0 0
        %4254 = vmatpush1.bf16.msra.mxu0 0
        %4255 = vmatprep.subr.bf16.mxu0 0
        %4256 = vmatpush1.bf16.msra.mxu0 0
        %4257 = vmatprep.subr.bf16.mxu0 0
        %4258 = vmatpush1.bf16.msra.mxu0 0
        %4259 = vmatprep.subr.bf16.mxu0 0
        %4260 = vmatpush1.bf16.msra.mxu0 0
        %4261 = vmatprep.subr.bf16.mxu0 0
        %4262 = vmatpush1.bf16.msra.mxu0 0
        %4263 = vmatprep.subr.bf16.mxu0 0
        %4264 = vmatpush1.bf16.msra.mxu0 0
        %4265 = vmatprep.mubr.bf16.mxu0 0
        %4266 = vmatmul.mubr.bf16.gmra.mrb[0].mxu0 %v4231
        %v4267 = vpop.f32.mrb[0].mxu0
        %v4268 = vadd.f32 %v4198, %v4267
        %v4269 = vpop.f32.mrb[0].mxu0
        %v4270 = vpop.f32.mrb[0].mxu0
        %v4271 = vpop.f32.mrb[0].mxu0
        %4272 = vdwg.mxu0
        %vm4273 = vcmask 73728
        %4274 = vst.msk [vmem:[%s270] sm:$0x1] %vm4273, %v4268
        %s4275 = sand.u32 %s181, 1
        %s4276 = scalar_lea.sflag [#allocation4], %s4275
        %s4277 = sand.u32 %s181, 1
        %s4278 = scalar_lea.vmem [#allocation3], %s4277
        // Predicated region
        $region49: #{_lambda_.1} parent=47 // pred_check
          %p4279 = pneg %p191
        $region50: #{_lambda_.1} parent=47 // pred_check_branch
          %4281 = sbr.rel (%p4279) target = $region52
        $region51: #{_lambda_.1} parent=47 // pred_region
          %s4283 = ssub.s32 16, 16
          %4284 = vsyncadd %s4276, %s4283
          %s4285 = smul.addr %s21, 16
          %s4286 = scalar_lea.hbm %s7, %s4285
          %s4288 = sshll.u32 %s4278, 4
          %s4289 = int_to_ptr.vmem [resolvable:$true] %s4288
          %4291 = dma.vmem_to_hbm [thread:$0]  %s4289, 16, %s4286, %s4276
        $region52: #{_lambda_.1} parent=47 // pred_fallthru
          _
      $region48: #{_lambda_.1} parent=5 // pred_fallthru
        _
      %p4292 = scmp.le.s32.totalorder 2, %s16
      // Predicated region
      $region53: #{_lambda_.1} parent=5 // pred_check
        %p4293 = pneg %p4292
      $region54: #{_lambda_.1} parent=5 // pred_check_branch
        %4295 = sbr.rel (%p4293) target = $region56
      $region55: #{_lambda_.1} parent=5 // pred_region
        %s4296 = ssub.s32 %s16, 2
        // Predicated region
        $region57: #{_lambda_.1} parent=55 // pred_check
          %p4297 = pneg %p197
        $region58: #{_lambda_.1} parent=55 // pred_check_branch
          %4299 = sbr.rel (%p4297) target = $region60
        $region59: #{_lambda_.1} parent=55 // pred_region
          %s4300 = sand.u32 %s182, 1
          %s4301 = scalar_lea.sflag [#allocation4], %s4300
          %s4302 = sand.u32 %s182, 1
          %s4303 = scalar_lea.vmem [#allocation3], %s4302
          %4304 = dma.done %s4301, 16
        $region60: #{_lambda_.1} parent=55 // pred_fallthru
          _
      $region56: #{_lambda_.1} parent=5 // pred_fallthru
        _
    $region6: #{_lambda_.1} parent=1 // loop_footer
      %s20 = sadd.s32 1, %s16
    $region7: #{_lambda_.1} parent=1 // loop_footer_branch
      %15 = sbr.rel target = $region3
    $region8: #{_lambda_.1} parent=1 // loop_exit
      _
    %4305 = vsyncpa [#allocation4], 1
    %s4306 = scalar_lea.sflag [#allocation4], 1
    %4307 = vsyncpa %s4306, 1

</llo_original>
